<compile_context>
chip_gen: v7x
topology: tpu7x:2x2x1
jax: 0.10.0
libtpu: 0.0.40
codegen_flags: <defaults>
</compile_context>

<pallas_src>
import jax
import jax.numpy as jnp
from jax.experimental import pallas as pl
from jax.experimental.pallas import tpu as pltpu


_VMEM_LIMIT = 32 * 1024 * 1024  # well inside v7x 64 MiB; tiles below are tiny


def _round_up(x, m):
    return (x + m - 1) // m * m


def _pick_tm(mp, target=512):
    """Tile size along M: divides mp exactly (no ragged/masked blocks), is a
    multiple of 16 (bf16 sublane packing), <= target when possible, and
    prefers an even tile count so v7x megacore gets both cores busy."""
    assert mp % 16 == 0
    units = mp // 16
    divisors = [d for d in range(1, units + 1) if units % d == 0]
    even_fit = [d for d in divisors if d % 2 == 0 and mp // d <= target]
    fit = [d for d in divisors if mp // d <= target]
    if even_fit:
        return mp // min(even_fit)
    if fit:
        return mp // min(fit)
    return 16


# ----------------------------------------------------------------------------
# Pallas kernels
# ----------------------------------------------------------------------------
def _conv_pool_kernel(p_ref, w_ref, b_ref, o_ref):
    # p_ref: (4, TM, K) bf16 -- the four 2x2-pool taps' im2col rows
    # w_ref: (K, N) bf16, b_ref: (1, N) f32
    # o_ref: (TM, N) bf16 = relu(max_t(p_t @ w) + b)  ==  maxpool2x2(relu(conv + b))
    w = w_ref[...]
    m = jnp.dot(p_ref[0], w, preferred_element_type=jnp.float32)
    m = jnp.maximum(m, jnp.dot(p_ref[1], w, preferred_element_type=jnp.float32))
    m = jnp.maximum(m, jnp.dot(p_ref[2], w, preferred_element_type=jnp.float32))
    m = jnp.maximum(m, jnp.dot(p_ref[3], w, preferred_element_type=jnp.float32))
    o_ref[...] = jnp.maximum(m + b_ref[...], 0.0).astype(o_ref.dtype)


def _fc_fused_kernel(a_ref, w1_ref, b1_ref, w2_ref, b2_ref, o_ref):
    # h = relu(a @ w1 + b1); o = relu(h @ w2 + b2). h never leaves VMEM.
    h = jnp.dot(a_ref[...], w1_ref[...], preferred_element_type=jnp.float32)
    h = jnp.maximum(h + b1_ref[...], 0.0)
    o = jnp.dot(h.astype(w2_ref.dtype), w2_ref[...],
                preferred_element_type=jnp.float32)
    o_ref[...] = jnp.maximum(o + b2_ref[...], 0.0).astype(o_ref.dtype)


# ----------------------------------------------------------------------------
# Wrappers
# ----------------------------------------------------------------------------
def conv_pool(p4, w, b, *, tile_target=512):
    """Fused conv(stride1, valid) + bias + ReLU + 2x2/2 max-pool.

    p4: (4, M, K) bf16 tap-grouped im2col rows (M = B*OH2*OW2, rows (b,oh2,ow2)).
    w : (Kp, N) bf16 prepared weight (Kp >= K, N % 128 == 0, padding zeros).
    b : (1, N) f32 bias (padded lanes zero).
    Returns (M, N) bf16.
    """
    _, M, K = p4.shape
    Kp, N = w.shape
    assert Kp >= K and N % 128 == 0
    if Kp != K:
        p4 = jnp.pad(p4, ((0, 0), (0, 0), (0, Kp - K)))
    Mp = _round_up(M, 16)
    if Mp != M:
        p4 = jnp.pad(p4, ((0, 0), (0, Mp - M), (0, 0)))
    tm = _pick_tm(Mp, tile_target)
    grid = (Mp // tm,)
    cost = pl.CostEstimate(
        flops=2 * 4 * Mp * Kp * N,
        transcendentals=0,
        bytes_accessed=4 * Mp * Kp * 2 + Kp * N * 2 + N * 4 + Mp * N * 2)
    out = pl.pallas_call(
        _conv_pool_kernel,
        out_shape=jax.ShapeDtypeStruct((Mp, N), jnp.bfloat16),
        grid=grid,
        in_specs=[
            pl.BlockSpec((4, tm, Kp), lambda i: (0, i, 0)),
            pl.BlockSpec((Kp, N), lambda i: (0, 0)),
            pl.BlockSpec((1, N), lambda i: (0, 0)),
        ],
        out_specs=pl.BlockSpec((tm, N), lambda i: (i, 0)),
        compiler_params=pltpu.CompilerParams(
            dimension_semantics=("parallel",),
            vmem_limit_bytes=_VMEM_LIMIT),
        cost_estimate=cost,
    )(p4, w, b)
    return out[:M] if Mp != M else out


def fc_fused(a, w1, b1, w2, b2, *, tile_target=256):
    """relu(relu(a @ w1 + b1) @ w2 + b2) in a single pallas_call."""
    M, K = a.shape
    K1, N1 = w1.shape
    N1b, N2 = w2.shape
    assert K == K1 and N1 == N1b and N1 % 128 == 0 and N2 % 128 == 0
    a = a.astype(jnp.bfloat16)
    Mp = _round_up(M, 16)
    if Mp != M:
        a = jnp.pad(a, ((0, Mp - M), (0, 0)))
    tm = _pick_tm(Mp, tile_target)
    grid = (Mp // tm,)
    cost = pl.CostEstimate(
        flops=2 * Mp * (K * N1 + N1 * N2),
        transcendentals=0,
        bytes_accessed=(Mp * K * 2 + K * N1 * 2 + N1 * N2 * 2
                        + (N1 + N2) * 4 + Mp * N2 * 4))
    out = pl.pallas_call(
        _fc_fused_kernel,
        out_shape=jax.ShapeDtypeStruct((Mp, N2), jnp.float32),
        grid=grid,
        in_specs=[
            pl.BlockSpec((tm, K), lambda i: (i, 0)),
            pl.BlockSpec((K, N1), lambda i: (0, 0)),
            pl.BlockSpec((1, N1), lambda i: (0, 0)),
            pl.BlockSpec((N1, N2), lambda i: (0, 0)),
            pl.BlockSpec((1, N2), lambda i: (0, 0)),
        ],
        out_specs=pl.BlockSpec((tm, N2), lambda i: (i, 0)),
        compiler_params=pltpu.CompilerParams(
            dimension_semantics=("parallel",),
            vmem_limit_bytes=_VMEM_LIMIT),
        cost_estimate=cost,
    )(a, w1, b1, w2, b2)
    return out[:M] if Mp != M else out


# ----------------------------------------------------------------------------
# Plain-JAX glue: tap-grouped im2col (tiny; bf16)
# ----------------------------------------------------------------------------
def _conv_pool_patches(x, kh, kw):
    """Tap-grouped im2col for a stride-1 valid conv followed by 2x2/2 max-pool.

    x: (B, H, W) or (B, H, W, C) bf16.  Returns (4, B*OH2*OW2, KH*KW*C) where
    tap t = 2*p + q selects the conv-output parity (p, q) inside each pool
    window; rows are ordered (b, oh2, ow2); columns are ordered (kh, kw, c),
    matching the prepared weight rows.
    """
    if x.ndim == 3:
        x = x[..., None]
    B, H, W, C = x.shape
    oh, ow = H - kh + 1, W - kw + 1
    cols = [x[:, i:i + oh, j:j + ow, :] for i in range(kh) for j in range(kw)]
    pm = jnp.concatenate(cols, axis=-1)                     # (B, oh, ow, kh*kw*C)
    taps = [pm[:, p::2, q::2, :] for p in (0, 1) for q in (0, 1)]
    p4 = jnp.stack(taps, axis=0)                            # (4, B, oh/2, ow/2, K)
    return p4.reshape(4, B * (oh // 2) * (ow // 2), kh * kw * C)


# ----------------------------------------------------------------------------
# Parameters
# ----------------------------------------------------------------------------
def init_params(key):
    ks = jax.random.split(key, 8)
    scale = 0.05
    return {
        "conv1_w": jax.random.normal(ks[0], (20, 1, 5, 5), jnp.float32) * scale,
        "conv1_b": jax.random.normal(ks[1], (20,), jnp.float32) * scale,
        "conv2_w": jax.random.normal(ks[2], (50, 20, 5, 5), jnp.float32) * scale,
        "conv2_b": jax.random.normal(ks[3], (50,), jnp.float32) * scale,
        "fc1_w": jax.random.normal(ks[4], (500, 800), jnp.float32) * scale,
        "fc1_b": jax.random.normal(ks[5], (500,), jnp.float32) * scale,
        "fc2_w": jax.random.normal(ks[6], (10, 500), jnp.float32) * scale,
        "fc2_b": jax.random.normal(ks[7], (10,), jnp.float32) * scale,
    }


def prepare_params(p):
    """One-time repack (outside jit): (kh,kw,c)-ordered matmul weights, K/N
    zero padding for lane-dense MXU tiles, bf16 weights, f32 biases."""
    def conv_w(w, kpad, npad):
        OC, C, KH, KW = w.shape
        m = jnp.transpose(w, (2, 3, 1, 0)).reshape(KH * KW * C, OC)   # (kh,kw,c) rows
        m = jnp.pad(m, ((0, kpad - m.shape[0]), (0, npad - OC)))
        return m.astype(jnp.bfloat16)

    def bias(b, npad):
        return jnp.pad(b, (0, npad - b.shape[0])).reshape(1, npad).astype(jnp.float32)

    # PyTorch flattens NCHW: feature index = c*16 + h*4 + w over (B,50,4,4).
    # Our fc input is the NHWC-padded pool2 output (B,4,4,128) flattened to
    # (B,2048): feature index = (h*4+w)*128 + c.  Permute fc1 columns to
    # (h, w, c) order and zero-pad c 50->128 to match.
    fc1 = p["fc1_w"].reshape(500, 50, 4, 4).transpose(0, 2, 3, 1)     # (500,4,4,50)
    fc1 = jnp.pad(fc1, ((0, 0), (0, 0), (0, 0), (0, 128 - 50)))       # (500,4,4,128)
    fc1 = fc1.reshape(500, 2048).T                                    # (2048,500)
    fc1 = jnp.pad(fc1, ((0, 0), (0, 512 - 500))).astype(jnp.bfloat16)

    fc2 = p["fc2_w"].T                                                # (500,10)
    fc2 = jnp.pad(fc2, ((0, 512 - 500), (0, 128 - 10))).astype(jnp.bfloat16)

    return {
        "conv1_w": conv_w(p["conv1_w"], 32, 128),    # K 25->32,   N 20->128
        "conv1_b": bias(p["conv1_b"], 128),
        "conv2_w": conv_w(p["conv2_w"], 512, 128),   # K 500->512, N 50->128
        "conv2_b": bias(p["conv2_b"], 128),
        "fc1_w": fc1,                                # (2048, 512)
        "fc1_b": bias(p["fc1_b"], 512),
        "fc2_w": fc2,                                # (512, 128)
        "fc2_b": bias(p["fc2_b"], 128),
    }


# ----------------------------------------------------------------------------
# LeNet forward (Pallas) and pure-JAX reference
# ----------------------------------------------------------------------------
@jax.jit
def lenet_forward(prepared, x_nchw):
    B = x_nchw.shape[0]
    x = x_nchw.reshape(B, 28, 28).astype(jnp.bfloat16)           # C_in == 1

    p1 = _conv_pool_patches(x, 5, 5)                             # (4, B*144, 25)
    h1 = conv_pool(p1, prepared["conv1_w"], prepared["conv1_b"]) # (B*144, 128) bf16
    h1 = h1.reshape(B, 12, 12, 128)[..., :20]                    # keep real channels

    p2 = _conv_pool_patches(h1, 5, 5)                            # (4, B*16, 500)
    h2 = conv_pool(p2, prepared["conv2_w"], prepared["conv2_b"]) # (B*16, 128) bf16

    a = h2.reshape(B, 16 * 128)          # (h,w,c)-flatten; fc1_w pre-permuted to match
    out = fc_fused(a, prepared["fc1_w"], prepared["fc1_b"],
                   prepared["fc2_w"], prepared["fc2_b"])         # (B, 128) f32
    return out[:, :10]


def lenet_reference(params, x):
    """Pure-JAX f32 reference with PyTorch semantics (for a tolerance check)."""
    def conv(y, w, b):
        y = jax.lax.conv_general_dilated(
            y, w, window_strides=(1, 1), padding="VALID",
            dimension_numbers=("NCHW", "OIHW", "NCHW"))
        return jax.nn.relu(y + b[None, :, None, None])

    def pool(y):
        return jax.lax.reduce_window(y, -jnp.inf, jax.lax.max,
                                     (1, 1, 2, 2), (1, 1, 2, 2), "VALID")

    out = pool(conv(x, params["conv1_w"], params["conv1_b"]))
    out = pool(conv(out, params["conv2_w"], params["conv2_b"]))
    out = out.reshape(out.shape[0], -1)                          # NCHW flatten -> (B,800)
    out = jax.nn.relu(out @ params["fc1_w"].T + params["fc1_b"])
    out = jax.nn.relu(out @ params["fc2_w"].T + params["fc2_b"])
    return out


if __name__ == "__main__":
    key = jax.random.PRNGKey(0)
    pkey, xkey = jax.random.split(key)
    params = init_params(pkey)
    prepared = prepare_params(params)
    # LeNet geometry requires 28x28 single-channel input (800 = 50*4*4).
    x = jax.random.normal(xkey, (2, 1, 28, 28), jnp.float32)

    y = lenet_forward(prepared, x)
    jax.block_until_ready(y)

    assert y.shape == (2, 10), y.shape
    assert bool(jnp.all(jnp.isfinite(y)))
    # Tolerance check vs. f32 reference (bf16 activations/weights in the kernels).
    y_ref = lenet_reference(params, x)
    max_err = float(jnp.max(jnp.abs(y - y_ref)))
    assert max_err < 0.05, f"max abs error vs reference: {max_err}"
    print("KERNEL_OK")
</pallas_src>

<mosaic_0001>
module attributes {stable_mosaic.version = 11 : i64} {
  func.func @_conv_pool_kernel(%arg0: i32, %arg1: memref<4x144x32xbf16, #tpu.memory_space<vmem>>, %arg2: memref<32x128xbf16, #tpu.memory_space<vmem>>, %arg3: memref<1x128xf32, #tpu.memory_space<vmem>>, %arg4: memref<144x128xbf16, #tpu.memory_space<vmem>>) attributes {dimension_semantics = [#tpu.dimension_semantics<parallel>], iteration_bounds = array<i64: 2>, scalar_prefetch = 0 : i64, scratch_operands = 0 : i64, tpu.core_type = #tpu.core_type<tc>, window_params = [{transform_indices = @transform_0, window_bounds = array<i64: 4, 144, 32>}, {pipeline_mode = #tpu.pipeline_mode<synchronous>, transform_indices = @transform_1, window_bounds = array<i64: 32, 128>}, {pipeline_mode = #tpu.pipeline_mode<synchronous>, transform_indices = @transform_2, window_bounds = array<i64: 1, 128>}, {transform_indices = @transform_3, window_bounds = array<i64: 144, 128>}]} {
    %c0 = arith.constant 0 : index
    %c0_0 = arith.constant 0 : index
    %0 = vector.load %arg2[%c0, %c0_0] : memref<32x128xbf16, #tpu.memory_space<vmem>>, vector<32x128xbf16>
    %c0_1 = arith.constant 0 : index
    %c0_2 = arith.constant 0 : index
    %c0_3 = arith.constant 0 : index
    %1 = vector.load %arg1[%c0_1, %c0_2, %c0_3] : memref<4x144x32xbf16, #tpu.memory_space<vmem>>, vector<1x144x32xbf16>
    %2 = vector.shape_cast %1 : vector<1x144x32xbf16> to vector<144x32xbf16>
    %cst = arith.constant dense<0.000000e+00> : vector<144x128xf32>
    %3 = tpu.matmul %2, %0, %cst {dimension_numbers = #tpu.dot_dimension_numbers<[1], [0], [0], [1], [0, 0, 1, 1], [], []>} : vector<144x32xbf16>, vector<32x128xbf16>, vector<144x128xf32> -> vector<144x128xf32>
    %c1 = arith.constant 1 : index
    %c0_4 = arith.constant 0 : index
    %c0_5 = arith.constant 0 : index
    %4 = vector.load %arg1[%c1, %c0_4, %c0_5] : memref<4x144x32xbf16, #tpu.memory_space<vmem>>, vector<1x144x32xbf16>
    %5 = vector.shape_cast %4 : vector<1x144x32xbf16> to vector<144x32xbf16>
    %cst_6 = arith.constant dense<0.000000e+00> : vector<144x128xf32>
    %6 = tpu.matmul %5, %0, %cst_6 {dimension_numbers = #tpu.dot_dimension_numbers<[1], [0], [0], [1], [0, 0, 1, 1], [], []>} : vector<144x32xbf16>, vector<32x128xbf16>, vector<144x128xf32> -> vector<144x128xf32>
    %7 = arith.maximumf %3, %6 : vector<144x128xf32>
    %c2 = arith.constant 2 : index
    %c0_7 = arith.constant 0 : index
    %c0_8 = arith.constant 0 : index
    %8 = vector.load %arg1[%c2, %c0_7, %c0_8] : memref<4x144x32xbf16, #tpu.memory_space<vmem>>, vector<1x144x32xbf16>
    %9 = vector.shape_cast %8 : vector<1x144x32xbf16> to vector<144x32xbf16>
    %cst_9 = arith.constant dense<0.000000e+00> : vector<144x128xf32>
    %10 = tpu.matmul %9, %0, %cst_9 {dimension_numbers = #tpu.dot_dimension_numbers<[1], [0], [0], [1], [0, 0, 1, 1], [], []>} : vector<144x32xbf16>, vector<32x128xbf16>, vector<144x128xf32> -> vector<144x128xf32>
    %11 = arith.maximumf %7, %10 : vector<144x128xf32>
    %c3 = arith.constant 3 : index
    %c0_10 = arith.constant 0 : index
    %c0_11 = arith.constant 0 : index
    %12 = vector.load %arg1[%c3, %c0_10, %c0_11] : memref<4x144x32xbf16, #tpu.memory_space<vmem>>, vector<1x144x32xbf16>
    %13 = vector.shape_cast %12 : vector<1x144x32xbf16> to vector<144x32xbf16>
    %cst_12 = arith.constant dense<0.000000e+00> : vector<144x128xf32>
    %14 = tpu.matmul %13, %0, %cst_12 {dimension_numbers = #tpu.dot_dimension_numbers<[1], [0], [0], [1], [0, 0, 1, 1], [], []>} : vector<144x32xbf16>, vector<32x128xbf16>, vector<144x128xf32> -> vector<144x128xf32>
    %15 = arith.maximumf %11, %14 : vector<144x128xf32>
    %c0_13 = arith.constant 0 : index
    %c0_14 = arith.constant 0 : index
    %16 = vector.load %arg3[%c0_13, %c0_14] : memref<1x128xf32, #tpu.memory_space<vmem>>, vector<1x128xf32>
    %17 = vector.broadcast %16 : vector<1x128xf32> to vector<144x128xf32>
    %18 = arith.addf %15, %17 : vector<144x128xf32>
    %cst_15 = arith.constant 0.000000e+00 : f32
    %19 = vector.broadcast %cst_15 : f32 to vector<144x128xf32>
    %20 = arith.maximumf %18, %19 : vector<144x128xf32>
    %21 = arith.truncf %20 : vector<144x128xf32> to vector<144x128xbf16>
    %c0_16 = arith.constant 0 : index
    %c0_17 = arith.constant 0 : index
    %22 = vector.load %arg4[%c0_16, %c0_17] : memref<144x128xbf16, #tpu.memory_space<vmem>>, vector<144x128xbf16>
    tpu.vector_store %arg4[%c0_16, %c0_17], %21 {strides = array<i32>} : memref<144x128xbf16, #tpu.memory_space<vmem>>, vector<144x128xbf16>,
    return
  }
  func.func @transform_0(%arg0: i32) -> (i32, i32, i32) {
    %c0_i32 = arith.constant 0 : i32
    %c0_i32_0 = arith.constant 0 : i32
    %c0_i32_1 = arith.constant 0 : i32
    return %c0_i32, %arg0, %c0_i32_0 : i32, i32, i32
  }
  func.func @transform_1(%arg0: i32) -> (i32, i32) {
    %c0_i32 = arith.constant 0 : i32
    %c0_i32_0 = arith.constant 0 : i32
    %c0_i32_1 = arith.constant 0 : i32
    return %c0_i32, %c0_i32_0 : i32, i32
  }
  func.func @transform_2(%arg0: i32) -> (i32, i32) {
    %c0_i32 = arith.constant 0 : i32
    %c0_i32_0 = arith.constant 0 : i32
    %c0_i32_1 = arith.constant 0 : i32
    return %c0_i32, %c0_i32_0 : i32, i32
  }
  func.func @transform_3(%arg0: i32) -> (i32, i32) {
    %c0_i32 = arith.constant 0 : i32
    %c0_i32_0 = arith.constant 0 : i32
    return %arg0, %c0_i32 : i32, i32
  }
}

module attributes {stable_mosaic.version = 11 : i64} {
  func.func @_conv_pool_kernel(%arg0: i32, %arg1: memref<4x16x512xbf16, #tpu.memory_space<vmem>>, %arg2: memref<512x128xbf16, #tpu.memory_space<vmem>>, %arg3: memref<1x128xf32, #tpu.memory_space<vmem>>, %arg4: memref<16x128xbf16, #tpu.memory_space<vmem>>) attributes {dimension_semantics = [#tpu.dimension_semantics<parallel>], iteration_bounds = array<i64: 2>, scalar_prefetch = 0 : i64, scratch_operands = 0 : i64, tpu.core_type = #tpu.core_type<tc>, window_params = [{transform_indices = @transform_0, window_bounds = array<i64: 4, 16, 512>}, {pipeline_mode = #tpu.pipeline_mode<synchronous>, transform_indices = @transform_1, window_bounds = array<i64: 512, 128>}, {pipeline_mode = #tpu.pipeline_mode<synchronous>, transform_indices = @transform_2, window_bounds = array<i64: 1, 128>}, {transform_indices = @transform_3, window_bounds = array<i64: 16, 128>}]} {
    %c0 = arith.constant 0 : index
    %c0_0 = arith.constant 0 : index
    %0 = vector.load %arg2[%c0, %c0_0] : memref<512x128xbf16, #tpu.memory_space<vmem>>, vector<512x128xbf16>
    %c0_1 = arith.constant 0 : index
    %c0_2 = arith.constant 0 : index
    %c0_3 = arith.constant 0 : index
    %1 = vector.load %arg1[%c0_1, %c0_2, %c0_3] : memref<4x16x512xbf16, #tpu.memory_space<vmem>>, vector<1x16x512xbf16>
    %2 = vector.shape_cast %1 : vector<1x16x512xbf16> to vector<16x512xbf16>
    %cst = arith.constant dense<0.000000e+00> : vector<16x128xf32>
    %3 = tpu.matmul %2, %0, %cst {dimension_numbers = #tpu.dot_dimension_numbers<[1], [0], [0], [1], [0, 0, 1, 1], [], []>} : vector<16x512xbf16>, vector<512x128xbf16>, vector<16x128xf32> -> vector<16x128xf32>
    %c1 = arith.constant 1 : index
    %c0_4 = arith.constant 0 : index
    %c0_5 = arith.constant 0 : index
    %4 = vector.load %arg1[%c1, %c0_4, %c0_5] : memref<4x16x512xbf16, #tpu.memory_space<vmem>>, vector<1x16x512xbf16>
    %5 = vector.shape_cast %4 : vector<1x16x512xbf16> to vector<16x512xbf16>
    %cst_6 = arith.constant dense<0.000000e+00> : vector<16x128xf32>
    %6 = tpu.matmul %5, %0, %cst_6 {dimension_numbers = #tpu.dot_dimension_numbers<[1], [0], [0], [1], [0, 0, 1, 1], [], []>} : vector<16x512xbf16>, vector<512x128xbf16>, vector<16x128xf32> -> vector<16x128xf32>
    %7 = arith.maximumf %3, %6 : vector<16x128xf32>
    %c2 = arith.constant 2 : index
    %c0_7 = arith.constant 0 : index
    %c0_8 = arith.constant 0 : index
    %8 = vector.load %arg1[%c2, %c0_7, %c0_8] : memref<4x16x512xbf16, #tpu.memory_space<vmem>>, vector<1x16x512xbf16>
    %9 = vector.shape_cast %8 : vector<1x16x512xbf16> to vector<16x512xbf16>
    %cst_9 = arith.constant dense<0.000000e+00> : vector<16x128xf32>
    %10 = tpu.matmul %9, %0, %cst_9 {dimension_numbers = #tpu.dot_dimension_numbers<[1], [0], [0], [1], [0, 0, 1, 1], [], []>} : vector<16x512xbf16>, vector<512x128xbf16>, vector<16x128xf32> -> vector<16x128xf32>
    %11 = arith.maximumf %7, %10 : vector<16x128xf32>
    %c3 = arith.constant 3 : index
    %c0_10 = arith.constant 0 : index
    %c0_11 = arith.constant 0 : index
    %12 = vector.load %arg1[%c3, %c0_10, %c0_11] : memref<4x16x512xbf16, #tpu.memory_space<vmem>>, vector<1x16x512xbf16>
    %13 = vector.shape_cast %12 : vector<1x16x512xbf16> to vector<16x512xbf16>
    %cst_12 = arith.constant dense<0.000000e+00> : vector<16x128xf32>
    %14 = tpu.matmul %13, %0, %cst_12 {dimension_numbers = #tpu.dot_dimension_numbers<[1], [0], [0], [1], [0, 0, 1, 1], [], []>} : vector<16x512xbf16>, vector<512x128xbf16>, vector<16x128xf32> -> vector<16x128xf32>
    %15 = arith.maximumf %11, %14 : vector<16x128xf32>
    %c0_13 = arith.constant 0 : index
    %c0_14 = arith.constant 0 : index
    %16 = vector.load %arg3[%c0_13, %c0_14] : memref<1x128xf32, #tpu.memory_space<vmem>>, vector<1x128xf32>
    %17 = vector.broadcast %16 : vector<1x128xf32> to vector<16x128xf32>
    %18 = arith.addf %15, %17 : vector<16x128xf32>
    %cst_15 = arith.constant 0.000000e+00 : f32
    %19 = vector.broadcast %cst_15 : f32 to vector<16x128xf32>
    %20 = arith.maximumf %18, %19 : vector<16x128xf32>
    %21 = arith.truncf %20 : vector<16x128xf32> to vector<16x128xbf16>
    %c0_16 = arith.constant 0 : index
    %c0_17 = arith.constant 0 : index
    %22 = vector.load %arg4[%c0_16, %c0_17] : memref<16x128xbf16, #tpu.memory_space<vmem>>, vector<16x128xbf16>
    tpu.vector_store %arg4[%c0_16, %c0_17], %21 {strides = array<i32>} : memref<16x128xbf16, #tpu.memory_space<vmem>>, vector<16x128xbf16>,
    return
  }
  func.func @transform_0(%arg0: i32) -> (i32, i32, i32) {
    %c0_i32 = arith.constant 0 : i32
    %c0_i32_0 = arith.constant 0 : i32
    %c0_i32_1 = arith.constant 0 : i32
    return %c0_i32, %arg0, %c0_i32_0 : i32, i32, i32
  }
  func.func @transform_1(%arg0: i32) -> (i32, i32) {
    %c0_i32 = arith.constant 0 : i32
    %c0_i32_0 = arith.constant 0 : i32
    %c0_i32_1 = arith.constant 0 : i32
    return %c0_i32, %c0_i32_0 : i32, i32
  }
  func.func @transform_2(%arg0: i32) -> (i32, i32) {
    %c0_i32 = arith.constant 0 : i32
    %c0_i32_0 = arith.constant 0 : i32
    %c0_i32_1 = arith.constant 0 : i32
    return %c0_i32, %c0_i32_0 : i32, i32
  }
  func.func @transform_3(%arg0: i32) -> (i32, i32) {
    %c0_i32 = arith.constant 0 : i32
    %c0_i32_0 = arith.constant 0 : i32
    return %arg0, %c0_i32 : i32, i32
  }
}

module attributes {stable_mosaic.version = 11 : i64} {
  func.func @_fc_fused_kernel(%arg0: i32, %arg1: memref<16x2048xbf16, #tpu.memory_space<vmem>>, %arg2: memref<2048x512xbf16, #tpu.memory_space<vmem>>, %arg3: memref<1x512xf32, #tpu.memory_space<vmem>>, %arg4: memref<512x128xbf16, #tpu.memory_space<vmem>>, %arg5: memref<1x128xf32, #tpu.memory_space<vmem>>, %arg6: memref<16x128xf32, #tpu.memory_space<vmem>>) attributes {dimension_semantics = [#tpu.dimension_semantics<parallel>], iteration_bounds = array<i64: 1>, scalar_prefetch = 0 : i64, scratch_operands = 0 : i64, tpu.core_type = #tpu.core_type<tc>, window_params = [{transform_indices = @transform_0, window_bounds = array<i64: 16, 2048>}, {pipeline_mode = #tpu.pipeline_mode<synchronous>, transform_indices = @transform_1, window_bounds = array<i64: 2048, 512>}, {pipeline_mode = #tpu.pipeline_mode<synchronous>, transform_indices = @transform_2, window_bounds = array<i64: 1, 512>}, {pipeline_mode = #tpu.pipeline_mode<synchronous>, transform_indices = @transform_3, window_bounds = array<i64: 512, 128>}, {pipeline_mode = #tpu.pipeline_mode<synchronous>, transform_indices = @transform_4, window_bounds = array<i64: 1, 128>}, {transform_indices = @transform_5, window_bounds = array<i64: 16, 128>}]} {
    %c0 = arith.constant 0 : index
    %c0_0 = arith.constant 0 : index
    %0 = vector.load %arg1[%c0, %c0_0] : memref<16x2048xbf16, #tpu.memory_space<vmem>>, vector<16x2048xbf16>
    %c0_1 = arith.constant 0 : index
    %c0_2 = arith.constant 0 : index
    %1 = vector.load %arg2[%c0_1, %c0_2] : memref<2048x512xbf16, #tpu.memory_space<vmem>>, vector<2048x512xbf16>
    %cst = arith.constant dense<0.000000e+00> : vector<16x512xf32>
    %2 = tpu.matmul %0, %1, %cst {dimension_numbers = #tpu.dot_dimension_numbers<[1], [0], [0], [1], [0, 0, 1, 1], [], []>} : vector<16x2048xbf16>, vector<2048x512xbf16>, vector<16x512xf32> -> vector<16x512xf32>
    %c0_3 = arith.constant 0 : index
    %c0_4 = arith.constant 0 : index
    %3 = vector.load %arg3[%c0_3, %c0_4] : memref<1x512xf32, #tpu.memory_space<vmem>>, vector<1x512xf32>
    %4 = vector.broadcast %3 : vector<1x512xf32> to vector<16x512xf32>
    %5 = arith.addf %2, %4 : vector<16x512xf32>
    %cst_5 = arith.constant 0.000000e+00 : f32
    %6 = vector.broadcast %cst_5 : f32 to vector<16x512xf32>
    %7 = arith.maximumf %5, %6 : vector<16x512xf32>
    %8 = arith.truncf %7 : vector<16x512xf32> to vector<16x512xbf16>
    %c0_6 = arith.constant 0 : index
    %c0_7 = arith.constant 0 : index
    %9 = vector.load %arg4[%c0_6, %c0_7] : memref<512x128xbf16, #tpu.memory_space<vmem>>, vector<512x128xbf16>
    %cst_8 = arith.constant dense<0.000000e+00> : vector<16x128xf32>
    %10 = tpu.matmul %8, %9, %cst_8 {dimension_numbers = #tpu.dot_dimension_numbers<[1], [0], [0], [1], [0, 0, 1, 1], [], []>} : vector<16x512xbf16>, vector<512x128xbf16>, vector<16x128xf32> -> vector<16x128xf32>
    %c0_9 = arith.constant 0 : index
    %c0_10 = arith.constant 0 : index
    %11 = vector.load %arg5[%c0_9, %c0_10] : memref<1x128xf32, #tpu.memory_space<vmem>>, vector<1x128xf32>
    %12 = vector.broadcast %11 : vector<1x128xf32> to vector<16x128xf32>
    %13 = arith.addf %10, %12 : vector<16x128xf32>
    %cst_11 = arith.constant 0.000000e+00 : f32
    %14 = vector.broadcast %cst_11 : f32 to vector<16x128xf32>
    %15 = arith.maximumf %13, %14 : vector<16x128xf32>
    %c0_12 = arith.constant 0 : index
    %c0_13 = arith.constant 0 : index
    %16 = vector.load %arg6[%c0_12, %c0_13] : memref<16x128xf32, #tpu.memory_space<vmem>>, vector<16x128xf32>
    tpu.vector_store %arg6[%c0_12, %c0_13], %15 {strides = array<i32>} : memref<16x128xf32, #tpu.memory_space<vmem>>, vector<16x128xf32>,
    return
  }
  func.func @transform_0(%arg0: i32) -> (i32, i32) {
    %c0_i32 = arith.constant 0 : i32
    %c0_i32_0 = arith.constant 0 : i32
    return %arg0, %c0_i32 : i32, i32
  }
  func.func @transform_1(%arg0: i32) -> (i32, i32) {
    %c0_i32 = arith.constant 0 : i32
    %c0_i32_0 = arith.constant 0 : i32
    %c0_i32_1 = arith.constant 0 : i32
    return %c0_i32, %c0_i32_0 : i32, i32
  }
  func.func @transform_2(%arg0: i32) -> (i32, i32) {
    %c0_i32 = arith.constant 0 : i32
    %c0_i32_0 = arith.constant 0 : i32
    %c0_i32_1 = arith.constant 0 : i32
    return %c0_i32, %c0_i32_0 : i32, i32
  }
  func.func @transform_3(%arg0: i32) -> (i32, i32) {
    %c0_i32 = arith.constant 0 : i32
    %c0_i32_0 = arith.constant 0 : i32
    %c0_i32_1 = arith.constant 0 : i32
    return %c0_i32, %c0_i32_0 : i32, i32
  }
  func.func @transform_4(%arg0: i32) -> (i32, i32) {
    %c0_i32 = arith.constant 0 : i32
    %c0_i32_0 = arith.constant 0 : i32
    %c0_i32_1 = arith.constant 0 : i32
    return %c0_i32, %c0_i32_0 : i32, i32
  }
  func.func @transform_5(%arg0: i32) -> (i32, i32) {
    %c0_i32 = arith.constant 0 : i32
    %c0_i32_0 = arith.constant 0 : i32
    return %arg0, %c0_i32 : i32, i32
  }
}

</mosaic_0001>

<llo_original>
// kernel: lenet_forward.3
$region0: #{lenet_forward.3}
  #allocation0 [shape = 'u32[]', space=smem, size = 0x4, offset = 0x4, fixed_abs, tag = 'smem constant byte address 0x4 - core index']
  #allocation1 [shape = 'u32[144,128]{1,0:T(1,128)}', space=vmem, size = 0x12000, scoped, tag = 'internal scratch']
  %s0 = inlined_call_operand.vmem [shape: bf16[4,288,32], index: 0, kind: input, shape index: {}]
  %s1 = inlined_call_operand.vmem [shape: bf16[32,128], index: 1, kind: input, shape index: {}]
  %s2 = inlined_call_operand.vmem [shape: f32[1,128], index: 2, kind: input, shape index: {}]
  %s3 = inlined_call_operand.vmem [shape: bf16[288,128], index: 3, kind: output, shape index: {}]
  %s4 = sld [smem:[#allocation0]]
  $region86: #{lenet_forward.3} parent=0
    _
  %s6 = ssub.s32 1, %s4
  %s7 = scalar_select 0, %s6, %s4
  $region1: #{lenet_forward.3} parent=0
    #allocation2 [shape = 'u8[294912]{0}', space=vmem, size = 0x48000, scoped, tag = 'input window, operand 0']
    loop: start=0, step=1, limit=4
    $region2: #{lenet_forward.3} parent=1 // loop_pre_header
      _
    $region3: #{lenet_forward.3} parent=1 // loop_header
      %s9 = sphi 0, %s13
      %p10 = scmp.ge.s32.totalorder %s9, 4
      %s19 = sphi 0, %s21
      %s22 = sphi 0, %s19
      %s23 = sphi 0, %s22
      %s39 = sphi 0, %s23
      %s43 = sphi 0, %s43
      %s45 = sphi 0, %s43
      %s46 = sphi 0, %s45
      %s60 = sphi 0, %s46
      %s64 = sphi 0, %s64
      %s66 = sphi 0, %s64
      %s67 = sphi 0, %s66
      %s81 = sphi 0, %s67
      %s87 = sphi 0, %s89
      %s90 = sphi 0, %s87
      %s91 = sphi 0, %s90
      %s107 = sphi 0, %s91
    $region4: #{lenet_forward.3} parent=1 // loop_header_branch
      %12 = sbr.rel (%p10) target = $region8
    $region5: #{lenet_forward.3} parent=1 // loop_body
      %s14 = ssub.s32 %s9, 1
      %s15 = ssub.s32 %s9, 2
      %s16 = sadd.s32 %s9, 1
      %s17 = ssub.s32 %s9, %s16
      %p18 = scmp.eq.s32.totalorder %s17, 0
      %s20 = sadd.s32 %s19, 1
      %s21 = scalar_select %p18, %s19, %s20
      %p24 = pneg %p18
      %p25 = scmp.eq.s32.totalorder %s9, 1
      %p26 = por %p24, %p25
      %p27 = scmp.ne.s32.totalorder %s19, %s22
      %p28 = scmp.eq.s32.totalorder %s9, 0
      %p29 = por %p27, %p28
      %p30 = scmp.ne.s32.totalorder %s19, %s22
      %p31 = scmp.eq.s32.totalorder %s14, 1
      %p32 = por %p30, %p31
      %p33 = scmp.ne.s32.totalorder %s22, %s23
      %p34 = scmp.eq.s32.totalorder %s14, 0
      %p35 = por %p33, %p34
      %p36 = scmp.ne.s32.totalorder %s22, %s23
      %p37 = scmp.eq.s32.totalorder %s15, 1
      %p38 = por %p36, %p37
      %p40 = scmp.ne.s32.totalorder %s23, %s39
      %p41 = scmp.eq.s32.totalorder %s15, 0
      %p42 = por %p40, %p41
      %s44 = sadd.s32 %s43, 1
      %p47 = scmp.eq.s32.totalorder %s9, 1
      %p48 = scmp.ne.s32.totalorder %s43, %s45
      %p49 = scmp.eq.s32.totalorder %s9, 0
      %p50 = por %p48, %p49
      %p51 = scmp.ne.s32.totalorder %s43, %s45
      %p52 = scmp.eq.s32.totalorder %s14, 1
      %p53 = por %p51, %p52
      %p54 = scmp.ne.s32.totalorder %s45, %s46
      %p55 = scmp.eq.s32.totalorder %s14, 0
      %p56 = por %p54, %p55
      %p57 = scmp.ne.s32.totalorder %s45, %s46
      %p58 = scmp.eq.s32.totalorder %s15, 1
      %p59 = por %p57, %p58
      %p61 = scmp.ne.s32.totalorder %s46, %s60
      %p62 = scmp.eq.s32.totalorder %s15, 0
      %p63 = por %p61, %p62
      %s65 = sadd.s32 %s64, 1
      %p68 = scmp.eq.s32.totalorder %s9, 1
      %p69 = scmp.ne.s32.totalorder %s64, %s66
      %p70 = scmp.eq.s32.totalorder %s9, 0
      %p71 = por %p69, %p70
      %p72 = scmp.ne.s32.totalorder %s64, %s66
      %p73 = scmp.eq.s32.totalorder %s14, 1
      %p74 = por %p72, %p73
      %p75 = scmp.ne.s32.totalorder %s66, %s67
      %p76 = scmp.eq.s32.totalorder %s14, 0
      %p77 = por %p75, %p76
      %p78 = scmp.ne.s32.totalorder %s66, %s67
      %p79 = scmp.eq.s32.totalorder %s15, 1
      %p80 = por %p78, %p79
      %p82 = scmp.ne.s32.totalorder %s67, %s81
      %p83 = scmp.eq.s32.totalorder %s15, 0
      %p84 = por %p82, %p83
      %s85 = ssub.s32 %s9, %s16
      %p86 = scmp.eq.s32.totalorder %s85, 0
      %s88 = sadd.s32 %s87, 1
      %s89 = scalar_select %p86, %s87, %s88
      %p92 = pneg %p86
      %p93 = scmp.eq.s32.totalorder %s9, 1
      %p94 = por %p92, %p93
      %p95 = scmp.ne.s32.totalorder %s87, %s90
      %p96 = scmp.eq.s32.totalorder %s9, 0
      %p97 = por %p95, %p96
      %p98 = scmp.ne.s32.totalorder %s87, %s90
      %p99 = scmp.eq.s32.totalorder %s14, 1
      %p100 = por %p98, %p99
      %p101 = scmp.ne.s32.totalorder %s90, %s91
      %p102 = scmp.eq.s32.totalorder %s14, 0
      %p103 = por %p101, %p102
      %p104 = scmp.ne.s32.totalorder %s90, %s91
      %p105 = scmp.eq.s32.totalorder %s15, 1
      %p106 = por %p104, %p105
      %p108 = scmp.ne.s32.totalorder %s91, %s107
      %p109 = scmp.eq.s32.totalorder %s15, 0
      %p110 = por %p108, %p109
      %p111 = scmp.le.s32.totalorder 1, %s9
      %p112 = scmp.lt.s32.totalorder %s9, 3
      %p113 = pnand %p111, %p112
      %p114 = pneg %p113
      // Predicated region
      $region9: #{lenet_forward.3} parent=5 // pred_check
        _
      $region10: #{lenet_forward.3} parent=5 // pred_check_branch
        %116 = sbr.rel (%p113) target = $region12
      $region11: #{lenet_forward.3} parent=5 // pred_region
        %s117 = ssub.s32 %s9, 1
        // Predicated region
        $region13: #{lenet_forward.3} parent=11 // pred_check
          %p118 = pneg %p56
        $region14: #{lenet_forward.3} parent=11 // pred_check_branch
          %120 = sbr.rel (%p118) target = $region16
        $region15: #{lenet_forward.3} parent=11 // pred_region
          _
        $region16: #{lenet_forward.3} parent=11 // pred_fallthru
          _
        // Predicated region
        $region17: #{lenet_forward.3} parent=11 // pred_check
          %p121 = pneg %p77
        $region18: #{lenet_forward.3} parent=11 // pred_check_branch
          %123 = sbr.rel (%p121) target = $region20
        $region19: #{lenet_forward.3} parent=11 // pred_region
          _
        $region20: #{lenet_forward.3} parent=11 // pred_fallthru
          _
      $region12: #{lenet_forward.3} parent=5 // pred_fallthru
        _
      %p124 = scmp.lt.s32.totalorder %s9, 2
      // Predicated region
      $region21: #{lenet_forward.3} parent=5 // pred_check
        %p125 = pneg %p124
      $region22: #{lenet_forward.3} parent=5 // pred_check_branch
        %127 = sbr.rel (%p125) target = $region24
      $region23: #{lenet_forward.3} parent=5 // pred_region
        // Predicated region
        $region25: #{lenet_forward.3} parent=23 // pred_check
          %p128 = pneg %p29
        $region26: #{lenet_forward.3} parent=23 // pred_check_branch
          %130 = sbr.rel (%p128) target = $region28
        $region27: #{lenet_forward.3} parent=23 // pred_region
          %s131 = sand.u32 %s19, 1
          %s132 = sand.u32 %s19, 1
          %s133 = smul.addr %s132, 288
          %s134 = scalar_lea.vmem [#allocation2], %s133
          %s135 = smul.u32 18, %s9
          %s136 = smul.addr %s135, 4
          %s137 = scalar_lea.vmem %s0, %s136
          // Predicated region
          $region29: #{lenet_forward.3} parent=27 // pred_check
            _
          $region30: #{lenet_forward.3} parent=27 // pred_check_branch
            %139 = sbr.rel (0) target = $region32
          $region31: #{lenet_forward.3} parent=27 // pred_region
            // Predicated region
            $region33: #{lenet_forward.3} parent=31 // pred_check
              _
            $region34: #{lenet_forward.3} parent=31 // pred_check_branch
              %141 = sbr.rel target = $region36
            $region35: #{lenet_forward.3} parent=31 // pred_region
              // Predicated region
              $region48: #{lenet_forward.3} parent=35 // pred_check
                _
              $region49: #{lenet_forward.3} parent=35 // pred_check_branch
                %298 = sbr.rel (0) target = $region51
              $region50: #{lenet_forward.3} parent=35 // pred_region
                loop: start=0, step=1, limit=1
                $region52: #{lenet_forward.3} parent=50 // loop_pre_header
                  _
                $region53: #{lenet_forward.3} parent=50 // loop_header
                  %s300 = sphi 0, %s304
                  %p301 = scmp.ge.s32.totalorder %s300, 1
                  %s305 = sphi %s137, %s137
                  %s306 = sphi %s134, %s134
                $region54: #{lenet_forward.3} parent=50 // loop_header_branch
                  %303 = sbr.rel (%p301) target = $region58
                $region55: #{lenet_forward.3} parent=50 // loop_body
                  _
                $region56: #{lenet_forward.3} parent=50 // loop_footer
                  %s304 = sadd.s32 1, %s300
                $region57: #{lenet_forward.3} parent=50 // loop_footer_branch
                  %299 = sbr.rel target = $region53
                $region58: #{lenet_forward.3} parent=50 // loop_exit
                  _
                loop: start=0, step=1, limit=1
                $region59: #{lenet_forward.3} parent=50 // loop_pre_header
                  _
                $region60: #{lenet_forward.3} parent=50 // loop_header
                  %s309 = sphi 0, %s313
                  %p310 = scmp.ge.s32.totalorder %s309, 1
                  %s314 = sphi %s137, %s137
                  %s315 = sphi %s134, %s134
                $region61: #{lenet_forward.3} parent=50 // loop_header_branch
                  %312 = sbr.rel (%p310) target = $region65
                $region62: #{lenet_forward.3} parent=50 // loop_body
                  %v316 = vld [vmem:[%s314] sm:$0xf]
                  %317 = vst [vmem:[%s315] sm:$0xf] %v316
                  %v318 = vld [vmem:[%s314 + $0x4] sm:$0xf]
                  %319 = vst [vmem:[%s315 + $0x4] sm:$0xf] %v318
                  %v320 = vld [vmem:[%s314 + $0x8] sm:$0xf]
                  %321 = vst [vmem:[%s315 + $0x8] sm:$0xf] %v320
                  %v322 = vld [vmem:[%s314 + $0xc] sm:$0xf]
                  %323 = vst [vmem:[%s315 + $0xc] sm:$0xf] %v322
                  %v324 = vld [vmem:[%s314 + $0x10] sm:$0xf]
                  %325 = vst [vmem:[%s315 + $0x10] sm:$0xf] %v324
                  %v326 = vld [vmem:[%s314 + $0x14] sm:$0xf]
                  %327 = vst [vmem:[%s315 + $0x14] sm:$0xf] %v326
                  %v328 = vld [vmem:[%s314 + $0x18] sm:$0xf]
                  %329 = vst [vmem:[%s315 + $0x18] sm:$0xf] %v328
                  %v330 = vld [vmem:[%s314 + $0x1c] sm:$0xf]
                  %331 = vst [vmem:[%s315 + $0x1c] sm:$0xf] %v330
                  %v332 = vld [vmem:[%s314 + $0x20] sm:$0xf]
                  %333 = vst [vmem:[%s315 + $0x20] sm:$0xf] %v332
                  %v334 = vld [vmem:[%s314 + $0x24] sm:$0xf]
                  %335 = vst [vmem:[%s315 + $0x24] sm:$0xf] %v334
                  %v336 = vld [vmem:[%s314 + $0x28] sm:$0xf]
                  %337 = vst [vmem:[%s315 + $0x28] sm:$0xf] %v336
                  %v338 = vld [vmem:[%s314 + $0x2c] sm:$0xf]
                  %339 = vst [vmem:[%s315 + $0x2c] sm:$0xf] %v338
                  %v340 = vld [vmem:[%s314 + $0x30] sm:$0xf]
                  %341 = vst [vmem:[%s315 + $0x30] sm:$0xf] %v340
                  %v342 = vld [vmem:[%s314 + $0x34] sm:$0xf]
                  %343 = vst [vmem:[%s315 + $0x34] sm:$0xf] %v342
                  %v344 = vld [vmem:[%s314 + $0x38] sm:$0xf]
                  %345 = vst [vmem:[%s315 + $0x38] sm:$0xf] %v344
                  %v346 = vld [vmem:[%s314 + $0x3c] sm:$0xf]
                  %347 = vst [vmem:[%s315 + $0x3c] sm:$0xf] %v346
                  %v348 = vld [vmem:[%s314 + $0x40] sm:$0xf]
                  %349 = vst [vmem:[%s315 + $0x40] sm:$0xf] %v348
                  %v350 = vld [vmem:[%s314 + $0x44] sm:$0xf]
                  %351 = vst [vmem:[%s315 + $0x44] sm:$0xf] %v350
                  %v352 = vld [vmem:[%s314 + $0x90] sm:$0xf]
                  %353 = vst [vmem:[%s315 + $0x48] sm:$0xf] %v352
                  %v354 = vld [vmem:[%s314 + $0x94] sm:$0xf]
                  %355 = vst [vmem:[%s315 + $0x4c] sm:$0xf] %v354
                  %v356 = vld [vmem:[%s314 + $0x98] sm:$0xf]
                  %357 = vst [vmem:[%s315 + $0x50] sm:$0xf] %v356
                  %v358 = vld [vmem:[%s314 + $0x9c] sm:$0xf]
                  %359 = vst [vmem:[%s315 + $0x54] sm:$0xf] %v358
                  %v360 = vld [vmem:[%s314 + $0xa0] sm:$0xf]
                  %361 = vst [vmem:[%s315 + $0x58] sm:$0xf] %v360
                  %v362 = vld [vmem:[%s314 + $0xa4] sm:$0xf]
                  %363 = vst [vmem:[%s315 + $0x5c] sm:$0xf] %v362
                  %v364 = vld [vmem:[%s314 + $0xa8] sm:$0xf]
                  %365 = vst [vmem:[%s315 + $0x60] sm:$0xf] %v364
                  %v366 = vld [vmem:[%s314 + $0xac] sm:$0xf]
                  %367 = vst [vmem:[%s315 + $0x64] sm:$0xf] %v366
                  %v368 = vld [vmem:[%s314 + $0xb0] sm:$0xf]
                  %369 = vst [vmem:[%s315 + $0x68] sm:$0xf] %v368
                  %v370 = vld [vmem:[%s314 + $0xb4] sm:$0xf]
                  %371 = vst [vmem:[%s315 + $0x6c] sm:$0xf] %v370
                  %v372 = vld [vmem:[%s314 + $0xb8] sm:$0xf]
                  %373 = vst [vmem:[%s315 + $0x70] sm:$0xf] %v372
                  %v374 = vld [vmem:[%s314 + $0xbc] sm:$0xf]
                  %375 = vst [vmem:[%s315 + $0x74] sm:$0xf] %v374
                  %v376 = vld [vmem:[%s314 + $0xc0] sm:$0xf]
                  %377 = vst [vmem:[%s315 + $0x78] sm:$0xf] %v376
                  %v378 = vld [vmem:[%s314 + $0xc4] sm:$0xf]
                  %379 = vst [vmem:[%s315 + $0x7c] sm:$0xf] %v378
                  %v380 = vld [vmem:[%s314 + $0xc8] sm:$0xf]
                  %381 = vst [vmem:[%s315 + $0x80] sm:$0xf] %v380
                  %v382 = vld [vmem:[%s314 + $0xcc] sm:$0xf]
                  %383 = vst [vmem:[%s315 + $0x84] sm:$0xf] %v382
                  %v384 = vld [vmem:[%s314 + $0xd0] sm:$0xf]
                  %385 = vst [vmem:[%s315 + $0x88] sm:$0xf] %v384
                  %v386 = vld [vmem:[%s314 + $0xd4] sm:$0xf]
                  %387 = vst [vmem:[%s315 + $0x8c] sm:$0xf] %v386
                  %v388 = vld [vmem:[%s314 + $0x120] sm:$0xf]
                  %389 = vst [vmem:[%s315 + $0x90] sm:$0xf] %v388
                  %v390 = vld [vmem:[%s314 + $0x124] sm:$0xf]
                  %391 = vst [vmem:[%s315 + $0x94] sm:$0xf] %v390
                  %v392 = vld [vmem:[%s314 + $0x128] sm:$0xf]
                  %393 = vst [vmem:[%s315 + $0x98] sm:$0xf] %v392
                  %v394 = vld [vmem:[%s314 + $0x12c] sm:$0xf]
                  %395 = vst [vmem:[%s315 + $0x9c] sm:$0xf] %v394
                  %v396 = vld [vmem:[%s314 + $0x130] sm:$0xf]
                  %397 = vst [vmem:[%s315 + $0xa0] sm:$0xf] %v396
                  %v398 = vld [vmem:[%s314 + $0x134] sm:$0xf]
                  %399 = vst [vmem:[%s315 + $0xa4] sm:$0xf] %v398
                  %v400 = vld [vmem:[%s314 + $0x138] sm:$0xf]
                  %401 = vst [vmem:[%s315 + $0xa8] sm:$0xf] %v400
                  %v402 = vld [vmem:[%s314 + $0x13c] sm:$0xf]
                  %403 = vst [vmem:[%s315 + $0xac] sm:$0xf] %v402
                  %v404 = vld [vmem:[%s314 + $0x140] sm:$0xf]
                  %405 = vst [vmem:[%s315 + $0xb0] sm:$0xf] %v404
                  %v406 = vld [vmem:[%s314 + $0x144] sm:$0xf]
                  %407 = vst [vmem:[%s315 + $0xb4] sm:$0xf] %v406
                  %v408 = vld [vmem:[%s314 + $0x148] sm:$0xf]
                  %409 = vst [vmem:[%s315 + $0xb8] sm:$0xf] %v408
                  %v410 = vld [vmem:[%s314 + $0x14c] sm:$0xf]
                  %411 = vst [vmem:[%s315 + $0xbc] sm:$0xf] %v410
                  %v412 = vld [vmem:[%s314 + $0x150] sm:$0xf]
                  %413 = vst [vmem:[%s315 + $0xc0] sm:$0xf] %v412
                  %v414 = vld [vmem:[%s314 + $0x154] sm:$0xf]
                  %415 = vst [vmem:[%s315 + $0xc4] sm:$0xf] %v414
                  %v416 = vld [vmem:[%s314 + $0x158] sm:$0xf]
                  %417 = vst [vmem:[%s315 + $0xc8] sm:$0xf] %v416
                  %v418 = vld [vmem:[%s314 + $0x15c] sm:$0xf]
                  %419 = vst [vmem:[%s315 + $0xcc] sm:$0xf] %v418
                  %v420 = vld [vmem:[%s314 + $0x160] sm:$0xf]
                  %421 = vst [vmem:[%s315 + $0xd0] sm:$0xf] %v420
                  %v422 = vld [vmem:[%s314 + $0x164] sm:$0xf]
                  %423 = vst [vmem:[%s315 + $0xd4] sm:$0xf] %v422
                  %v424 = vld [vmem:[%s314 + $0x1b0] sm:$0xf]
                  %425 = vst [vmem:[%s315 + $0xd8] sm:$0xf] %v424
                  %v426 = vld [vmem:[%s314 + $0x1b4] sm:$0xf]
                  %427 = vst [vmem:[%s315 + $0xdc] sm:$0xf] %v426
                  %v428 = vld [vmem:[%s314 + $0x1b8] sm:$0xf]
                  %429 = vst [vmem:[%s315 + $0xe0] sm:$0xf] %v428
                  %v430 = vld [vmem:[%s314 + $0x1bc] sm:$0xf]
                  %431 = vst [vmem:[%s315 + $0xe4] sm:$0xf] %v430
                  %v432 = vld [vmem:[%s314 + $0x1c0] sm:$0xf]
                  %433 = vst [vmem:[%s315 + $0xe8] sm:$0xf] %v432
                  %v434 = vld [vmem:[%s314 + $0x1c4] sm:$0xf]
                  %435 = vst [vmem:[%s315 + $0xec] sm:$0xf] %v434
                  %v436 = vld [vmem:[%s314 + $0x1c8] sm:$0xf]
                  %437 = vst [vmem:[%s315 + $0xf0] sm:$0xf] %v436
                  %v438 = vld [vmem:[%s314 + $0x1cc] sm:$0xf]
                  %439 = vst [vmem:[%s315 + $0xf4] sm:$0xf] %v438
                  %v440 = vld [vmem:[%s314 + $0x1d0] sm:$0xf]
                  %441 = vst [vmem:[%s315 + $0xf8] sm:$0xf] %v440
                  %v442 = vld [vmem:[%s314 + $0x1d4] sm:$0xf]
                  %443 = vst [vmem:[%s315 + $0xfc] sm:$0xf] %v442
                  %v444 = vld [vmem:[%s314 + $0x1d8] sm:$0xf]
                  %445 = vst [vmem:[%s315 + $0x100] sm:$0xf] %v444
                  %v446 = vld [vmem:[%s314 + $0x1dc] sm:$0xf]
                  %447 = vst [vmem:[%s315 + $0x104] sm:$0xf] %v446
                  %v448 = vld [vmem:[%s314 + $0x1e0] sm:$0xf]
                  %449 = vst [vmem:[%s315 + $0x108] sm:$0xf] %v448
                  %v450 = vld [vmem:[%s314 + $0x1e4] sm:$0xf]
                  %451 = vst [vmem:[%s315 + $0x10c] sm:$0xf] %v450
                  %v452 = vld [vmem:[%s314 + $0x1e8] sm:$0xf]
                  %453 = vst [vmem:[%s315 + $0x110] sm:$0xf] %v452
                  %v454 = vld [vmem:[%s314 + $0x1ec] sm:$0xf]
                  %455 = vst [vmem:[%s315 + $0x114] sm:$0xf] %v454
                  %v456 = vld [vmem:[%s314 + $0x1f0] sm:$0xf]
                  %457 = vst [vmem:[%s315 + $0x118] sm:$0xf] %v456
                  %v458 = vld [vmem:[%s314 + $0x1f4] sm:$0xf]
                  %459 = vst [vmem:[%s315 + $0x11c] sm:$0xf] %v458
                $region63: #{lenet_forward.3} parent=50 // loop_footer
                  %s313 = sadd.s32 1, %s309
                $region64: #{lenet_forward.3} parent=50 // loop_footer_branch
                  %308 = sbr.rel target = $region60
                $region65: #{lenet_forward.3} parent=50 // loop_exit
                  _
              $region51: #{lenet_forward.3} parent=35 // pred_fallthru
                _
            $region36: #{lenet_forward.3} parent=31 // pred_fallthru
              _
            // Predicated region
            $region37: #{lenet_forward.3} parent=31 // pred_check
              _
            $region38: #{lenet_forward.3} parent=31 // pred_check_branch
              %143 = sbr.rel (0) target = $region40
            $region39: #{lenet_forward.3} parent=31 // pred_region
              loop: start=0, step=1, limit=1
              $region41: #{lenet_forward.3} parent=39 // loop_pre_header
                _
              $region42: #{lenet_forward.3} parent=39 // loop_header
                %s146 = sphi 0, %s150
                %p147 = scmp.ge.s32.totalorder %s146, 1
                %s151 = sphi %s137, %s137
                %s152 = sphi %s134, %s134
              $region43: #{lenet_forward.3} parent=39 // loop_header_branch
                %149 = sbr.rel (%p147) target = $region47
              $region44: #{lenet_forward.3} parent=39 // loop_body
                %v153 = vld [vmem:[%s151] sm:$0xf]
                %154 = vst [vmem:[%s152] sm:$0xf] %v153
                %v155 = vld [vmem:[%s151 + $0x4] sm:$0xf]
                %156 = vst [vmem:[%s152 + $0x4] sm:$0xf] %v155
                %v157 = vld [vmem:[%s151 + $0x8] sm:$0xf]
                %158 = vst [vmem:[%s152 + $0x8] sm:$0xf] %v157
                %v159 = vld [vmem:[%s151 + $0xc] sm:$0xf]
                %160 = vst [vmem:[%s152 + $0xc] sm:$0xf] %v159
                %v161 = vld [vmem:[%s151 + $0x10] sm:$0xf]
                %162 = vst [vmem:[%s152 + $0x10] sm:$0xf] %v161
                %v163 = vld [vmem:[%s151 + $0x14] sm:$0xf]
                %164 = vst [vmem:[%s152 + $0x14] sm:$0xf] %v163
                %v165 = vld [vmem:[%s151 + $0x18] sm:$0xf]
                %166 = vst [vmem:[%s152 + $0x18] sm:$0xf] %v165
                %v167 = vld [vmem:[%s151 + $0x1c] sm:$0xf]
                %168 = vst [vmem:[%s152 + $0x1c] sm:$0xf] %v167
                %v169 = vld [vmem:[%s151 + $0x20] sm:$0xf]
                %170 = vst [vmem:[%s152 + $0x20] sm:$0xf] %v169
                %v171 = vld [vmem:[%s151 + $0x24] sm:$0xf]
                %172 = vst [vmem:[%s152 + $0x24] sm:$0xf] %v171
                %v173 = vld [vmem:[%s151 + $0x28] sm:$0xf]
                %174 = vst [vmem:[%s152 + $0x28] sm:$0xf] %v173
                %v175 = vld [vmem:[%s151 + $0x2c] sm:$0xf]
                %176 = vst [vmem:[%s152 + $0x2c] sm:$0xf] %v175
                %v177 = vld [vmem:[%s151 + $0x30] sm:$0xf]
                %178 = vst [vmem:[%s152 + $0x30] sm:$0xf] %v177
                %v179 = vld [vmem:[%s151 + $0x34] sm:$0xf]
                %180 = vst [vmem:[%s152 + $0x34] sm:$0xf] %v179
                %v181 = vld [vmem:[%s151 + $0x38] sm:$0xf]
                %182 = vst [vmem:[%s152 + $0x38] sm:$0xf] %v181
                %v183 = vld [vmem:[%s151 + $0x3c] sm:$0xf]
                %184 = vst [vmem:[%s152 + $0x3c] sm:$0xf] %v183
                %v185 = vld [vmem:[%s151 + $0x40] sm:$0xf]
                %186 = vst [vmem:[%s152 + $0x40] sm:$0xf] %v185
                %v187 = vld [vmem:[%s151 + $0x44] sm:$0xf]
                %188 = vst [vmem:[%s152 + $0x44] sm:$0xf] %v187
                %v189 = vld [vmem:[%s151 + $0x90] sm:$0xf]
                %190 = vst [vmem:[%s152 + $0x48] sm:$0xf] %v189
                %v191 = vld [vmem:[%s151 + $0x94] sm:$0xf]
                %192 = vst [vmem:[%s152 + $0x4c] sm:$0xf] %v191
                %v193 = vld [vmem:[%s151 + $0x98] sm:$0xf]
                %194 = vst [vmem:[%s152 + $0x50] sm:$0xf] %v193
                %v195 = vld [vmem:[%s151 + $0x9c] sm:$0xf]
                %196 = vst [vmem:[%s152 + $0x54] sm:$0xf] %v195
                %v197 = vld [vmem:[%s151 + $0xa0] sm:$0xf]
                %198 = vst [vmem:[%s152 + $0x58] sm:$0xf] %v197
                %v199 = vld [vmem:[%s151 + $0xa4] sm:$0xf]
                %200 = vst [vmem:[%s152 + $0x5c] sm:$0xf] %v199
                %v201 = vld [vmem:[%s151 + $0xa8] sm:$0xf]
                %202 = vst [vmem:[%s152 + $0x60] sm:$0xf] %v201
                %v203 = vld [vmem:[%s151 + $0xac] sm:$0xf]
                %204 = vst [vmem:[%s152 + $0x64] sm:$0xf] %v203
                %v205 = vld [vmem:[%s151 + $0xb0] sm:$0xf]
                %206 = vst [vmem:[%s152 + $0x68] sm:$0xf] %v205
                %v207 = vld [vmem:[%s151 + $0xb4] sm:$0xf]
                %208 = vst [vmem:[%s152 + $0x6c] sm:$0xf] %v207
                %v209 = vld [vmem:[%s151 + $0xb8] sm:$0xf]
                %210 = vst [vmem:[%s152 + $0x70] sm:$0xf] %v209
                %v211 = vld [vmem:[%s151 + $0xbc] sm:$0xf]
                %212 = vst [vmem:[%s152 + $0x74] sm:$0xf] %v211
                %v213 = vld [vmem:[%s151 + $0xc0] sm:$0xf]
                %214 = vst [vmem:[%s152 + $0x78] sm:$0xf] %v213
                %v215 = vld [vmem:[%s151 + $0xc4] sm:$0xf]
                %216 = vst [vmem:[%s152 + $0x7c] sm:$0xf] %v215
                %v217 = vld [vmem:[%s151 + $0xc8] sm:$0xf]
                %218 = vst [vmem:[%s152 + $0x80] sm:$0xf] %v217
                %v219 = vld [vmem:[%s151 + $0xcc] sm:$0xf]
                %220 = vst [vmem:[%s152 + $0x84] sm:$0xf] %v219
                %v221 = vld [vmem:[%s151 + $0xd0] sm:$0xf]
                %222 = vst [vmem:[%s152 + $0x88] sm:$0xf] %v221
                %v223 = vld [vmem:[%s151 + $0xd4] sm:$0xf]
                %224 = vst [vmem:[%s152 + $0x8c] sm:$0xf] %v223
                %v225 = vld [vmem:[%s151 + $0x120] sm:$0xf]
                %226 = vst [vmem:[%s152 + $0x90] sm:$0xf] %v225
                %v227 = vld [vmem:[%s151 + $0x124] sm:$0xf]
                %228 = vst [vmem:[%s152 + $0x94] sm:$0xf] %v227
                %v229 = vld [vmem:[%s151 + $0x128] sm:$0xf]
                %230 = vst [vmem:[%s152 + $0x98] sm:$0xf] %v229
                %v231 = vld [vmem:[%s151 + $0x12c] sm:$0xf]
                %232 = vst [vmem:[%s152 + $0x9c] sm:$0xf] %v231
                %v233 = vld [vmem:[%s151 + $0x130] sm:$0xf]
                %234 = vst [vmem:[%s152 + $0xa0] sm:$0xf] %v233
                %v235 = vld [vmem:[%s151 + $0x134] sm:$0xf]
                %236 = vst [vmem:[%s152 + $0xa4] sm:$0xf] %v235
                %v237 = vld [vmem:[%s151 + $0x138] sm:$0xf]
                %238 = vst [vmem:[%s152 + $0xa8] sm:$0xf] %v237
                %v239 = vld [vmem:[%s151 + $0x13c] sm:$0xf]
                %240 = vst [vmem:[%s152 + $0xac] sm:$0xf] %v239
                %v241 = vld [vmem:[%s151 + $0x140] sm:$0xf]
                %242 = vst [vmem:[%s152 + $0xb0] sm:$0xf] %v241
                %v243 = vld [vmem:[%s151 + $0x144] sm:$0xf]
                %244 = vst [vmem:[%s152 + $0xb4] sm:$0xf] %v243
                %v245 = vld [vmem:[%s151 + $0x148] sm:$0xf]
                %246 = vst [vmem:[%s152 + $0xb8] sm:$0xf] %v245
                %v247 = vld [vmem:[%s151 + $0x14c] sm:$0xf]
                %248 = vst [vmem:[%s152 + $0xbc] sm:$0xf] %v247
                %v249 = vld [vmem:[%s151 + $0x150] sm:$0xf]
                %250 = vst [vmem:[%s152 + $0xc0] sm:$0xf] %v249
                %v251 = vld [vmem:[%s151 + $0x154] sm:$0xf]
                %252 = vst [vmem:[%s152 + $0xc4] sm:$0xf] %v251
                %v253 = vld [vmem:[%s151 + $0x158] sm:$0xf]
                %254 = vst [vmem:[%s152 + $0xc8] sm:$0xf] %v253
                %v255 = vld [vmem:[%s151 + $0x15c] sm:$0xf]
                %256 = vst [vmem:[%s152 + $0xcc] sm:$0xf] %v255
                %v257 = vld [vmem:[%s151 + $0x160] sm:$0xf]
                %258 = vst [vmem:[%s152 + $0xd0] sm:$0xf] %v257
                %v259 = vld [vmem:[%s151 + $0x164] sm:$0xf]
                %260 = vst [vmem:[%s152 + $0xd4] sm:$0xf] %v259
                %v261 = vld [vmem:[%s151 + $0x1b0] sm:$0xf]
                %262 = vst [vmem:[%s152 + $0xd8] sm:$0xf] %v261
                %v263 = vld [vmem:[%s151 + $0x1b4] sm:$0xf]
                %264 = vst [vmem:[%s152 + $0xdc] sm:$0xf] %v263
                %v265 = vld [vmem:[%s151 + $0x1b8] sm:$0xf]
                %266 = vst [vmem:[%s152 + $0xe0] sm:$0xf] %v265
                %v267 = vld [vmem:[%s151 + $0x1bc] sm:$0xf]
                %268 = vst [vmem:[%s152 + $0xe4] sm:$0xf] %v267
                %v269 = vld [vmem:[%s151 + $0x1c0] sm:$0xf]
                %270 = vst [vmem:[%s152 + $0xe8] sm:$0xf] %v269
                %v271 = vld [vmem:[%s151 + $0x1c4] sm:$0xf]
                %272 = vst [vmem:[%s152 + $0xec] sm:$0xf] %v271
                %v273 = vld [vmem:[%s151 + $0x1c8] sm:$0xf]
                %274 = vst [vmem:[%s152 + $0xf0] sm:$0xf] %v273
                %v275 = vld [vmem:[%s151 + $0x1cc] sm:$0xf]
                %276 = vst [vmem:[%s152 + $0xf4] sm:$0xf] %v275
                %v277 = vld [vmem:[%s151 + $0x1d0] sm:$0xf]
                %278 = vst [vmem:[%s152 + $0xf8] sm:$0xf] %v277
                %v279 = vld [vmem:[%s151 + $0x1d4] sm:$0xf]
                %280 = vst [vmem:[%s152 + $0xfc] sm:$0xf] %v279
                %v281 = vld [vmem:[%s151 + $0x1d8] sm:$0xf]
                %282 = vst [vmem:[%s152 + $0x100] sm:$0xf] %v281
                %v283 = vld [vmem:[%s151 + $0x1dc] sm:$0xf]
                %284 = vst [vmem:[%s152 + $0x104] sm:$0xf] %v283
                %v285 = vld [vmem:[%s151 + $0x1e0] sm:$0xf]
                %286 = vst [vmem:[%s152 + $0x108] sm:$0xf] %v285
                %v287 = vld [vmem:[%s151 + $0x1e4] sm:$0xf]
                %288 = vst [vmem:[%s152 + $0x10c] sm:$0xf] %v287
                %v289 = vld [vmem:[%s151 + $0x1e8] sm:$0xf]
                %290 = vst [vmem:[%s152 + $0x110] sm:$0xf] %v289
                %v291 = vld [vmem:[%s151 + $0x1ec] sm:$0xf]
                %292 = vst [vmem:[%s152 + $0x114] sm:$0xf] %v291
                %v293 = vld [vmem:[%s151 + $0x1f0] sm:$0xf]
                %294 = vst [vmem:[%s152 + $0x118] sm:$0xf] %v293
                %v295 = vld [vmem:[%s151 + $0x1f4] sm:$0xf]
                %296 = vst [vmem:[%s152 + $0x11c] sm:$0xf] %v295
              $region45: #{lenet_forward.3} parent=39 // loop_footer
                %s150 = sadd.s32 1, %s146
              $region46: #{lenet_forward.3} parent=39 // loop_footer_branch
                %145 = sbr.rel target = $region42
              $region47: #{lenet_forward.3} parent=39 // loop_exit
                _
            $region40: #{lenet_forward.3} parent=31 // pred_fallthru
              _
          $region32: #{lenet_forward.3} parent=27 // pred_fallthru
            _
          %460 = vnop
        $region28: #{lenet_forward.3} parent=23 // pred_fallthru
          _
      $region24: #{lenet_forward.3} parent=5 // pred_fallthru
        _
      %p461 = scmp.le.s32.totalorder 1, %s9
      %p462 = scmp.lt.s32.totalorder %s9, 3
      %p463 = pnand %p461, %p462
      %p464 = pneg %p463
      // Predicated region
      $region66: #{lenet_forward.3} parent=5 // pred_check
        _
      $region67: #{lenet_forward.3} parent=5 // pred_check_branch
        %466 = sbr.rel (%p463) target = $region69
      $region68: #{lenet_forward.3} parent=5 // pred_region
        %s467 = ssub.s32 %s9, 1
        %s468 = sand.u32 %s22, 1
        %s469 = sand.u32 %s22, 1
        %s470 = smul.addr %s469, 288
        %s471 = scalar_lea.vmem [#allocation2], %s470
        // Predicated region
        $region70: #{lenet_forward.3} parent=68 // pred_check
          %p472 = pneg %p35
        $region71: #{lenet_forward.3} parent=68 // pred_check_branch
          %474 = sbr.rel (%p472) target = $region73
        $region72: #{lenet_forward.3} parent=68 // pred_region
          _
        $region73: #{lenet_forward.3} parent=68 // pred_fallthru
          _
        %s475 = sand.u32 %s22, 1
        %s476 = sand.u32 %s22, 1
        %s477 = smul.addr %s476, 288
        %s478 = scalar_lea.vmem [#allocation2], %s477
        %p479 = pneg %p35
        %p480 = pneg %p32
        %p481 = pneg %p56
        %p482 = pneg %p53
        %p483 = pneg %p77
        %p484 = pneg %p74
        %p485 = pneg %p103
        %p486 = pneg %p100
        %s487 = smul.u32 18, %s14
        %p488 = scmp.lt.s32.totalorder %s487, 35
        %s489 = scalar_select %p488, %s487, 35
        %s490 = smul.addr %s489, 4
        %s491 = scalar_lea.vmem %s3, %s490
        %s492 = smul.u32 18, %s14
        %s493 = smul.u32 18, %s14
        %p494 = scmp.lt.s32.totalorder %s493, 35
        %s495 = scalar_select %p494, %s493, 35
        %s496 = smul.addr %s495, 4
        %s497 = scalar_lea.vmem %s3, %s496
        %s498 = smul.u32 18, %s14
        %v500 = vld [vmem:[%s1] sm:$0xf]
        %v501 = vld [vmem:[%s1 + $0x4] sm:$0xf]
        %v502 = vld [vmem:[%s1 + $0x8] sm:$0xf]
        %v503 = vld [vmem:[%s1 + $0xc] sm:$0xf]
        %v504 = vld [vmem:[%s471] sm:$0xf]
        %v505 = vld [vmem:[%s471 + $0x4] sm:$0xf]
        %v506 = vld [vmem:[%s471 + $0x8] sm:$0xf]
        %v507 = vld [vmem:[%s471 + $0xc] sm:$0xf]
        %v508 = vld [vmem:[%s471 + $0x10] sm:$0xf]
        %v509 = vld [vmem:[%s471 + $0x14] sm:$0xf]
        %v510 = vld [vmem:[%s471 + $0x18] sm:$0xf]
        %v511 = vld [vmem:[%s471 + $0x1c] sm:$0xf]
        %v512 = vld [vmem:[%s471 + $0x20] sm:$0xf]
        %v513 = vld [vmem:[%s471 + $0x24] sm:$0xf]
        %v514 = vld [vmem:[%s471 + $0x28] sm:$0xf]
        %v515 = vld [vmem:[%s471 + $0x2c] sm:$0xf]
        %v516 = vld [vmem:[%s471 + $0x30] sm:$0xf]
        %v517 = vld [vmem:[%s471 + $0x34] sm:$0xf]
        %v518 = vld [vmem:[%s471 + $0x38] sm:$0xf]
        %v519 = vld [vmem:[%s471 + $0x3c] sm:$0xf]
        %v520 = vld [vmem:[%s471 + $0x40] sm:$0xf]
        %v521 = vld [vmem:[%s471 + $0x44] sm:$0xf]
        %v540 = vunpack.c.l.b16 %v504
        %v541 = vunpack.c.l.b16 %v505
        %v542 = vunpack.c.l.b16 %v506
        %v543 = vunpack.c.l.b16 %v507
        %v544 = vunpack.c.l.b16 %v508
        %v545 = vunpack.c.l.b16 %v509
        %v546 = vunpack.c.l.b16 %v510
        %v547 = vunpack.c.l.b16 %v511
        %v548 = vunpack.c.l.b16 %v512
        %v549 = vunpack.c.l.b16 %v513
        %v550 = vunpack.c.l.b16 %v514
        %v551 = vunpack.c.l.b16 %v515
        %v552 = vunpack.c.l.b16 %v516
        %v553 = vunpack.c.l.b16 %v517
        %v554 = vunpack.c.l.b16 %v518
        %v555 = vunpack.c.l.b16 %v519
        %v556 = vunpack.c.l.b16 %v520
        %v557 = vunpack.c.l.b16 %v521
        %v558 = vpack.c.b16 %v541, %v540
        %v559 = vpack.c.b16 %v543, %v542
        %v560 = vpack.c.b16 %v545, %v544
        %v561 = vpack.c.b16 %v547, %v546
        %v562 = vpack.c.b16 %v549, %v548
        %v563 = vpack.c.b16 %v551, %v550
        %v564 = vpack.c.b16 %v553, %v552
        %v565 = vpack.c.b16 %v555, %v554
        %v566 = vpack.c.b16 %v557, %v556
        %v571 = vunpack.c.l.b16 %v500
        %v572 = vunpack.c.l.b16 %v501
        %v573 = vunpack.c.l.b16 %v502
        %v574 = vunpack.c.l.b16 %v503
        %v575 = vpack.c.b16 %v572, %v571
        %v576 = vpack.c.b16 %v574, %v573
        %vm579 = vcmask 261120
        %v581 = vsel %vm579, %v558, 0
        %v584 = vsel %vm579, %v559, 0
        %v587 = vsel %vm579, %v560, 0
        %v590 = vsel %vm579, %v561, 0
        %v593 = vsel %vm579, %v562, 0
        %v596 = vsel %vm579, %v563, 0
        %v599 = vsel %vm579, %v564, 0
        %v602 = vsel %vm579, %v565, 0
        %v605 = vsel %vm579, %v566, 0
        %607 = vmatprep.subr.bf16.mxu0 0
        %608 = vmatpush1.bf16.msra.mxu0 %v575
        %609 = vmatprep.subr.bf16.mxu0 0
        %610 = vmatpush1.bf16.msra.mxu0 %v576
        %611 = vmatprep.subr.bf16.mxu0 0
        %612 = vmatpush1.bf16.msra.mxu0 0
        %613 = vmatprep.subr.bf16.mxu0 0
        %614 = vmatpush1.bf16.msra.mxu0 0
        %615 = vmatprep.subr.bf16.mxu0 0
        %616 = vmatpush1.bf16.msra.mxu0 0
        %617 = vmatprep.subr.bf16.mxu0 0
        %618 = vmatpush1.bf16.msra.mxu0 0
        %619 = vmatprep.subr.bf16.mxu0 0
        %620 = vmatpush1.bf16.msra.mxu0 0
        %621 = vmatprep.subr.bf16.mxu0 0
        %622 = vmatpush1.bf16.msra.mxu0 0
        %623 = vmatprep.subr.bf16.mxu0 0
        %624 = vmatpush1.bf16.msra.mxu0 0
        %625 = vmatprep.subr.bf16.mxu0 0
        %626 = vmatpush1.bf16.msra.mxu0 0
        %627 = vmatprep.subr.bf16.mxu0 0
        %628 = vmatpush1.bf16.msra.mxu0 0
        %629 = vmatprep.subr.bf16.mxu0 0
        %630 = vmatpush1.bf16.msra.mxu0 0
        %631 = vmatprep.subr.bf16.mxu0 0
        %632 = vmatpush1.bf16.msra.mxu0 0
        %633 = vmatprep.subr.bf16.mxu0 0
        %634 = vmatpush1.bf16.msra.mxu0 0
        %635 = vmatprep.subr.bf16.mxu0 0
        %636 = vmatpush1.bf16.msra.mxu0 0
        %637 = vmatprep.subr.bf16.mxu0 0
        %638 = vmatpush1.bf16.msra.mxu0 0
        %639 = vmatprep.mubr.bf16.mxu0 0
        %640 = vmatmul.mubr.bf16.gmra.mrb[0].mxu0 %v581
        %v641 = vpop.f32.mrb[0].mxu0
        %v642 = vadd.f32 0.0, %v641
        %v643 = vpop.f32.mrb[0].mxu0
        %v644 = vpop.f32.mrb[0].mxu0
        %v645 = vadd.f32 0.0, %v644
        %v646 = vpop.f32.mrb[0].mxu0
        %647 = vmatprep.mubr.bf16.mxu0 0
        %648 = vmatmul.mubr.bf16.gmra.mrb[0].mxu0 %v584
        %v649 = vpop.f32.mrb[0].mxu0
        %v650 = vadd.f32 0.0, %v649
        %v651 = vpop.f32.mrb[0].mxu0
        %v652 = vpop.f32.mrb[0].mxu0
        %v653 = vadd.f32 0.0, %v652
        %v654 = vpop.f32.mrb[0].mxu0
        %655 = vmatprep.mubr.bf16.mxu0 0
        %656 = vmatmul.mubr.bf16.gmra.mrb[0].mxu0 %v587
        %v657 = vpop.f32.mrb[0].mxu0
        %v658 = vadd.f32 0.0, %v657
        %v659 = vpop.f32.mrb[0].mxu0
        %v660 = vpop.f32.mrb[0].mxu0
        %v661 = vadd.f32 0.0, %v660
        %v662 = vpop.f32.mrb[0].mxu0
        %663 = vmatprep.mubr.bf16.mxu0 0
        %664 = vmatmul.mubr.bf16.gmra.mrb[0].mxu0 %v590
        %v665 = vpop.f32.mrb[0].mxu0
        %v666 = vadd.f32 0.0, %v665
        %v667 = vpop.f32.mrb[0].mxu0
        %v668 = vpop.f32.mrb[0].mxu0
        %v669 = vadd.f32 0.0, %v668
        %v670 = vpop.f32.mrb[0].mxu0
        %671 = vmatprep.mubr.bf16.mxu0 0
        %672 = vmatmul.mubr.bf16.gmra.mrb[0].mxu0 %v593
        %v673 = vpop.f32.mrb[0].mxu0
        %v674 = vadd.f32 0.0, %v673
        %v675 = vpop.f32.mrb[0].mxu0
        %v676 = vpop.f32.mrb[0].mxu0
        %v677 = vadd.f32 0.0, %v676
        %v678 = vpop.f32.mrb[0].mxu0
        %679 = vmatprep.mubr.bf16.mxu0 0
        %680 = vmatmul.mubr.bf16.gmra.mrb[0].mxu0 %v596
        %v681 = vpop.f32.mrb[0].mxu0
        %v682 = vadd.f32 0.0, %v681
        %v683 = vpop.f32.mrb[0].mxu0
        %v684 = vpop.f32.mrb[0].mxu0
        %v685 = vadd.f32 0.0, %v684
        %v686 = vpop.f32.mrb[0].mxu0
        %687 = vmatprep.mubr.bf16.mxu0 0
        %688 = vmatmul.mubr.bf16.gmra.mrb[0].mxu0 %v599
        %v689 = vpop.f32.mrb[0].mxu0
        %v690 = vadd.f32 0.0, %v689
        %v691 = vpop.f32.mrb[0].mxu0
        %v692 = vpop.f32.mrb[0].mxu0
        %v693 = vadd.f32 0.0, %v692
        %v694 = vpop.f32.mrb[0].mxu0
        %695 = vmatprep.mubr.bf16.mxu0 0
        %696 = vmatmul.mubr.bf16.gmra.mrb[0].mxu0 %v602
        %v697 = vpop.f32.mrb[0].mxu0
        %v698 = vadd.f32 0.0, %v697
        %v699 = vpop.f32.mrb[0].mxu0
        %v700 = vpop.f32.mrb[0].mxu0
        %v701 = vadd.f32 0.0, %v700
        %v702 = vpop.f32.mrb[0].mxu0
        %703 = vmatprep.mubr.bf16.mxu0 0
        %704 = vmatmul.mubr.bf16.gmra.mrb[0].mxu0 %v605
        %v705 = vpop.f32.mrb[0].mxu0
        %v706 = vadd.f32 0.0, %v705
        %v707 = vpop.f32.mrb[0].mxu0
        %v708 = vpop.f32.mrb[0].mxu0
        %v709 = vadd.f32 0.0, %v708
        %v710 = vpop.f32.mrb[0].mxu0
        %711 = vdwg.mxu0
        %s712 = scalar_lea.vmem %s471, 72 [#allocation2]
        %v713 = vld [vmem:[%s712] sm:$0xf]
        %v714 = vld [vmem:[%s712 + $0x4] sm:$0xf]
        %v715 = vld [vmem:[%s712 + $0x8] sm:$0xf]
        %v716 = vld [vmem:[%s712 + $0xc] sm:$0xf]
        %v717 = vld [vmem:[%s712 + $0x10] sm:$0xf]
        %v718 = vld [vmem:[%s712 + $0x14] sm:$0xf]
        %v719 = vld [vmem:[%s712 + $0x18] sm:$0xf]
        %v720 = vld [vmem:[%s712 + $0x1c] sm:$0xf]
        %v721 = vld [vmem:[%s712 + $0x20] sm:$0xf]
        %v722 = vld [vmem:[%s712 + $0x24] sm:$0xf]
        %v723 = vld [vmem:[%s712 + $0x28] sm:$0xf]
        %v724 = vld [vmem:[%s712 + $0x2c] sm:$0xf]
        %v725 = vld [vmem:[%s712 + $0x30] sm:$0xf]
        %v726 = vld [vmem:[%s712 + $0x34] sm:$0xf]
        %v727 = vld [vmem:[%s712 + $0x38] sm:$0xf]
        %v728 = vld [vmem:[%s712 + $0x3c] sm:$0xf]
        %v729 = vld [vmem:[%s712 + $0x40] sm:$0xf]
        %v730 = vld [vmem:[%s712 + $0x44] sm:$0xf]
        %v749 = vunpack.c.l.b16 %v713
        %v750 = vunpack.c.l.b16 %v714
        %v751 = vunpack.c.l.b16 %v715
        %v752 = vunpack.c.l.b16 %v716
        %v753 = vunpack.c.l.b16 %v717
        %v754 = vunpack.c.l.b16 %v718
        %v755 = vunpack.c.l.b16 %v719
        %v756 = vunpack.c.l.b16 %v720
        %v757 = vunpack.c.l.b16 %v721
        %v758 = vunpack.c.l.b16 %v722
        %v759 = vunpack.c.l.b16 %v723
        %v760 = vunpack.c.l.b16 %v724
        %v761 = vunpack.c.l.b16 %v725
        %v762 = vunpack.c.l.b16 %v726
        %v763 = vunpack.c.l.b16 %v727
        %v764 = vunpack.c.l.b16 %v728
        %v765 = vunpack.c.l.b16 %v729
        %v766 = vunpack.c.l.b16 %v730
        %v767 = vpack.c.b16 %v750, %v749
        %v768 = vpack.c.b16 %v752, %v751
        %v769 = vpack.c.b16 %v754, %v753
        %v770 = vpack.c.b16 %v756, %v755
        %v771 = vpack.c.b16 %v758, %v757
        %v772 = vpack.c.b16 %v760, %v759
        %v773 = vpack.c.b16 %v762, %v761
        %v774 = vpack.c.b16 %v764, %v763
        %v775 = vpack.c.b16 %v766, %v765
        %v777 = vsel %vm579, %v767, 0
        %v780 = vsel %vm579, %v768, 0
        %v783 = vsel %vm579, %v769, 0
        %v786 = vsel %vm579, %v770, 0
        %v789 = vsel %vm579, %v771, 0
        %v792 = vsel %vm579, %v772, 0
        %v795 = vsel %vm579, %v773, 0
        %v798 = vsel %vm579, %v774, 0
        %v801 = vsel %vm579, %v775, 0
        %803 = vmatprep.subr.bf16.mxu0 0
        %804 = vmatpush1.bf16.msra.mxu0 %v575
        %805 = vmatprep.subr.bf16.mxu0 0
        %806 = vmatpush1.bf16.msra.mxu0 %v576
        %807 = vmatprep.subr.bf16.mxu0 0
        %808 = vmatpush1.bf16.msra.mxu0 0
        %809 = vmatprep.subr.bf16.mxu0 0
        %810 = vmatpush1.bf16.msra.mxu0 0
        %811 = vmatprep.subr.bf16.mxu0 0
        %812 = vmatpush1.bf16.msra.mxu0 0
        %813 = vmatprep.subr.bf16.mxu0 0
        %814 = vmatpush1.bf16.msra.mxu0 0
        %815 = vmatprep.subr.bf16.mxu0 0
        %816 = vmatpush1.bf16.msra.mxu0 0
        %817 = vmatprep.subr.bf16.mxu0 0
        %818 = vmatpush1.bf16.msra.mxu0 0
        %819 = vmatprep.subr.bf16.mxu0 0
        %820 = vmatpush1.bf16.msra.mxu0 0
        %821 = vmatprep.subr.bf16.mxu0 0
        %822 = vmatpush1.bf16.msra.mxu0 0
        %823 = vmatprep.subr.bf16.mxu0 0
        %824 = vmatpush1.bf16.msra.mxu0 0
        %825 = vmatprep.subr.bf16.mxu0 0
        %826 = vmatpush1.bf16.msra.mxu0 0
        %827 = vmatprep.subr.bf16.mxu0 0
        %828 = vmatpush1.bf16.msra.mxu0 0
        %829 = vmatprep.subr.bf16.mxu0 0
        %830 = vmatpush1.bf16.msra.mxu0 0
        %831 = vmatprep.subr.bf16.mxu0 0
        %832 = vmatpush1.bf16.msra.mxu0 0
        %833 = vmatprep.subr.bf16.mxu0 0
        %834 = vmatpush1.bf16.msra.mxu0 0
        %835 = vmatprep.mubr.bf16.mxu0 0
        %836 = vmatmul.mubr.bf16.gmra.mrb[0].mxu0 %v777
        %v837 = vpop.f32.mrb[0].mxu0
        %v838 = vadd.f32 0.0, %v837
        %v839 = vpop.f32.mrb[0].mxu0
        %v840 = vpop.f32.mrb[0].mxu0
        %v841 = vadd.f32 0.0, %v840
        %v842 = vpop.f32.mrb[0].mxu0
        %843 = vmatprep.mubr.bf16.mxu0 0
        %844 = vmatmul.mubr.bf16.gmra.mrb[0].mxu0 %v780
        %v845 = vpop.f32.mrb[0].mxu0
        %v846 = vadd.f32 0.0, %v845
        %v847 = vpop.f32.mrb[0].mxu0
        %v848 = vpop.f32.mrb[0].mxu0
        %v849 = vadd.f32 0.0, %v848
        %v850 = vpop.f32.mrb[0].mxu0
        %851 = vmatprep.mubr.bf16.mxu0 0
        %852 = vmatmul.mubr.bf16.gmra.mrb[0].mxu0 %v783
        %v853 = vpop.f32.mrb[0].mxu0
        %v854 = vadd.f32 0.0, %v853
        %v855 = vpop.f32.mrb[0].mxu0
        %v856 = vpop.f32.mrb[0].mxu0
        %v857 = vadd.f32 0.0, %v856
        %v858 = vpop.f32.mrb[0].mxu0
        %859 = vmatprep.mubr.bf16.mxu0 0
        %860 = vmatmul.mubr.bf16.gmra.mrb[0].mxu0 %v786
        %v861 = vpop.f32.mrb[0].mxu0
        %v862 = vadd.f32 0.0, %v861
        %v863 = vpop.f32.mrb[0].mxu0
        %v864 = vpop.f32.mrb[0].mxu0
        %v865 = vadd.f32 0.0, %v864
        %v866 = vpop.f32.mrb[0].mxu0
        %867 = vmatprep.mubr.bf16.mxu0 0
        %868 = vmatmul.mubr.bf16.gmra.mrb[0].mxu0 %v789
        %v869 = vpop.f32.mrb[0].mxu0
        %v870 = vadd.f32 0.0, %v869
        %v871 = vpop.f32.mrb[0].mxu0
        %v872 = vpop.f32.mrb[0].mxu0
        %v873 = vadd.f32 0.0, %v872
        %v874 = vpop.f32.mrb[0].mxu0
        %875 = vmatprep.mubr.bf16.mxu0 0
        %876 = vmatmul.mubr.bf16.gmra.mrb[0].mxu0 %v792
        %v877 = vpop.f32.mrb[0].mxu0
        %v878 = vadd.f32 0.0, %v877
        %v879 = vpop.f32.mrb[0].mxu0
        %v880 = vpop.f32.mrb[0].mxu0
        %v881 = vadd.f32 0.0, %v880
        %v882 = vpop.f32.mrb[0].mxu0
        %883 = vmatprep.mubr.bf16.mxu0 0
        %884 = vmatmul.mubr.bf16.gmra.mrb[0].mxu0 %v795
        %v885 = vpop.f32.mrb[0].mxu0
        %v886 = vadd.f32 0.0, %v885
        %v887 = vpop.f32.mrb[0].mxu0
        %v888 = vpop.f32.mrb[0].mxu0
        %v889 = vadd.f32 0.0, %v888
        %v890 = vpop.f32.mrb[0].mxu0
        %891 = vmatprep.mubr.bf16.mxu0 0
        %892 = vmatmul.mubr.bf16.gmra.mrb[0].mxu0 %v798
        %v893 = vpop.f32.mrb[0].mxu0
        %v894 = vadd.f32 0.0, %v893
        %v895 = vpop.f32.mrb[0].mxu0
        %v896 = vpop.f32.mrb[0].mxu0
        %v897 = vadd.f32 0.0, %v896
        %v898 = vpop.f32.mrb[0].mxu0
        %899 = vmatprep.mubr.bf16.mxu0 0
        %900 = vmatmul.mubr.bf16.gmra.mrb[0].mxu0 %v801
        %v901 = vpop.f32.mrb[0].mxu0
        %v902 = vadd.f32 0.0, %v901
        %v903 = vpop.f32.mrb[0].mxu0
        %v904 = vpop.f32.mrb[0].mxu0
        %v905 = vadd.f32 0.0, %v904
        %v906 = vpop.f32.mrb[0].mxu0
        %907 = vdwg.mxu0
        %v908 = vmax.f32 %v642, %v838
        %v909 = vmax.f32 %v645, %v841
        %v910 = vmax.f32 %v650, %v846
        %v911 = vmax.f32 %v653, %v849
        %v912 = vmax.f32 %v658, %v854
        %v913 = vmax.f32 %v661, %v857
        %v914 = vmax.f32 %v666, %v862
        %v915 = vmax.f32 %v669, %v865
        %v916 = vmax.f32 %v674, %v870
        %v917 = vmax.f32 %v677, %v873
        %v918 = vmax.f32 %v682, %v878
        %v919 = vmax.f32 %v685, %v881
        %v920 = vmax.f32 %v690, %v886
        %v921 = vmax.f32 %v693, %v889
        %v922 = vmax.f32 %v698, %v894
        %v923 = vmax.f32 %v701, %v897
        %v924 = vmax.f32 %v706, %v902
        %v925 = vmax.f32 %v709, %v905
        %s926 = scalar_lea.vmem %s471, 144 [#allocation2]
        %v927 = vld [vmem:[%s926] sm:$0xf]
        %v928 = vld [vmem:[%s926 + $0x4] sm:$0xf]
        %v929 = vld [vmem:[%s926 + $0x8] sm:$0xf]
        %v930 = vld [vmem:[%s926 + $0xc] sm:$0xf]
        %v931 = vld [vmem:[%s926 + $0x10] sm:$0xf]
        %v932 = vld [vmem:[%s926 + $0x14] sm:$0xf]
        %v933 = vld [vmem:[%s926 + $0x18] sm:$0xf]
        %v934 = vld [vmem:[%s926 + $0x1c] sm:$0xf]
        %v935 = vld [vmem:[%s926 + $0x20] sm:$0xf]
        %v936 = vld [vmem:[%s926 + $0x24] sm:$0xf]
        %v937 = vld [vmem:[%s926 + $0x28] sm:$0xf]
        %v938 = vld [vmem:[%s926 + $0x2c] sm:$0xf]
        %v939 = vld [vmem:[%s926 + $0x30] sm:$0xf]
        %v940 = vld [vmem:[%s926 + $0x34] sm:$0xf]
        %v941 = vld [vmem:[%s926 + $0x38] sm:$0xf]
        %v942 = vld [vmem:[%s926 + $0x3c] sm:$0xf]
        %v943 = vld [vmem:[%s926 + $0x40] sm:$0xf]
        %v944 = vld [vmem:[%s926 + $0x44] sm:$0xf]
        %v963 = vunpack.c.l.b16 %v927
        %v964 = vunpack.c.l.b16 %v928
        %v965 = vunpack.c.l.b16 %v929
        %v966 = vunpack.c.l.b16 %v930
        %v967 = vunpack.c.l.b16 %v931
        %v968 = vunpack.c.l.b16 %v932
        %v969 = vunpack.c.l.b16 %v933
        %v970 = vunpack.c.l.b16 %v934
        %v971 = vunpack.c.l.b16 %v935
        %v972 = vunpack.c.l.b16 %v936
        %v973 = vunpack.c.l.b16 %v937
        %v974 = vunpack.c.l.b16 %v938
        %v975 = vunpack.c.l.b16 %v939
        %v976 = vunpack.c.l.b16 %v940
        %v977 = vunpack.c.l.b16 %v941
        %v978 = vunpack.c.l.b16 %v942
        %v979 = vunpack.c.l.b16 %v943
        %v980 = vunpack.c.l.b16 %v944
        %v981 = vpack.c.b16 %v964, %v963
        %v982 = vpack.c.b16 %v966, %v965
        %v983 = vpack.c.b16 %v968, %v967
        %v984 = vpack.c.b16 %v970, %v969
        %v985 = vpack.c.b16 %v972, %v971
        %v986 = vpack.c.b16 %v974, %v973
        %v987 = vpack.c.b16 %v976, %v975
        %v988 = vpack.c.b16 %v978, %v977
        %v989 = vpack.c.b16 %v980, %v979
        %v991 = vsel %vm579, %v981, 0
        %v994 = vsel %vm579, %v982, 0
        %v997 = vsel %vm579, %v983, 0
        %v1000 = vsel %vm579, %v984, 0
        %v1003 = vsel %vm579, %v985, 0
        %v1006 = vsel %vm579, %v986, 0
        %v1009 = vsel %vm579, %v987, 0
        %v1012 = vsel %vm579, %v988, 0
        %v1015 = vsel %vm579, %v989, 0
        %1017 = vmatprep.subr.bf16.mxu0 0
        %1018 = vmatpush1.bf16.msra.mxu0 %v575
        %1019 = vmatprep.subr.bf16.mxu0 0
        %1020 = vmatpush1.bf16.msra.mxu0 %v576
        %1021 = vmatprep.subr.bf16.mxu0 0
        %1022 = vmatpush1.bf16.msra.mxu0 0
        %1023 = vmatprep.subr.bf16.mxu0 0
        %1024 = vmatpush1.bf16.msra.mxu0 0
        %1025 = vmatprep.subr.bf16.mxu0 0
        %1026 = vmatpush1.bf16.msra.mxu0 0
        %1027 = vmatprep.subr.bf16.mxu0 0
        %1028 = vmatpush1.bf16.msra.mxu0 0
        %1029 = vmatprep.subr.bf16.mxu0 0
        %1030 = vmatpush1.bf16.msra.mxu0 0
        %1031 = vmatprep.subr.bf16.mxu0 0
        %1032 = vmatpush1.bf16.msra.mxu0 0
        %1033 = vmatprep.subr.bf16.mxu0 0
        %1034 = vmatpush1.bf16.msra.mxu0 0
        %1035 = vmatprep.subr.bf16.mxu0 0
        %1036 = vmatpush1.bf16.msra.mxu0 0
        %1037 = vmatprep.subr.bf16.mxu0 0
        %1038 = vmatpush1.bf16.msra.mxu0 0
        %1039 = vmatprep.subr.bf16.mxu0 0
        %1040 = vmatpush1.bf16.msra.mxu0 0
        %1041 = vmatprep.subr.bf16.mxu0 0
        %1042 = vmatpush1.bf16.msra.mxu0 0
        %1043 = vmatprep.subr.bf16.mxu0 0
        %1044 = vmatpush1.bf16.msra.mxu0 0
        %1045 = vmatprep.subr.bf16.mxu0 0
        %1046 = vmatpush1.bf16.msra.mxu0 0
        %1047 = vmatprep.subr.bf16.mxu0 0
        %1048 = vmatpush1.bf16.msra.mxu0 0
        %1049 = vmatprep.mubr.bf16.mxu0 0
        %1050 = vmatmul.mubr.bf16.gmra.mrb[0].mxu0 %v991
        %v1051 = vpop.f32.mrb[0].mxu0
        %v1052 = vadd.f32 0.0, %v1051
        %v1053 = vpop.f32.mrb[0].mxu0
        %v1054 = vpop.f32.mrb[0].mxu0
        %v1055 = vadd.f32 0.0, %v1054
        %v1056 = vpop.f32.mrb[0].mxu0
        %1057 = vmatprep.mubr.bf16.mxu0 0
        %1058 = vmatmul.mubr.bf16.gmra.mrb[0].mxu0 %v994
        %v1059 = vpop.f32.mrb[0].mxu0
        %v1060 = vadd.f32 0.0, %v1059
        %v1061 = vpop.f32.mrb[0].mxu0
        %v1062 = vpop.f32.mrb[0].mxu0
        %v1063 = vadd.f32 0.0, %v1062
        %v1064 = vpop.f32.mrb[0].mxu0
        %1065 = vmatprep.mubr.bf16.mxu0 0
        %1066 = vmatmul.mubr.bf16.gmra.mrb[0].mxu0 %v997
        %v1067 = vpop.f32.mrb[0].mxu0
        %v1068 = vadd.f32 0.0, %v1067
        %v1069 = vpop.f32.mrb[0].mxu0
        %v1070 = vpop.f32.mrb[0].mxu0
        %v1071 = vadd.f32 0.0, %v1070
        %v1072 = vpop.f32.mrb[0].mxu0
        %1073 = vmatprep.mubr.bf16.mxu0 0
        %1074 = vmatmul.mubr.bf16.gmra.mrb[0].mxu0 %v1000
        %v1075 = vpop.f32.mrb[0].mxu0
        %v1076 = vadd.f32 0.0, %v1075
        %v1077 = vpop.f32.mrb[0].mxu0
        %v1078 = vpop.f32.mrb[0].mxu0
        %v1079 = vadd.f32 0.0, %v1078
        %v1080 = vpop.f32.mrb[0].mxu0
        %1081 = vmatprep.mubr.bf16.mxu0 0
        %1082 = vmatmul.mubr.bf16.gmra.mrb[0].mxu0 %v1003
        %v1083 = vpop.f32.mrb[0].mxu0
        %v1084 = vadd.f32 0.0, %v1083
        %v1085 = vpop.f32.mrb[0].mxu0
        %v1086 = vpop.f32.mrb[0].mxu0
        %v1087 = vadd.f32 0.0, %v1086
        %v1088 = vpop.f32.mrb[0].mxu0
        %1089 = vmatprep.mubr.bf16.mxu0 0
        %1090 = vmatmul.mubr.bf16.gmra.mrb[0].mxu0 %v1006
        %v1091 = vpop.f32.mrb[0].mxu0
        %v1092 = vadd.f32 0.0, %v1091
        %v1093 = vpop.f32.mrb[0].mxu0
        %v1094 = vpop.f32.mrb[0].mxu0
        %v1095 = vadd.f32 0.0, %v1094
        %v1096 = vpop.f32.mrb[0].mxu0
        %1097 = vmatprep.mubr.bf16.mxu0 0
        %1098 = vmatmul.mubr.bf16.gmra.mrb[0].mxu0 %v1009
        %v1099 = vpop.f32.mrb[0].mxu0
        %v1100 = vadd.f32 0.0, %v1099
        %v1101 = vpop.f32.mrb[0].mxu0
        %v1102 = vpop.f32.mrb[0].mxu0
        %v1103 = vadd.f32 0.0, %v1102
        %v1104 = vpop.f32.mrb[0].mxu0
        %1105 = vmatprep.mubr.bf16.mxu0 0
        %1106 = vmatmul.mubr.bf16.gmra.mrb[0].mxu0 %v1012
        %v1107 = vpop.f32.mrb[0].mxu0
        %v1108 = vadd.f32 0.0, %v1107
        %v1109 = vpop.f32.mrb[0].mxu0
        %v1110 = vpop.f32.mrb[0].mxu0
        %v1111 = vadd.f32 0.0, %v1110
        %v1112 = vpop.f32.mrb[0].mxu0
        %1113 = vmatprep.mubr.bf16.mxu0 0
        %1114 = vmatmul.mubr.bf16.gmra.mrb[0].mxu0 %v1015
        %v1115 = vpop.f32.mrb[0].mxu0
        %v1116 = vadd.f32 0.0, %v1115
        %v1117 = vpop.f32.mrb[0].mxu0
        %v1118 = vpop.f32.mrb[0].mxu0
        %v1119 = vadd.f32 0.0, %v1118
        %v1120 = vpop.f32.mrb[0].mxu0
        %1121 = vdwg.mxu0
        %v1122 = vmax.f32 %v908, %v1052
        %v1123 = vmax.f32 %v909, %v1055
        %v1124 = vmax.f32 %v910, %v1060
        %v1125 = vmax.f32 %v911, %v1063
        %v1126 = vmax.f32 %v912, %v1068
        %v1127 = vmax.f32 %v913, %v1071
        %v1128 = vmax.f32 %v914, %v1076
        %v1129 = vmax.f32 %v915, %v1079
        %v1130 = vmax.f32 %v916, %v1084
        %v1131 = vmax.f32 %v917, %v1087
        %v1132 = vmax.f32 %v918, %v1092
        %v1133 = vmax.f32 %v919, %v1095
        %v1134 = vmax.f32 %v920, %v1100
        %v1135 = vmax.f32 %v921, %v1103
        %v1136 = vmax.f32 %v922, %v1108
        %v1137 = vmax.f32 %v923, %v1111
        %v1138 = vmax.f32 %v924, %v1116
        %v1139 = vmax.f32 %v925, %v1119
        %s1140 = scalar_lea.vmem %s471, 216 [#allocation2]
        %v1141 = vld [vmem:[%s1140] sm:$0xf]
        %v1142 = vld [vmem:[%s1140 + $0x4] sm:$0xf]
        %v1143 = vld [vmem:[%s1140 + $0x8] sm:$0xf]
        %v1144 = vld [vmem:[%s1140 + $0xc] sm:$0xf]
        %v1145 = vld [vmem:[%s1140 + $0x10] sm:$0xf]
        %v1146 = vld [vmem:[%s1140 + $0x14] sm:$0xf]
        %v1147 = vld [vmem:[%s1140 + $0x18] sm:$0xf]
        %v1148 = vld [vmem:[%s1140 + $0x1c] sm:$0xf]
        %v1149 = vld [vmem:[%s1140 + $0x20] sm:$0xf]
        %v1150 = vld [vmem:[%s1140 + $0x24] sm:$0xf]
        %v1151 = vld [vmem:[%s1140 + $0x28] sm:$0xf]
        %v1152 = vld [vmem:[%s1140 + $0x2c] sm:$0xf]
        %v1153 = vld [vmem:[%s1140 + $0x30] sm:$0xf]
        %v1154 = vld [vmem:[%s1140 + $0x34] sm:$0xf]
        %v1155 = vld [vmem:[%s1140 + $0x38] sm:$0xf]
        %v1156 = vld [vmem:[%s1140 + $0x3c] sm:$0xf]
        %v1157 = vld [vmem:[%s1140 + $0x40] sm:$0xf]
        %v1158 = vld [vmem:[%s1140 + $0x44] sm:$0xf]
        %v1177 = vunpack.c.l.b16 %v1141
        %v1178 = vunpack.c.l.b16 %v1142
        %v1179 = vunpack.c.l.b16 %v1143
        %v1180 = vunpack.c.l.b16 %v1144
        %v1181 = vunpack.c.l.b16 %v1145
        %v1182 = vunpack.c.l.b16 %v1146
        %v1183 = vunpack.c.l.b16 %v1147
        %v1184 = vunpack.c.l.b16 %v1148
        %v1185 = vunpack.c.l.b16 %v1149
        %v1186 = vunpack.c.l.b16 %v1150
        %v1187 = vunpack.c.l.b16 %v1151
        %v1188 = vunpack.c.l.b16 %v1152
        %v1189 = vunpack.c.l.b16 %v1153
        %v1190 = vunpack.c.l.b16 %v1154
        %v1191 = vunpack.c.l.b16 %v1155
        %v1192 = vunpack.c.l.b16 %v1156
        %v1193 = vunpack.c.l.b16 %v1157
        %v1194 = vunpack.c.l.b16 %v1158
        %v1195 = vpack.c.b16 %v1178, %v1177
        %v1196 = vpack.c.b16 %v1180, %v1179
        %v1197 = vpack.c.b16 %v1182, %v1181
        %v1198 = vpack.c.b16 %v1184, %v1183
        %v1199 = vpack.c.b16 %v1186, %v1185
        %v1200 = vpack.c.b16 %v1188, %v1187
        %v1201 = vpack.c.b16 %v1190, %v1189
        %v1202 = vpack.c.b16 %v1192, %v1191
        %v1203 = vpack.c.b16 %v1194, %v1193
        %v1205 = vsel %vm579, %v1195, 0
        %v1208 = vsel %vm579, %v1196, 0
        %v1211 = vsel %vm579, %v1197, 0
        %v1214 = vsel %vm579, %v1198, 0
        %v1217 = vsel %vm579, %v1199, 0
        %v1220 = vsel %vm579, %v1200, 0
        %v1223 = vsel %vm579, %v1201, 0
        %v1226 = vsel %vm579, %v1202, 0
        %v1229 = vsel %vm579, %v1203, 0
        %1231 = vmatprep.subr.bf16.mxu0 0
        %1232 = vmatpush1.bf16.msra.mxu0 %v575
        %1233 = vmatprep.subr.bf16.mxu0 0
        %1234 = vmatpush1.bf16.msra.mxu0 %v576
        %1235 = vmatprep.subr.bf16.mxu0 0
        %1236 = vmatpush1.bf16.msra.mxu0 0
        %1237 = vmatprep.subr.bf16.mxu0 0
        %1238 = vmatpush1.bf16.msra.mxu0 0
        %1239 = vmatprep.subr.bf16.mxu0 0
        %1240 = vmatpush1.bf16.msra.mxu0 0
        %1241 = vmatprep.subr.bf16.mxu0 0
        %1242 = vmatpush1.bf16.msra.mxu0 0
        %1243 = vmatprep.subr.bf16.mxu0 0
        %1244 = vmatpush1.bf16.msra.mxu0 0
        %1245 = vmatprep.subr.bf16.mxu0 0
        %1246 = vmatpush1.bf16.msra.mxu0 0
        %1247 = vmatprep.subr.bf16.mxu0 0
        %1248 = vmatpush1.bf16.msra.mxu0 0
        %1249 = vmatprep.subr.bf16.mxu0 0
        %1250 = vmatpush1.bf16.msra.mxu0 0
        %1251 = vmatprep.subr.bf16.mxu0 0
        %1252 = vmatpush1.bf16.msra.mxu0 0
        %1253 = vmatprep.subr.bf16.mxu0 0
        %1254 = vmatpush1.bf16.msra.mxu0 0
        %1255 = vmatprep.subr.bf16.mxu0 0
        %1256 = vmatpush1.bf16.msra.mxu0 0
        %1257 = vmatprep.subr.bf16.mxu0 0
        %1258 = vmatpush1.bf16.msra.mxu0 0
        %1259 = vmatprep.subr.bf16.mxu0 0
        %1260 = vmatpush1.bf16.msra.mxu0 0
        %1261 = vmatprep.subr.bf16.mxu0 0
        %1262 = vmatpush1.bf16.msra.mxu0 0
        %1263 = vmatprep.mubr.bf16.mxu0 0
        %1264 = vmatmul.mubr.bf16.gmra.mrb[0].mxu0 %v1205
        %v1265 = vpop.f32.mrb[0].mxu0
        %v1266 = vadd.f32 0.0, %v1265
        %v1267 = vpop.f32.mrb[0].mxu0
        %v1268 = vpop.f32.mrb[0].mxu0
        %v1269 = vadd.f32 0.0, %v1268
        %v1270 = vpop.f32.mrb[0].mxu0
        %1271 = vmatprep.mubr.bf16.mxu0 0
        %1272 = vmatmul.mubr.bf16.gmra.mrb[0].mxu0 %v1208
        %v1273 = vpop.f32.mrb[0].mxu0
        %v1274 = vadd.f32 0.0, %v1273
        %v1275 = vpop.f32.mrb[0].mxu0
        %v1276 = vpop.f32.mrb[0].mxu0
        %v1277 = vadd.f32 0.0, %v1276
        %v1278 = vpop.f32.mrb[0].mxu0
        %1279 = vmatprep.mubr.bf16.mxu0 0
        %1280 = vmatmul.mubr.bf16.gmra.mrb[0].mxu0 %v1211
        %v1281 = vpop.f32.mrb[0].mxu0
        %v1282 = vadd.f32 0.0, %v1281
        %v1283 = vpop.f32.mrb[0].mxu0
        %v1284 = vpop.f32.mrb[0].mxu0
        %v1285 = vadd.f32 0.0, %v1284
        %v1286 = vpop.f32.mrb[0].mxu0
        %1287 = vmatprep.mubr.bf16.mxu0 0
        %1288 = vmatmul.mubr.bf16.gmra.mrb[0].mxu0 %v1214
        %v1289 = vpop.f32.mrb[0].mxu0
        %v1290 = vadd.f32 0.0, %v1289
        %v1291 = vpop.f32.mrb[0].mxu0
        %v1292 = vpop.f32.mrb[0].mxu0
        %v1293 = vadd.f32 0.0, %v1292
        %v1294 = vpop.f32.mrb[0].mxu0
        %1295 = vmatprep.mubr.bf16.mxu0 0
        %1296 = vmatmul.mubr.bf16.gmra.mrb[0].mxu0 %v1217
        %v1297 = vpop.f32.mrb[0].mxu0
        %v1298 = vadd.f32 0.0, %v1297
        %v1299 = vpop.f32.mrb[0].mxu0
        %v1300 = vpop.f32.mrb[0].mxu0
        %v1301 = vadd.f32 0.0, %v1300
        %v1302 = vpop.f32.mrb[0].mxu0
        %1303 = vmatprep.mubr.bf16.mxu0 0
        %1304 = vmatmul.mubr.bf16.gmra.mrb[0].mxu0 %v1220
        %v1305 = vpop.f32.mrb[0].mxu0
        %v1306 = vadd.f32 0.0, %v1305
        %v1307 = vpop.f32.mrb[0].mxu0
        %v1308 = vpop.f32.mrb[0].mxu0
        %v1309 = vadd.f32 0.0, %v1308
        %v1310 = vpop.f32.mrb[0].mxu0
        %1311 = vmatprep.mubr.bf16.mxu0 0
        %1312 = vmatmul.mubr.bf16.gmra.mrb[0].mxu0 %v1223
        %v1313 = vpop.f32.mrb[0].mxu0
        %v1314 = vadd.f32 0.0, %v1313
        %v1315 = vpop.f32.mrb[0].mxu0
        %v1316 = vpop.f32.mrb[0].mxu0
        %v1317 = vadd.f32 0.0, %v1316
        %v1318 = vpop.f32.mrb[0].mxu0
        %1319 = vmatprep.mubr.bf16.mxu0 0
        %1320 = vmatmul.mubr.bf16.gmra.mrb[0].mxu0 %v1226
        %v1321 = vpop.f32.mrb[0].mxu0
        %v1322 = vadd.f32 0.0, %v1321
        %v1323 = vpop.f32.mrb[0].mxu0
        %v1324 = vpop.f32.mrb[0].mxu0
        %v1325 = vadd.f32 0.0, %v1324
        %v1326 = vpop.f32.mrb[0].mxu0
        %1327 = vmatprep.mubr.bf16.mxu0 0
        %1328 = vmatmul.mubr.bf16.gmra.mrb[0].mxu0 %v1229
        %v1329 = vpop.f32.mrb[0].mxu0
        %v1330 = vadd.f32 0.0, %v1329
        %v1331 = vpop.f32.mrb[0].mxu0
        %v1332 = vpop.f32.mrb[0].mxu0
        %v1333 = vadd.f32 0.0, %v1332
        %v1334 = vpop.f32.mrb[0].mxu0
        %1335 = vdwg.mxu0
        %v1336 = vmax.f32 %v1122, %v1266
        %v1337 = vmax.f32 %v1123, %v1269
        %v1338 = vmax.f32 %v1124, %v1274
        %v1339 = vmax.f32 %v1125, %v1277
        %v1340 = vmax.f32 %v1126, %v1282
        %v1341 = vmax.f32 %v1127, %v1285
        %v1342 = vmax.f32 %v1128, %v1290
        %v1343 = vmax.f32 %v1129, %v1293
        %v1344 = vmax.f32 %v1130, %v1298
        %v1345 = vmax.f32 %v1131, %v1301
        %v1346 = vmax.f32 %v1132, %v1306
        %v1347 = vmax.f32 %v1133, %v1309
        %v1348 = vmax.f32 %v1134, %v1314
        %v1349 = vmax.f32 %v1135, %v1317
        %v1350 = vmax.f32 %v1136, %v1322
        %v1351 = vmax.f32 %v1137, %v1325
        %v1352 = vmax.f32 %v1138, %v1330
        %v1353 = vmax.f32 %v1139, %v1333
        %v1354 = vld [vmem:[%s2] sm:$0x1]
        %v1356 = vlaneseq
        %v1357 = vshrl.u32 %v1356, 7
        %v1358 = vsub.s32 0, %v1357
        %v1359 = vrot.slane %v1354, %v1358
        %v1361 = vadd.f32 %v1336, %v1359
        %v1362 = vadd.f32 %v1337, %v1359
        %v1363 = vadd.f32 %v1338, %v1359
        %v1364 = vadd.f32 %v1339, %v1359
        %v1365 = vadd.f32 %v1340, %v1359
        %v1366 = vadd.f32 %v1341, %v1359
        %v1367 = vadd.f32 %v1342, %v1359
        %v1368 = vadd.f32 %v1343, %v1359
        %v1369 = vadd.f32 %v1344, %v1359
        %v1370 = vadd.f32 %v1345, %v1359
        %v1371 = vadd.f32 %v1346, %v1359
        %v1372 = vadd.f32 %v1347, %v1359
        %v1373 = vadd.f32 %v1348, %v1359
        %v1374 = vadd.f32 %v1349, %v1359
        %v1375 = vadd.f32 %v1350, %v1359
        %v1376 = vadd.f32 %v1351, %v1359
        %v1377 = vadd.f32 %v1352, %v1359
        %v1378 = vadd.f32 %v1353, %v1359
        %v1379 = vmax.f32 %v1361, 0.0
        %v1380 = vmax.f32 %v1362, 0.0
        %v1381 = vmax.f32 %v1363, 0.0
        %v1382 = vmax.f32 %v1364, 0.0
        %v1383 = vmax.f32 %v1365, 0.0
        %v1384 = vmax.f32 %v1366, 0.0
        %v1385 = vmax.f32 %v1367, 0.0
        %v1386 = vmax.f32 %v1368, 0.0
        %v1387 = vmax.f32 %v1369, 0.0
        %v1388 = vmax.f32 %v1370, 0.0
        %v1389 = vmax.f32 %v1371, 0.0
        %v1390 = vmax.f32 %v1372, 0.0
        %v1391 = vmax.f32 %v1373, 0.0
        %v1392 = vmax.f32 %v1374, 0.0
        %v1393 = vmax.f32 %v1375, 0.0
        %v1394 = vmax.f32 %v1376, 0.0
        %v1395 = vmax.f32 %v1377, 0.0
        %v1396 = vmax.f32 %v1378, 0.0
        %v1397 = vpack.c.bf16 %v1380, %v1379
        %v1398 = vpack.c.bf16 %v1382, %v1381
        %v1399 = vpack.c.bf16 %v1384, %v1383
        %v1400 = vpack.c.bf16 %v1386, %v1385
        %v1401 = vpack.c.bf16 %v1388, %v1387
        %v1402 = vpack.c.bf16 %v1390, %v1389
        %v1403 = vpack.c.bf16 %v1392, %v1391
        %v1404 = vpack.c.bf16 %v1394, %v1393
        %v1405 = vpack.c.bf16 %v1396, %v1395
        %v1415 = vunpack.c.l.b16 %v1397
        %v1416 = vunpack.c.h.b16 %v1397
        %v1417 = vunpack.c.l.b16 %v1398
        %v1418 = vunpack.c.h.b16 %v1398
        %v1419 = vunpack.c.l.b16 %v1399
        %v1420 = vunpack.c.h.b16 %v1399
        %v1421 = vunpack.c.l.b16 %v1400
        %v1422 = vunpack.c.h.b16 %v1400
        %v1423 = vunpack.c.l.b16 %v1401
        %v1424 = vunpack.c.h.b16 %v1401
        %v1425 = vunpack.c.l.b16 %v1402
        %v1426 = vunpack.c.h.b16 %v1402
        %v1427 = vunpack.c.l.b16 %v1403
        %v1428 = vunpack.c.h.b16 %v1403
        %v1429 = vunpack.c.l.b16 %v1404
        %v1430 = vunpack.c.h.b16 %v1404
        %v1431 = vunpack.c.l.b16 %v1405
        %v1432 = vunpack.c.h.b16 %v1405
        %v1433 = vpack.c.b16 %v1415, %v1415
        %v1434 = vpack.c.b16 %v1416, %v1416
        %v1435 = vpack.c.b16 %v1417, %v1417
        %v1436 = vpack.c.b16 %v1418, %v1418
        %v1437 = vpack.c.b16 %v1419, %v1419
        %v1438 = vpack.c.b16 %v1420, %v1420
        %v1439 = vpack.c.b16 %v1421, %v1421
        %v1440 = vpack.c.b16 %v1422, %v1422
        %v1441 = vpack.c.b16 %v1423, %v1423
        %v1442 = vpack.c.b16 %v1424, %v1424
        %v1443 = vpack.c.b16 %v1425, %v1425
        %v1444 = vpack.c.b16 %v1426, %v1426
        %v1445 = vpack.c.b16 %v1427, %v1427
        %v1446 = vpack.c.b16 %v1428, %v1428
        %v1447 = vpack.c.b16 %v1429, %v1429
        %v1448 = vpack.c.b16 %v1430, %v1430
        %v1449 = vpack.c.b16 %v1431, %v1431
        %v1450 = vpack.c.b16 %v1432, %v1432
        %1469 = vst [vmem:[%s497] sm:$0xf] %v1433
        %1470 = vst [vmem:[%s497 + $0x4] sm:$0xf] %v1434
        %1471 = vst [vmem:[%s497 + $0x8] sm:$0xf] %v1435
        %1472 = vst [vmem:[%s497 + $0xc] sm:$0xf] %v1436
        %1473 = vst [vmem:[%s497 + $0x10] sm:$0xf] %v1437
        %1474 = vst [vmem:[%s497 + $0x14] sm:$0xf] %v1438
        %1475 = vst [vmem:[%s497 + $0x18] sm:$0xf] %v1439
        %1476 = vst [vmem:[%s497 + $0x1c] sm:$0xf] %v1440
        %1477 = vst [vmem:[%s497 + $0x20] sm:$0xf] %v1441
        %1478 = vst [vmem:[%s497 + $0x24] sm:$0xf] %v1442
        %1479 = vst [vmem:[%s497 + $0x28] sm:$0xf] %v1443
        %1480 = vst [vmem:[%s497 + $0x2c] sm:$0xf] %v1444
        %1481 = vst [vmem:[%s497 + $0x30] sm:$0xf] %v1445
        %1482 = vst [vmem:[%s497 + $0x34] sm:$0xf] %v1446
        %1483 = vst [vmem:[%s497 + $0x38] sm:$0xf] %v1447
        %1484 = vst [vmem:[%s497 + $0x3c] sm:$0xf] %v1448
        %1485 = vst [vmem:[%s497 + $0x40] sm:$0xf] %v1449
        %1486 = vst [vmem:[%s497 + $0x44] sm:$0xf] %v1450
        %s1487 = smul.u32 18, %s14
        %p1488 = scmp.lt.s32.totalorder %s1487, 35
        %s1489 = scalar_select %p1488, %s1487, 35
        %s1490 = smul.addr %s1489, 4
        %s1491 = scalar_lea.vmem %s3, %s1490
        // Predicated region
        $region74: #{lenet_forward.3} parent=68 // pred_check
          %p1492 = pneg %p100
        $region75: #{lenet_forward.3} parent=68 // pred_check_branch
          %1494 = sbr.rel (%p1492) target = $region77
        $region76: #{lenet_forward.3} parent=68 // pred_region
          %s1495 = smul.u32 18, %s14
        $region77: #{lenet_forward.3} parent=68 // pred_fallthru
          _
      $region69: #{lenet_forward.3} parent=5 // pred_fallthru
        _
      %p1496 = scmp.le.s32.totalorder 2, %s9
      // Predicated region
      $region78: #{lenet_forward.3} parent=5 // pred_check
        %p1497 = pneg %p1496
      $region79: #{lenet_forward.3} parent=5 // pred_check_branch
        %1499 = sbr.rel (%p1497) target = $region81
      $region80: #{lenet_forward.3} parent=5 // pred_region
        %s1500 = ssub.s32 %s9, 2
        // Predicated region
        $region82: #{lenet_forward.3} parent=80 // pred_check
          %p1501 = pneg %p106
        $region83: #{lenet_forward.3} parent=80 // pred_check_branch
          %1503 = sbr.rel (%p1501) target = $region85
        $region84: #{lenet_forward.3} parent=80 // pred_region
          %s1504 = smul.u32 18, %s15
          %p1505 = scmp.lt.s32.totalorder %s1504, 35
          %s1506 = scalar_select %p1505, %s1504, 35
          %s1507 = smul.addr %s1506, 4
          %s1508 = scalar_lea.vmem %s3, %s1507
        $region85: #{lenet_forward.3} parent=80 // pred_fallthru
          _
      $region81: #{lenet_forward.3} parent=5 // pred_fallthru
        _
    $region6: #{lenet_forward.3} parent=1 // loop_footer
      %s13 = sadd.s32 1, %s9
    $region7: #{lenet_forward.3} parent=1 // loop_footer_branch
      %8 = sbr.rel target = $region3
    $region8: #{lenet_forward.3} parent=1 // loop_exit
      _

// kernel: lenet_forward.4
$region0: #{lenet_forward.4}
  #allocation0 [shape = 'u32[]', space=smem, size = 0x4, offset = 0x4, fixed_abs, tag = 'smem constant byte address 0x4 - core index']
  #allocation1 [shape = 'u32[144,128]{1,0:T(1,128)}', space=vmem, size = 0x12000, scoped, tag = 'internal scratch']
  %s0 = inlined_call_operand.vmem [shape: bf16[4,32,512], index: 0, kind: input, shape index: {}]
  %s1 = inlined_call_operand.vmem [shape: bf16[512,128], index: 1, kind: input, shape index: {}]
  %s2 = inlined_call_operand.vmem [shape: f32[1,128], index: 2, kind: input, shape index: {}]
  %s3 = inlined_call_operand.vmem [shape: bf16[32,128], index: 3, kind: output, shape index: {}]
  %s4 = sld [smem:[#allocation0]]
  $region68: #{lenet_forward.4} parent=0
    _
  %s6 = ssub.s32 1, %s4
  %s7 = scalar_select 0, %s6, %s4
  $region1: #{lenet_forward.4} parent=0
    #allocation2 [shape = 'u8[131072]{0}', space=vmem, size = 0x20000, scoped, tag = 'input window, operand 0']
    loop: start=0, step=1, limit=4
    $region2: #{lenet_forward.4} parent=1 // loop_pre_header
      _
    $region3: #{lenet_forward.4} parent=1 // loop_header
      %s9 = sphi 0, %s13
      %p10 = scmp.ge.s32.totalorder %s9, 4
      %s19 = sphi 0, %s21
      %s22 = sphi 0, %s19
      %s23 = sphi 0, %s22
      %s39 = sphi 0, %s23
      %s43 = sphi 0, %s43
      %s45 = sphi 0, %s43
      %s46 = sphi 0, %s45
      %s60 = sphi 0, %s46
      %s64 = sphi 0, %s64
      %s66 = sphi 0, %s64
      %s67 = sphi 0, %s66
      %s81 = sphi 0, %s67
      %s87 = sphi 0, %s89
      %s90 = sphi 0, %s87
      %s91 = sphi 0, %s90
      %s107 = sphi 0, %s91
    $region4: #{lenet_forward.4} parent=1 // loop_header_branch
      %12 = sbr.rel (%p10) target = $region8
    $region5: #{lenet_forward.4} parent=1 // loop_body
      %s14 = ssub.s32 %s9, 1
      %s15 = ssub.s32 %s9, 2
      %s16 = sadd.s32 %s9, 1
      %s17 = ssub.s32 %s9, %s16
      %p18 = scmp.eq.s32.totalorder %s17, 0
      %s20 = sadd.s32 %s19, 1
      %s21 = scalar_select %p18, %s19, %s20
      %p24 = pneg %p18
      %p25 = scmp.eq.s32.totalorder %s9, 1
      %p26 = por %p24, %p25
      %p27 = scmp.ne.s32.totalorder %s19, %s22
      %p28 = scmp.eq.s32.totalorder %s9, 0
      %p29 = por %p27, %p28
      %p30 = scmp.ne.s32.totalorder %s19, %s22
      %p31 = scmp.eq.s32.totalorder %s14, 1
      %p32 = por %p30, %p31
      %p33 = scmp.ne.s32.totalorder %s22, %s23
      %p34 = scmp.eq.s32.totalorder %s14, 0
      %p35 = por %p33, %p34
      %p36 = scmp.ne.s32.totalorder %s22, %s23
      %p37 = scmp.eq.s32.totalorder %s15, 1
      %p38 = por %p36, %p37
      %p40 = scmp.ne.s32.totalorder %s23, %s39
      %p41 = scmp.eq.s32.totalorder %s15, 0
      %p42 = por %p40, %p41
      %s44 = sadd.s32 %s43, 1
      %p47 = scmp.eq.s32.totalorder %s9, 1
      %p48 = scmp.ne.s32.totalorder %s43, %s45
      %p49 = scmp.eq.s32.totalorder %s9, 0
      %p50 = por %p48, %p49
      %p51 = scmp.ne.s32.totalorder %s43, %s45
      %p52 = scmp.eq.s32.totalorder %s14, 1
      %p53 = por %p51, %p52
      %p54 = scmp.ne.s32.totalorder %s45, %s46
      %p55 = scmp.eq.s32.totalorder %s14, 0
      %p56 = por %p54, %p55
      %p57 = scmp.ne.s32.totalorder %s45, %s46
      %p58 = scmp.eq.s32.totalorder %s15, 1
      %p59 = por %p57, %p58
      %p61 = scmp.ne.s32.totalorder %s46, %s60
      %p62 = scmp.eq.s32.totalorder %s15, 0
      %p63 = por %p61, %p62
      %s65 = sadd.s32 %s64, 1
      %p68 = scmp.eq.s32.totalorder %s9, 1
      %p69 = scmp.ne.s32.totalorder %s64, %s66
      %p70 = scmp.eq.s32.totalorder %s9, 0
      %p71 = por %p69, %p70
      %p72 = scmp.ne.s32.totalorder %s64, %s66
      %p73 = scmp.eq.s32.totalorder %s14, 1
      %p74 = por %p72, %p73
      %p75 = scmp.ne.s32.totalorder %s66, %s67
      %p76 = scmp.eq.s32.totalorder %s14, 0
      %p77 = por %p75, %p76
      %p78 = scmp.ne.s32.totalorder %s66, %s67
      %p79 = scmp.eq.s32.totalorder %s15, 1
      %p80 = por %p78, %p79
      %p82 = scmp.ne.s32.totalorder %s67, %s81
      %p83 = scmp.eq.s32.totalorder %s15, 0
      %p84 = por %p82, %p83
      %s85 = ssub.s32 %s9, %s16
      %p86 = scmp.eq.s32.totalorder %s85, 0
      %s88 = sadd.s32 %s87, 1
      %s89 = scalar_select %p86, %s87, %s88
      %p92 = pneg %p86
      %p93 = scmp.eq.s32.totalorder %s9, 1
      %p94 = por %p92, %p93
      %p95 = scmp.ne.s32.totalorder %s87, %s90
      %p96 = scmp.eq.s32.totalorder %s9, 0
      %p97 = por %p95, %p96
      %p98 = scmp.ne.s32.totalorder %s87, %s90
      %p99 = scmp.eq.s32.totalorder %s14, 1
      %p100 = por %p98, %p99
      %p101 = scmp.ne.s32.totalorder %s90, %s91
      %p102 = scmp.eq.s32.totalorder %s14, 0
      %p103 = por %p101, %p102
      %p104 = scmp.ne.s32.totalorder %s90, %s91
      %p105 = scmp.eq.s32.totalorder %s15, 1
      %p106 = por %p104, %p105
      %p108 = scmp.ne.s32.totalorder %s91, %s107
      %p109 = scmp.eq.s32.totalorder %s15, 0
      %p110 = por %p108, %p109
      %p111 = scmp.le.s32.totalorder 1, %s9
      %p112 = scmp.lt.s32.totalorder %s9, 3
      %p113 = pnand %p111, %p112
      %p114 = pneg %p113
      // Predicated region
      $region9: #{lenet_forward.4} parent=5 // pred_check
        _
      $region10: #{lenet_forward.4} parent=5 // pred_check_branch
        %116 = sbr.rel (%p113) target = $region12
      $region11: #{lenet_forward.4} parent=5 // pred_region
        %s117 = ssub.s32 %s9, 1
        // Predicated region
        $region13: #{lenet_forward.4} parent=11 // pred_check
          %p118 = pneg %p56
        $region14: #{lenet_forward.4} parent=11 // pred_check_branch
          %120 = sbr.rel (%p118) target = $region16
        $region15: #{lenet_forward.4} parent=11 // pred_region
          _
        $region16: #{lenet_forward.4} parent=11 // pred_fallthru
          _
        // Predicated region
        $region17: #{lenet_forward.4} parent=11 // pred_check
          %p121 = pneg %p77
        $region18: #{lenet_forward.4} parent=11 // pred_check_branch
          %123 = sbr.rel (%p121) target = $region20
        $region19: #{lenet_forward.4} parent=11 // pred_region
          _
        $region20: #{lenet_forward.4} parent=11 // pred_fallthru
          _
      $region12: #{lenet_forward.4} parent=5 // pred_fallthru
        _
      %p124 = scmp.lt.s32.totalorder %s9, 2
      // Predicated region
      $region21: #{lenet_forward.4} parent=5 // pred_check
        %p125 = pneg %p124
      $region22: #{lenet_forward.4} parent=5 // pred_check_branch
        %127 = sbr.rel (%p125) target = $region24
      $region23: #{lenet_forward.4} parent=5 // pred_region
        // Predicated region
        $region25: #{lenet_forward.4} parent=23 // pred_check
          %p128 = pneg %p29
        $region26: #{lenet_forward.4} parent=23 // pred_check_branch
          %130 = sbr.rel (%p128) target = $region28
        $region27: #{lenet_forward.4} parent=23 // pred_region
          %s131 = sand.u32 %s19, 1
          %s132 = sand.u32 %s19, 1
          %s133 = smul.addr %s132, 128
          %s134 = scalar_lea.vmem [#allocation2], %s133
          %s135 = smul.u32 2, %s9
          %s136 = smul.addr %s135, 4
          %s137 = smul.addr %s136, 4
          %s138 = scalar_lea.vmem %s0, %s137
          // Predicated region
          $region29: #{lenet_forward.4} parent=27 // pred_check
            _
          $region30: #{lenet_forward.4} parent=27 // pred_check_branch
            %140 = sbr.rel (0) target = $region32
          $region31: #{lenet_forward.4} parent=27 // pred_region
            // Predicated region
            $region33: #{lenet_forward.4} parent=31 // pred_check
              _
            $region34: #{lenet_forward.4} parent=31 // pred_check_branch
              %142 = sbr.rel (0) target = $region36
            $region35: #{lenet_forward.4} parent=31 // pred_region
              loop: start=0, step=1, limit=1
              $region37: #{lenet_forward.4} parent=35 // loop_pre_header
                _
              $region38: #{lenet_forward.4} parent=35 // loop_header
                %s144 = sphi 0, %s148
                %p145 = scmp.ge.s32.totalorder %s144, 1
                %s149 = sphi %s138, %s138
                %s150 = sphi %s134, %s134
              $region39: #{lenet_forward.4} parent=35 // loop_header_branch
                %147 = sbr.rel (%p145) target = $region43
              $region40: #{lenet_forward.4} parent=35 // loop_body
                %v151 = vld [vmem:[%s149] sm:$0xff]
                %152 = vst [vmem:[%s150] sm:$0xff] %v151
                %v153 = vld [vmem:[%s149 + $0x8] sm:$0xff]
                %154 = vst [vmem:[%s150 + $0x8] sm:$0xff] %v153
                %v155 = vld [vmem:[%s149 + $0x10] sm:$0xff]
                %156 = vst [vmem:[%s150 + $0x10] sm:$0xff] %v155
                %v157 = vld [vmem:[%s149 + $0x18] sm:$0xff]
                %158 = vst [vmem:[%s150 + $0x18] sm:$0xff] %v157
                %v159 = vld [vmem:[%s149 + $0x40] sm:$0xff]
                %160 = vst [vmem:[%s150 + $0x20] sm:$0xff] %v159
                %v161 = vld [vmem:[%s149 + $0x48] sm:$0xff]
                %162 = vst [vmem:[%s150 + $0x28] sm:$0xff] %v161
                %v163 = vld [vmem:[%s149 + $0x50] sm:$0xff]
                %164 = vst [vmem:[%s150 + $0x30] sm:$0xff] %v163
                %v165 = vld [vmem:[%s149 + $0x58] sm:$0xff]
                %166 = vst [vmem:[%s150 + $0x38] sm:$0xff] %v165
                %v167 = vld [vmem:[%s149 + $0x80] sm:$0xff]
                %168 = vst [vmem:[%s150 + $0x40] sm:$0xff] %v167
                %v169 = vld [vmem:[%s149 + $0x88] sm:$0xff]
                %170 = vst [vmem:[%s150 + $0x48] sm:$0xff] %v169
                %v171 = vld [vmem:[%s149 + $0x90] sm:$0xff]
                %172 = vst [vmem:[%s150 + $0x50] sm:$0xff] %v171
                %v173 = vld [vmem:[%s149 + $0x98] sm:$0xff]
                %174 = vst [vmem:[%s150 + $0x58] sm:$0xff] %v173
                %v175 = vld [vmem:[%s149 + $0xc0] sm:$0xff]
                %176 = vst [vmem:[%s150 + $0x60] sm:$0xff] %v175
                %v177 = vld [vmem:[%s149 + $0xc8] sm:$0xff]
                %178 = vst [vmem:[%s150 + $0x68] sm:$0xff] %v177
                %v179 = vld [vmem:[%s149 + $0xd0] sm:$0xff]
                %180 = vst [vmem:[%s150 + $0x70] sm:$0xff] %v179
                %v181 = vld [vmem:[%s149 + $0xd8] sm:$0xff]
                %182 = vst [vmem:[%s150 + $0x78] sm:$0xff] %v181
              $region41: #{lenet_forward.4} parent=35 // loop_footer
                %s148 = sadd.s32 1, %s144
              $region42: #{lenet_forward.4} parent=35 // loop_footer_branch
                %143 = sbr.rel target = $region38
              $region43: #{lenet_forward.4} parent=35 // loop_exit
                _
            $region36: #{lenet_forward.4} parent=31 // pred_fallthru
              _
            // Predicated region
            $region44: #{lenet_forward.4} parent=31 // pred_check
              _
            $region45: #{lenet_forward.4} parent=31 // pred_check_branch
              %184 = sbr.rel target = $region47
            $region46: #{lenet_forward.4} parent=31 // pred_region
              _
            $region47: #{lenet_forward.4} parent=31 // pred_fallthru
              _
          $region32: #{lenet_forward.4} parent=27 // pred_fallthru
            _
          %185 = vnop
        $region28: #{lenet_forward.4} parent=23 // pred_fallthru
          _
      $region24: #{lenet_forward.4} parent=5 // pred_fallthru
        _
      %p186 = scmp.le.s32.totalorder 1, %s9
      %p187 = scmp.lt.s32.totalorder %s9, 3
      %p188 = pnand %p186, %p187
      %p189 = pneg %p188
      // Predicated region
      $region48: #{lenet_forward.4} parent=5 // pred_check
        _
      $region49: #{lenet_forward.4} parent=5 // pred_check_branch
        %191 = sbr.rel (%p188) target = $region51
      $region50: #{lenet_forward.4} parent=5 // pred_region
        %s192 = ssub.s32 %s9, 1
        %s193 = sand.u32 %s22, 1
        %s194 = sand.u32 %s22, 1
        %s195 = smul.addr %s194, 128
        %s196 = scalar_lea.vmem [#allocation2], %s195
        // Predicated region
        $region52: #{lenet_forward.4} parent=50 // pred_check
          %p197 = pneg %p35
        $region53: #{lenet_forward.4} parent=50 // pred_check_branch
          %199 = sbr.rel (%p197) target = $region55
        $region54: #{lenet_forward.4} parent=50 // pred_region
          _
        $region55: #{lenet_forward.4} parent=50 // pred_fallthru
          _
        %s200 = sand.u32 %s22, 1
        %s201 = sand.u32 %s22, 1
        %s202 = smul.addr %s201, 128
        %s203 = scalar_lea.vmem [#allocation2], %s202
        %p204 = pneg %p35
        %p205 = pneg %p32
        %p206 = pneg %p56
        %p207 = pneg %p53
        %p208 = pneg %p77
        %p209 = pneg %p74
        %p210 = pneg %p103
        %p211 = pneg %p100
        %s212 = smul.u32 2, %s14
        %p213 = scmp.lt.s32.totalorder %s212, 3
        %s214 = scalar_select %p213, %s212, 3
        %s215 = smul.addr %s214, 4
        %s216 = scalar_lea.vmem %s3, %s215
        %s217 = smul.u32 2, %s14
        %s218 = smul.u32 2, %s14
        %p219 = scmp.lt.s32.totalorder %s218, 3
        %s220 = scalar_select %p219, %s218, 3
        %s221 = smul.addr %s220, 4
        %s222 = scalar_lea.vmem %s3, %s221
        %s223 = smul.u32 2, %s14
        %v225 = vld [vmem:[%s1] sm:$0xf]
        %v226 = vld [vmem:[%s1 + $0x4] sm:$0xf]
        %v227 = vld [vmem:[%s1 + $0x8] sm:$0xf]
        %v228 = vld [vmem:[%s1 + $0xc] sm:$0xf]
        %v229 = vld [vmem:[%s1 + $0x10] sm:$0xf]
        %v230 = vld [vmem:[%s1 + $0x14] sm:$0xf]
        %v231 = vld [vmem:[%s1 + $0x18] sm:$0xf]
        %v232 = vld [vmem:[%s1 + $0x1c] sm:$0xf]
        %v233 = vld [vmem:[%s1 + $0x20] sm:$0xf]
        %v234 = vld [vmem:[%s1 + $0x24] sm:$0xf]
        %v235 = vld [vmem:[%s1 + $0x28] sm:$0xf]
        %v236 = vld [vmem:[%s1 + $0x2c] sm:$0xf]
        %v237 = vld [vmem:[%s1 + $0x30] sm:$0xf]
        %v238 = vld [vmem:[%s1 + $0x34] sm:$0xf]
        %v239 = vld [vmem:[%s1 + $0x38] sm:$0xf]
        %v240 = vld [vmem:[%s1 + $0x3c] sm:$0xf]
        %v241 = vld [vmem:[%s1 + $0x40] sm:$0xf]
        %v242 = vld [vmem:[%s1 + $0x44] sm:$0xf]
        %v243 = vld [vmem:[%s1 + $0x48] sm:$0xf]
        %v244 = vld [vmem:[%s1 + $0x4c] sm:$0xf]
        %v245 = vld [vmem:[%s1 + $0x50] sm:$0xf]
        %v246 = vld [vmem:[%s1 + $0x54] sm:$0xf]
        %v247 = vld [vmem:[%s1 + $0x58] sm:$0xf]
        %v248 = vld [vmem:[%s1 + $0x5c] sm:$0xf]
        %v249 = vld [vmem:[%s1 + $0x60] sm:$0xf]
        %v250 = vld [vmem:[%s1 + $0x64] sm:$0xf]
        %v251 = vld [vmem:[%s1 + $0x68] sm:$0xf]
        %v252 = vld [vmem:[%s1 + $0x6c] sm:$0xf]
        %v253 = vld [vmem:[%s1 + $0x70] sm:$0xf]
        %v254 = vld [vmem:[%s1 + $0x74] sm:$0xf]
        %v255 = vld [vmem:[%s1 + $0x78] sm:$0xf]
        %v256 = vld [vmem:[%s1 + $0x7c] sm:$0xf]
        %v257 = vld [vmem:[%s1 + $0x80] sm:$0xf]
        %v258 = vld [vmem:[%s1 + $0x84] sm:$0xf]
        %v259 = vld [vmem:[%s1 + $0x88] sm:$0xf]
        %v260 = vld [vmem:[%s1 + $0x8c] sm:$0xf]
        %v261 = vld [vmem:[%s1 + $0x90] sm:$0xf]
        %v262 = vld [vmem:[%s1 + $0x94] sm:$0xf]
        %v263 = vld [vmem:[%s1 + $0x98] sm:$0xf]
        %v264 = vld [vmem:[%s1 + $0x9c] sm:$0xf]
        %v265 = vld [vmem:[%s1 + $0xa0] sm:$0xf]
        %v266 = vld [vmem:[%s1 + $0xa4] sm:$0xf]
        %v267 = vld [vmem:[%s1 + $0xa8] sm:$0xf]
        %v268 = vld [vmem:[%s1 + $0xac] sm:$0xf]
        %v269 = vld [vmem:[%s1 + $0xb0] sm:$0xf]
        %v270 = vld [vmem:[%s1 + $0xb4] sm:$0xf]
        %v271 = vld [vmem:[%s1 + $0xb8] sm:$0xf]
        %v272 = vld [vmem:[%s1 + $0xbc] sm:$0xf]
        %v273 = vld [vmem:[%s1 + $0xc0] sm:$0xf]
        %v274 = vld [vmem:[%s1 + $0xc4] sm:$0xf]
        %v275 = vld [vmem:[%s1 + $0xc8] sm:$0xf]
        %v276 = vld [vmem:[%s1 + $0xcc] sm:$0xf]
        %v277 = vld [vmem:[%s1 + $0xd0] sm:$0xf]
        %v278 = vld [vmem:[%s1 + $0xd4] sm:$0xf]
        %v279 = vld [vmem:[%s1 + $0xd8] sm:$0xf]
        %v280 = vld [vmem:[%s1 + $0xdc] sm:$0xf]
        %v281 = vld [vmem:[%s1 + $0xe0] sm:$0xf]
        %v282 = vld [vmem:[%s1 + $0xe4] sm:$0xf]
        %v283 = vld [vmem:[%s1 + $0xe8] sm:$0xf]
        %v284 = vld [vmem:[%s1 + $0xec] sm:$0xf]
        %v285 = vld [vmem:[%s1 + $0xf0] sm:$0xf]
        %v286 = vld [vmem:[%s1 + $0xf4] sm:$0xf]
        %v287 = vld [vmem:[%s1 + $0xf8] sm:$0xf]
        %v288 = vld [vmem:[%s1 + $0xfc] sm:$0xf]
        %v289 = vld [vmem:[%s196] sm:$0xff]
        %v290 = vld [vmem:[%s196 + $0x8] sm:$0xff]
        %v291 = vld [vmem:[%s196 + $0x10] sm:$0xff]
        %v292 = vld [vmem:[%s196 + $0x18] sm:$0xff]
        %v297 = vunpack.c.l.b16 %v289
        %v298 = vunpack.c.h.b16 %v289
        %v299 = vunpack.c.l.b16 %v290
        %v300 = vunpack.c.h.b16 %v290
        %v301 = vunpack.c.l.b16 %v291
        %v302 = vunpack.c.h.b16 %v291
        %v303 = vunpack.c.l.b16 %v292
        %v304 = vunpack.c.h.b16 %v292
        %v305 = vpack.c.b16 %v301, %v297
        %v306 = vpack.c.b16 %v302, %v298
        %v307 = vpack.c.b16 %v303, %v299
        %v308 = vpack.c.b16 %v304, %v300
        %v377 = vunpack.c.l.b16 %v225
        %v378 = vunpack.c.l.b16 %v226
        %v379 = vunpack.c.l.b16 %v227
        %v380 = vunpack.c.l.b16 %v228
        %v381 = vunpack.c.l.b16 %v229
        %v382 = vunpack.c.l.b16 %v230
        %v383 = vunpack.c.l.b16 %v231
        %v384 = vunpack.c.l.b16 %v232
        %v385 = vunpack.c.l.b16 %v233
        %v386 = vunpack.c.l.b16 %v234
        %v387 = vunpack.c.l.b16 %v235
        %v388 = vunpack.c.l.b16 %v236
        %v389 = vunpack.c.l.b16 %v237
        %v390 = vunpack.c.l.b16 %v238
        %v391 = vunpack.c.l.b16 %v239
        %v392 = vunpack.c.l.b16 %v240
        %v393 = vunpack.c.l.b16 %v241
        %v394 = vunpack.c.l.b16 %v242
        %v395 = vunpack.c.l.b16 %v243
        %v396 = vunpack.c.l.b16 %v244
        %v397 = vunpack.c.l.b16 %v245
        %v398 = vunpack.c.l.b16 %v246
        %v399 = vunpack.c.l.b16 %v247
        %v400 = vunpack.c.l.b16 %v248
        %v401 = vunpack.c.l.b16 %v249
        %v402 = vunpack.c.l.b16 %v250
        %v403 = vunpack.c.l.b16 %v251
        %v404 = vunpack.c.l.b16 %v252
        %v405 = vunpack.c.l.b16 %v253
        %v406 = vunpack.c.l.b16 %v254
        %v407 = vunpack.c.l.b16 %v255
        %v408 = vunpack.c.l.b16 %v256
        %v409 = vunpack.c.l.b16 %v257
        %v410 = vunpack.c.l.b16 %v258
        %v411 = vunpack.c.l.b16 %v259
        %v412 = vunpack.c.l.b16 %v260
        %v413 = vunpack.c.l.b16 %v261
        %v414 = vunpack.c.l.b16 %v262
        %v415 = vunpack.c.l.b16 %v263
        %v416 = vunpack.c.l.b16 %v264
        %v417 = vunpack.c.l.b16 %v265
        %v418 = vunpack.c.l.b16 %v266
        %v419 = vunpack.c.l.b16 %v267
        %v420 = vunpack.c.l.b16 %v268
        %v421 = vunpack.c.l.b16 %v269
        %v422 = vunpack.c.l.b16 %v270
        %v423 = vunpack.c.l.b16 %v271
        %v424 = vunpack.c.l.b16 %v272
        %v425 = vunpack.c.l.b16 %v273
        %v426 = vunpack.c.l.b16 %v274
        %v427 = vunpack.c.l.b16 %v275
        %v428 = vunpack.c.l.b16 %v276
        %v429 = vunpack.c.l.b16 %v277
        %v430 = vunpack.c.l.b16 %v278
        %v431 = vunpack.c.l.b16 %v279
        %v432 = vunpack.c.l.b16 %v280
        %v433 = vunpack.c.l.b16 %v281
        %v434 = vunpack.c.l.b16 %v282
        %v435 = vunpack.c.l.b16 %v283
        %v436 = vunpack.c.l.b16 %v284
        %v437 = vunpack.c.l.b16 %v285
        %v438 = vunpack.c.l.b16 %v286
        %v439 = vunpack.c.l.b16 %v287
        %v440 = vunpack.c.l.b16 %v288
        %v441 = vpack.c.b16 %v378, %v377
        %v442 = vpack.c.b16 %v380, %v379
        %v443 = vpack.c.b16 %v382, %v381
        %v444 = vpack.c.b16 %v384, %v383
        %v445 = vpack.c.b16 %v386, %v385
        %v446 = vpack.c.b16 %v388, %v387
        %v447 = vpack.c.b16 %v390, %v389
        %v448 = vpack.c.b16 %v392, %v391
        %v449 = vpack.c.b16 %v394, %v393
        %v450 = vpack.c.b16 %v396, %v395
        %v451 = vpack.c.b16 %v398, %v397
        %v452 = vpack.c.b16 %v400, %v399
        %v453 = vpack.c.b16 %v402, %v401
        %v454 = vpack.c.b16 %v404, %v403
        %v455 = vpack.c.b16 %v406, %v405
        %v456 = vpack.c.b16 %v408, %v407
        %v457 = vpack.c.b16 %v410, %v409
        %v458 = vpack.c.b16 %v412, %v411
        %v459 = vpack.c.b16 %v414, %v413
        %v460 = vpack.c.b16 %v416, %v415
        %v461 = vpack.c.b16 %v418, %v417
        %v462 = vpack.c.b16 %v420, %v419
        %v463 = vpack.c.b16 %v422, %v421
        %v464 = vpack.c.b16 %v424, %v423
        %v465 = vpack.c.b16 %v426, %v425
        %v466 = vpack.c.b16 %v428, %v427
        %v467 = vpack.c.b16 %v430, %v429
        %v468 = vpack.c.b16 %v432, %v431
        %v469 = vpack.c.b16 %v434, %v433
        %v470 = vpack.c.b16 %v436, %v435
        %v471 = vpack.c.b16 %v438, %v437
        %v472 = vpack.c.b16 %v440, %v439
        %505 = vmatprep.subr.bf16.mxu0 0
        %506 = vmatpush1.bf16.msra.mxu0 %v441
        %507 = vmatprep.subr.bf16.mxu0 0
        %508 = vmatpush1.bf16.msra.mxu0 %v442
        %509 = vmatprep.subr.bf16.mxu0 0
        %510 = vmatpush1.bf16.msra.mxu0 %v443
        %511 = vmatprep.subr.bf16.mxu0 0
        %512 = vmatpush1.bf16.msra.mxu0 %v444
        %513 = vmatprep.subr.bf16.mxu0 0
        %514 = vmatpush1.bf16.msra.mxu0 %v445
        %515 = vmatprep.subr.bf16.mxu0 0
        %516 = vmatpush1.bf16.msra.mxu0 %v446
        %517 = vmatprep.subr.bf16.mxu0 0
        %518 = vmatpush1.bf16.msra.mxu0 %v447
        %519 = vmatprep.subr.bf16.mxu0 0
        %520 = vmatpush1.bf16.msra.mxu0 %v448
        %521 = vmatprep.subr.bf16.mxu0 0
        %522 = vmatpush1.bf16.msra.mxu0 %v449
        %523 = vmatprep.subr.bf16.mxu0 0
        %524 = vmatpush1.bf16.msra.mxu0 %v450
        %525 = vmatprep.subr.bf16.mxu0 0
        %526 = vmatpush1.bf16.msra.mxu0 %v451
        %527 = vmatprep.subr.bf16.mxu0 0
        %528 = vmatpush1.bf16.msra.mxu0 %v452
        %529 = vmatprep.subr.bf16.mxu0 0
        %530 = vmatpush1.bf16.msra.mxu0 %v453
        %531 = vmatprep.subr.bf16.mxu0 0
        %532 = vmatpush1.bf16.msra.mxu0 %v454
        %533 = vmatprep.subr.bf16.mxu0 0
        %534 = vmatpush1.bf16.msra.mxu0 %v455
        %535 = vmatprep.subr.bf16.mxu0 0
        %536 = vmatpush1.bf16.msra.mxu0 %v456
        %537 = vmatprep.mubr.bf16.mxu0 %v306
        %538 = vmatmul.mubr.bf16.gmra.mrb[0].mxu0 %v305
        %v539 = vpop.f32.mrb[0].mxu0
        %v540 = vadd.f32 0.0, %v539
        %v541 = vpop.f32.mrb[0].mxu0
        %v542 = vpop.f32.mrb[0].mxu0
        %v543 = vadd.f32 0.0, %v542
        %v544 = vpop.f32.mrb[0].mxu0
        %545 = vdwg.mxu0
        %546 = vmatprep.subr.bf16.mxu0 0
        %547 = vmatpush1.bf16.msra.mxu0 %v457
        %548 = vmatprep.subr.bf16.mxu0 0
        %549 = vmatpush1.bf16.msra.mxu0 %v458
        %550 = vmatprep.subr.bf16.mxu0 0
        %551 = vmatpush1.bf16.msra.mxu0 %v459
        %552 = vmatprep.subr.bf16.mxu0 0
        %553 = vmatpush1.bf16.msra.mxu0 %v460
        %554 = vmatprep.subr.bf16.mxu0 0
        %555 = vmatpush1.bf16.msra.mxu0 %v461
        %556 = vmatprep.subr.bf16.mxu0 0
        %557 = vmatpush1.bf16.msra.mxu0 %v462
        %558 = vmatprep.subr.bf16.mxu0 0
        %559 = vmatpush1.bf16.msra.mxu0 %v463
        %560 = vmatprep.subr.bf16.mxu0 0
        %561 = vmatpush1.bf16.msra.mxu0 %v464
        %562 = vmatprep.subr.bf16.mxu0 0
        %563 = vmatpush1.bf16.msra.mxu0 %v465
        %564 = vmatprep.subr.bf16.mxu0 0
        %565 = vmatpush1.bf16.msra.mxu0 %v466
        %566 = vmatprep.subr.bf16.mxu0 0
        %567 = vmatpush1.bf16.msra.mxu0 %v467
        %568 = vmatprep.subr.bf16.mxu0 0
        %569 = vmatpush1.bf16.msra.mxu0 %v468
        %570 = vmatprep.subr.bf16.mxu0 0
        %571 = vmatpush1.bf16.msra.mxu0 %v469
        %572 = vmatprep.subr.bf16.mxu0 0
        %573 = vmatpush1.bf16.msra.mxu0 %v470
        %574 = vmatprep.subr.bf16.mxu0 0
        %575 = vmatpush1.bf16.msra.mxu0 %v471
        %576 = vmatprep.subr.bf16.mxu0 0
        %577 = vmatpush1.bf16.msra.mxu0 %v472
        %578 = vmatprep.mubr.bf16.mxu0 %v308
        %579 = vmatmul.mubr.bf16.gmra.mrb[0].mxu0 %v307
        %v580 = vpop.f32.mrb[0].mxu0
        %v581 = vadd.f32 %v540, %v580
        %v582 = vpop.f32.mrb[0].mxu0
        %v583 = vpop.f32.mrb[0].mxu0
        %v584 = vadd.f32 %v543, %v583
        %v585 = vpop.f32.mrb[0].mxu0
        %586 = vdwg.mxu0
        %s587 = scalar_lea.vmem %s196, 32 [#allocation2]
        %v588 = vld [vmem:[%s587] sm:$0xff]
        %v589 = vld [vmem:[%s587 + $0x8] sm:$0xff]
        %v590 = vld [vmem:[%s587 + $0x10] sm:$0xff]
        %v591 = vld [vmem:[%s587 + $0x18] sm:$0xff]
        %v596 = vunpack.c.l.b16 %v588
        %v597 = vunpack.c.h.b16 %v588
        %v598 = vunpack.c.l.b16 %v589
        %v599 = vunpack.c.h.b16 %v589
        %v600 = vunpack.c.l.b16 %v590
        %v601 = vunpack.c.h.b16 %v590
        %v602 = vunpack.c.l.b16 %v591
        %v603 = vunpack.c.h.b16 %v591
        %v604 = vpack.c.b16 %v600, %v596
        %v605 = vpack.c.b16 %v601, %v597
        %v606 = vpack.c.b16 %v602, %v598
        %v607 = vpack.c.b16 %v603, %v599
        %612 = vmatprep.subr.bf16.mxu0 0
        %613 = vmatpush1.bf16.msra.mxu0 %v441
        %614 = vmatprep.subr.bf16.mxu0 0
        %615 = vmatpush1.bf16.msra.mxu0 %v442
        %616 = vmatprep.subr.bf16.mxu0 0
        %617 = vmatpush1.bf16.msra.mxu0 %v443
        %618 = vmatprep.subr.bf16.mxu0 0
        %619 = vmatpush1.bf16.msra.mxu0 %v444
        %620 = vmatprep.subr.bf16.mxu0 0
        %621 = vmatpush1.bf16.msra.mxu0 %v445
        %622 = vmatprep.subr.bf16.mxu0 0
        %623 = vmatpush1.bf16.msra.mxu0 %v446
        %624 = vmatprep.subr.bf16.mxu0 0
        %625 = vmatpush1.bf16.msra.mxu0 %v447
        %626 = vmatprep.subr.bf16.mxu0 0
        %627 = vmatpush1.bf16.msra.mxu0 %v448
        %628 = vmatprep.subr.bf16.mxu0 0
        %629 = vmatpush1.bf16.msra.mxu0 %v449
        %630 = vmatprep.subr.bf16.mxu0 0
        %631 = vmatpush1.bf16.msra.mxu0 %v450
        %632 = vmatprep.subr.bf16.mxu0 0
        %633 = vmatpush1.bf16.msra.mxu0 %v451
        %634 = vmatprep.subr.bf16.mxu0 0
        %635 = vmatpush1.bf16.msra.mxu0 %v452
        %636 = vmatprep.subr.bf16.mxu0 0
        %637 = vmatpush1.bf16.msra.mxu0 %v453
        %638 = vmatprep.subr.bf16.mxu0 0
        %639 = vmatpush1.bf16.msra.mxu0 %v454
        %640 = vmatprep.subr.bf16.mxu0 0
        %641 = vmatpush1.bf16.msra.mxu0 %v455
        %642 = vmatprep.subr.bf16.mxu0 0
        %643 = vmatpush1.bf16.msra.mxu0 %v456
        %644 = vmatprep.mubr.bf16.mxu0 %v605
        %645 = vmatmul.mubr.bf16.gmra.mrb[0].mxu0 %v604
        %v646 = vpop.f32.mrb[0].mxu0
        %v647 = vadd.f32 0.0, %v646
        %v648 = vpop.f32.mrb[0].mxu0
        %v649 = vpop.f32.mrb[0].mxu0
        %v650 = vadd.f32 0.0, %v649
        %v651 = vpop.f32.mrb[0].mxu0
        %652 = vdwg.mxu0
        %653 = vmatprep.subr.bf16.mxu0 0
        %654 = vmatpush1.bf16.msra.mxu0 %v457
        %655 = vmatprep.subr.bf16.mxu0 0
        %656 = vmatpush1.bf16.msra.mxu0 %v458
        %657 = vmatprep.subr.bf16.mxu0 0
        %658 = vmatpush1.bf16.msra.mxu0 %v459
        %659 = vmatprep.subr.bf16.mxu0 0
        %660 = vmatpush1.bf16.msra.mxu0 %v460
        %661 = vmatprep.subr.bf16.mxu0 0
        %662 = vmatpush1.bf16.msra.mxu0 %v461
        %663 = vmatprep.subr.bf16.mxu0 0
        %664 = vmatpush1.bf16.msra.mxu0 %v462
        %665 = vmatprep.subr.bf16.mxu0 0
        %666 = vmatpush1.bf16.msra.mxu0 %v463
        %667 = vmatprep.subr.bf16.mxu0 0
        %668 = vmatpush1.bf16.msra.mxu0 %v464
        %669 = vmatprep.subr.bf16.mxu0 0
        %670 = vmatpush1.bf16.msra.mxu0 %v465
        %671 = vmatprep.subr.bf16.mxu0 0
        %672 = vmatpush1.bf16.msra.mxu0 %v466
        %673 = vmatprep.subr.bf16.mxu0 0
        %674 = vmatpush1.bf16.msra.mxu0 %v467
        %675 = vmatprep.subr.bf16.mxu0 0
        %676 = vmatpush1.bf16.msra.mxu0 %v468
        %677 = vmatprep.subr.bf16.mxu0 0
        %678 = vmatpush1.bf16.msra.mxu0 %v469
        %679 = vmatprep.subr.bf16.mxu0 0
        %680 = vmatpush1.bf16.msra.mxu0 %v470
        %681 = vmatprep.subr.bf16.mxu0 0
        %682 = vmatpush1.bf16.msra.mxu0 %v471
        %683 = vmatprep.subr.bf16.mxu0 0
        %684 = vmatpush1.bf16.msra.mxu0 %v472
        %685 = vmatprep.mubr.bf16.mxu0 %v607
        %686 = vmatmul.mubr.bf16.gmra.mrb[0].mxu0 %v606
        %v687 = vpop.f32.mrb[0].mxu0
        %v688 = vadd.f32 %v647, %v687
        %v689 = vpop.f32.mrb[0].mxu0
        %v690 = vpop.f32.mrb[0].mxu0
        %v691 = vadd.f32 %v650, %v690
        %v692 = vpop.f32.mrb[0].mxu0
        %693 = vdwg.mxu0
        %v694 = vmax.f32 %v581, %v688
        %v695 = vmax.f32 %v584, %v691
        %s696 = scalar_lea.vmem %s196, 64 [#allocation2]
        %v697 = vld [vmem:[%s696] sm:$0xff]
        %v698 = vld [vmem:[%s696 + $0x8] sm:$0xff]
        %v699 = vld [vmem:[%s696 + $0x10] sm:$0xff]
        %v700 = vld [vmem:[%s696 + $0x18] sm:$0xff]
        %v705 = vunpack.c.l.b16 %v697
        %v706 = vunpack.c.h.b16 %v697
        %v707 = vunpack.c.l.b16 %v698
        %v708 = vunpack.c.h.b16 %v698
        %v709 = vunpack.c.l.b16 %v699
        %v710 = vunpack.c.h.b16 %v699
        %v711 = vunpack.c.l.b16 %v700
        %v712 = vunpack.c.h.b16 %v700
        %v713 = vpack.c.b16 %v709, %v705
        %v714 = vpack.c.b16 %v710, %v706
        %v715 = vpack.c.b16 %v711, %v707
        %v716 = vpack.c.b16 %v712, %v708
        %721 = vmatprep.subr.bf16.mxu0 0
        %722 = vmatpush1.bf16.msra.mxu0 %v441
        %723 = vmatprep.subr.bf16.mxu0 0
        %724 = vmatpush1.bf16.msra.mxu0 %v442
        %725 = vmatprep.subr.bf16.mxu0 0
        %726 = vmatpush1.bf16.msra.mxu0 %v443
        %727 = vmatprep.subr.bf16.mxu0 0
        %728 = vmatpush1.bf16.msra.mxu0 %v444
        %729 = vmatprep.subr.bf16.mxu0 0
        %730 = vmatpush1.bf16.msra.mxu0 %v445
        %731 = vmatprep.subr.bf16.mxu0 0
        %732 = vmatpush1.bf16.msra.mxu0 %v446
        %733 = vmatprep.subr.bf16.mxu0 0
        %734 = vmatpush1.bf16.msra.mxu0 %v447
        %735 = vmatprep.subr.bf16.mxu0 0
        %736 = vmatpush1.bf16.msra.mxu0 %v448
        %737 = vmatprep.subr.bf16.mxu0 0
        %738 = vmatpush1.bf16.msra.mxu0 %v449
        %739 = vmatprep.subr.bf16.mxu0 0
        %740 = vmatpush1.bf16.msra.mxu0 %v450
        %741 = vmatprep.subr.bf16.mxu0 0
        %742 = vmatpush1.bf16.msra.mxu0 %v451
        %743 = vmatprep.subr.bf16.mxu0 0
        %744 = vmatpush1.bf16.msra.mxu0 %v452
        %745 = vmatprep.subr.bf16.mxu0 0
        %746 = vmatpush1.bf16.msra.mxu0 %v453
        %747 = vmatprep.subr.bf16.mxu0 0
        %748 = vmatpush1.bf16.msra.mxu0 %v454
        %749 = vmatprep.subr.bf16.mxu0 0
        %750 = vmatpush1.bf16.msra.mxu0 %v455
        %751 = vmatprep.subr.bf16.mxu0 0
        %752 = vmatpush1.bf16.msra.mxu0 %v456
        %753 = vmatprep.mubr.bf16.mxu0 %v714
        %754 = vmatmul.mubr.bf16.gmra.mrb[0].mxu0 %v713
        %v755 = vpop.f32.mrb[0].mxu0
        %v756 = vadd.f32 0.0, %v755
        %v757 = vpop.f32.mrb[0].mxu0
        %v758 = vpop.f32.mrb[0].mxu0
        %v759 = vadd.f32 0.0, %v758
        %v760 = vpop.f32.mrb[0].mxu0
        %761 = vdwg.mxu0
        %762 = vmatprep.subr.bf16.mxu0 0
        %763 = vmatpush1.bf16.msra.mxu0 %v457
        %764 = vmatprep.subr.bf16.mxu0 0
        %765 = vmatpush1.bf16.msra.mxu0 %v458
        %766 = vmatprep.subr.bf16.mxu0 0
        %767 = vmatpush1.bf16.msra.mxu0 %v459
        %768 = vmatprep.subr.bf16.mxu0 0
        %769 = vmatpush1.bf16.msra.mxu0 %v460
        %770 = vmatprep.subr.bf16.mxu0 0
        %771 = vmatpush1.bf16.msra.mxu0 %v461
        %772 = vmatprep.subr.bf16.mxu0 0
        %773 = vmatpush1.bf16.msra.mxu0 %v462
        %774 = vmatprep.subr.bf16.mxu0 0
        %775 = vmatpush1.bf16.msra.mxu0 %v463
        %776 = vmatprep.subr.bf16.mxu0 0
        %777 = vmatpush1.bf16.msra.mxu0 %v464
        %778 = vmatprep.subr.bf16.mxu0 0
        %779 = vmatpush1.bf16.msra.mxu0 %v465
        %780 = vmatprep.subr.bf16.mxu0 0
        %781 = vmatpush1.bf16.msra.mxu0 %v466
        %782 = vmatprep.subr.bf16.mxu0 0
        %783 = vmatpush1.bf16.msra.mxu0 %v467
        %784 = vmatprep.subr.bf16.mxu0 0
        %785 = vmatpush1.bf16.msra.mxu0 %v468
        %786 = vmatprep.subr.bf16.mxu0 0
        %787 = vmatpush1.bf16.msra.mxu0 %v469
        %788 = vmatprep.subr.bf16.mxu0 0
        %789 = vmatpush1.bf16.msra.mxu0 %v470
        %790 = vmatprep.subr.bf16.mxu0 0
        %791 = vmatpush1.bf16.msra.mxu0 %v471
        %792 = vmatprep.subr.bf16.mxu0 0
        %793 = vmatpush1.bf16.msra.mxu0 %v472
        %794 = vmatprep.mubr.bf16.mxu0 %v716
        %795 = vmatmul.mubr.bf16.gmra.mrb[0].mxu0 %v715
        %v796 = vpop.f32.mrb[0].mxu0
        %v797 = vadd.f32 %v756, %v796
        %v798 = vpop.f32.mrb[0].mxu0
        %v799 = vpop.f32.mrb[0].mxu0
        %v800 = vadd.f32 %v759, %v799
        %v801 = vpop.f32.mrb[0].mxu0
        %802 = vdwg.mxu0
        %v803 = vmax.f32 %v694, %v797
        %v804 = vmax.f32 %v695, %v800
        %s805 = scalar_lea.vmem %s196, 96 [#allocation2]
        %v806 = vld [vmem:[%s805] sm:$0xff]
        %v807 = vld [vmem:[%s805 + $0x8] sm:$0xff]
        %v808 = vld [vmem:[%s805 + $0x10] sm:$0xff]
        %v809 = vld [vmem:[%s805 + $0x18] sm:$0xff]
        %v814 = vunpack.c.l.b16 %v806
        %v815 = vunpack.c.h.b16 %v806
        %v816 = vunpack.c.l.b16 %v807
        %v817 = vunpack.c.h.b16 %v807
        %v818 = vunpack.c.l.b16 %v808
        %v819 = vunpack.c.h.b16 %v808
        %v820 = vunpack.c.l.b16 %v809
        %v821 = vunpack.c.h.b16 %v809
        %v822 = vpack.c.b16 %v818, %v814
        %v823 = vpack.c.b16 %v819, %v815
        %v824 = vpack.c.b16 %v820, %v816
        %v825 = vpack.c.b16 %v821, %v817
        %830 = vmatprep.subr.bf16.mxu0 0
        %831 = vmatpush1.bf16.msra.mxu0 %v441
        %832 = vmatprep.subr.bf16.mxu0 0
        %833 = vmatpush1.bf16.msra.mxu0 %v442
        %834 = vmatprep.subr.bf16.mxu0 0
        %835 = vmatpush1.bf16.msra.mxu0 %v443
        %836 = vmatprep.subr.bf16.mxu0 0
        %837 = vmatpush1.bf16.msra.mxu0 %v444
        %838 = vmatprep.subr.bf16.mxu0 0
        %839 = vmatpush1.bf16.msra.mxu0 %v445
        %840 = vmatprep.subr.bf16.mxu0 0
        %841 = vmatpush1.bf16.msra.mxu0 %v446
        %842 = vmatprep.subr.bf16.mxu0 0
        %843 = vmatpush1.bf16.msra.mxu0 %v447
        %844 = vmatprep.subr.bf16.mxu0 0
        %845 = vmatpush1.bf16.msra.mxu0 %v448
        %846 = vmatprep.subr.bf16.mxu0 0
        %847 = vmatpush1.bf16.msra.mxu0 %v449
        %848 = vmatprep.subr.bf16.mxu0 0
        %849 = vmatpush1.bf16.msra.mxu0 %v450
        %850 = vmatprep.subr.bf16.mxu0 0
        %851 = vmatpush1.bf16.msra.mxu0 %v451
        %852 = vmatprep.subr.bf16.mxu0 0
        %853 = vmatpush1.bf16.msra.mxu0 %v452
        %854 = vmatprep.subr.bf16.mxu0 0
        %855 = vmatpush1.bf16.msra.mxu0 %v453
        %856 = vmatprep.subr.bf16.mxu0 0
        %857 = vmatpush1.bf16.msra.mxu0 %v454
        %858 = vmatprep.subr.bf16.mxu0 0
        %859 = vmatpush1.bf16.msra.mxu0 %v455
        %860 = vmatprep.subr.bf16.mxu0 0
        %861 = vmatpush1.bf16.msra.mxu0 %v456
        %862 = vmatprep.mubr.bf16.mxu0 %v823
        %863 = vmatmul.mubr.bf16.gmra.mrb[0].mxu0 %v822
        %v864 = vpop.f32.mrb[0].mxu0
        %v865 = vadd.f32 0.0, %v864
        %v866 = vpop.f32.mrb[0].mxu0
        %v867 = vpop.f32.mrb[0].mxu0
        %v868 = vadd.f32 0.0, %v867
        %v869 = vpop.f32.mrb[0].mxu0
        %870 = vdwg.mxu0
        %871 = vmatprep.subr.bf16.mxu0 0
        %872 = vmatpush1.bf16.msra.mxu0 %v457
        %873 = vmatprep.subr.bf16.mxu0 0
        %874 = vmatpush1.bf16.msra.mxu0 %v458
        %875 = vmatprep.subr.bf16.mxu0 0
        %876 = vmatpush1.bf16.msra.mxu0 %v459
        %877 = vmatprep.subr.bf16.mxu0 0
        %878 = vmatpush1.bf16.msra.mxu0 %v460
        %879 = vmatprep.subr.bf16.mxu0 0
        %880 = vmatpush1.bf16.msra.mxu0 %v461
        %881 = vmatprep.subr.bf16.mxu0 0
        %882 = vmatpush1.bf16.msra.mxu0 %v462
        %883 = vmatprep.subr.bf16.mxu0 0
        %884 = vmatpush1.bf16.msra.mxu0 %v463
        %885 = vmatprep.subr.bf16.mxu0 0
        %886 = vmatpush1.bf16.msra.mxu0 %v464
        %887 = vmatprep.subr.bf16.mxu0 0
        %888 = vmatpush1.bf16.msra.mxu0 %v465
        %889 = vmatprep.subr.bf16.mxu0 0
        %890 = vmatpush1.bf16.msra.mxu0 %v466
        %891 = vmatprep.subr.bf16.mxu0 0
        %892 = vmatpush1.bf16.msra.mxu0 %v467
        %893 = vmatprep.subr.bf16.mxu0 0
        %894 = vmatpush1.bf16.msra.mxu0 %v468
        %895 = vmatprep.subr.bf16.mxu0 0
        %896 = vmatpush1.bf16.msra.mxu0 %v469
        %897 = vmatprep.subr.bf16.mxu0 0
        %898 = vmatpush1.bf16.msra.mxu0 %v470
        %899 = vmatprep.subr.bf16.mxu0 0
        %900 = vmatpush1.bf16.msra.mxu0 %v471
        %901 = vmatprep.subr.bf16.mxu0 0
        %902 = vmatpush1.bf16.msra.mxu0 %v472
        %903 = vmatprep.mubr.bf16.mxu0 %v825
        %904 = vmatmul.mubr.bf16.gmra.mrb[0].mxu0 %v824
        %v905 = vpop.f32.mrb[0].mxu0
        %v906 = vadd.f32 %v865, %v905
        %v907 = vpop.f32.mrb[0].mxu0
        %v908 = vpop.f32.mrb[0].mxu0
        %v909 = vadd.f32 %v868, %v908
        %v910 = vpop.f32.mrb[0].mxu0
        %911 = vdwg.mxu0
        %v912 = vmax.f32 %v803, %v906
        %v913 = vmax.f32 %v804, %v909
        %v914 = vld [vmem:[%s2] sm:$0x1]
        %v916 = vlaneseq
        %v917 = vshrl.u32 %v916, 7
        %v918 = vsub.s32 0, %v917
        %v919 = vrot.slane %v914, %v918
        %v921 = vadd.f32 %v912, %v919
        %v922 = vadd.f32 %v913, %v919
        %v923 = vmax.f32 %v921, 0.0
        %v924 = vmax.f32 %v922, 0.0
        %v925 = vpack.c.bf16 %v924, %v923
        %v927 = vunpack.c.l.b16 %v925
        %v928 = vunpack.c.h.b16 %v925
        %v929 = vpack.c.b16 %v927, %v927
        %v930 = vpack.c.b16 %v928, %v928
        %933 = vst [vmem:[%s222] sm:$0xf] %v929
        %934 = vst [vmem:[%s222 + $0x4] sm:$0xf] %v930
        %s935 = smul.u32 2, %s14
        %p936 = scmp.lt.s32.totalorder %s935, 3
        %s937 = scalar_select %p936, %s935, 3
        %s938 = smul.addr %s937, 4
        %s939 = scalar_lea.vmem %s3, %s938
        // Predicated region
        $region56: #{lenet_forward.4} parent=50 // pred_check
          %p940 = pneg %p100
        $region57: #{lenet_forward.4} parent=50 // pred_check_branch
          %942 = sbr.rel (%p940) target = $region59
        $region58: #{lenet_forward.4} parent=50 // pred_region
          %s943 = smul.u32 2, %s14
        $region59: #{lenet_forward.4} parent=50 // pred_fallthru
          _
      $region51: #{lenet_forward.4} parent=5 // pred_fallthru
        _
      %p944 = scmp.le.s32.totalorder 2, %s9
      // Predicated region
      $region60: #{lenet_forward.4} parent=5 // pred_check
        %p945 = pneg %p944
      $region61: #{lenet_forward.4} parent=5 // pred_check_branch
        %947 = sbr.rel (%p945) target = $region63
      $region62: #{lenet_forward.4} parent=5 // pred_region
        %s948 = ssub.s32 %s9, 2
        // Predicated region
        $region64: #{lenet_forward.4} parent=62 // pred_check
          %p949 = pneg %p106
        $region65: #{lenet_forward.4} parent=62 // pred_check_branch
          %951 = sbr.rel (%p949) target = $region67
        $region66: #{lenet_forward.4} parent=62 // pred_region
          %s952 = smul.u32 2, %s15
          %p953 = scmp.lt.s32.totalorder %s952, 3
          %s954 = scalar_select %p953, %s952, 3
          %s955 = smul.addr %s954, 4
          %s956 = scalar_lea.vmem %s3, %s955
        $region67: #{lenet_forward.4} parent=62 // pred_fallthru
          _
      $region63: #{lenet_forward.4} parent=5 // pred_fallthru
        _
    $region6: #{lenet_forward.4} parent=1 // loop_footer
      %s13 = sadd.s32 1, %s9
    $region7: #{lenet_forward.4} parent=1 // loop_footer_branch
      %8 = sbr.rel target = $region3
    $region8: #{lenet_forward.4} parent=1 // loop_exit
      _

// kernel: lenet_forward.5
$region0: #{lenet_forward.5}
  #allocation0 [shape = 'u32[]', space=smem, size = 0x4, offset = 0x4, fixed_abs, tag = 'smem constant byte address 0x4 - core index']
  #allocation1 [shape = 'u32[144,128]{1,0:T(1,128)}', space=vmem, size = 0x12000, scoped, tag = 'internal scratch']
  %s0 = inlined_call_operand.vmem [shape: bf16[16,2048], index: 0, kind: input, shape index: {}]
  %s1 = inlined_call_operand.vmem [shape: bf16[2048,512], index: 1, kind: input, shape index: {}]
  %s2 = inlined_call_operand.vmem [shape: f32[1,512], index: 2, kind: input, shape index: {}]
  %s3 = inlined_call_operand.vmem [shape: bf16[512,128], index: 3, kind: input, shape index: {}]
  %s4 = inlined_call_operand.vmem [shape: f32[1,128], index: 4, kind: input, shape index: {}]
  %s5 = inlined_call_operand.vmem [shape: f32[16,128], index: 5, kind: output, shape index: {}]
  %s6 = sld [smem:[#allocation0]]
  $region30: #{lenet_forward.5} parent=0
    _
  %s8 = ssub.s32 1, %s6
  %s9 = scalar_select 0, %s8, %s6
  // Predicated region
  $region2: #{lenet_forward.5} parent=0 // pred_check
    _
  $region3: #{lenet_forward.5} parent=0 // pred_check_branch
    %11 = sbr.rel (0) target = $region5
  $region4: #{lenet_forward.5} parent=0 // pred_region
    _
  $region5: #{lenet_forward.5} parent=0 // pred_fallthru
    _
  // Predicated region
  $region6: #{lenet_forward.5} parent=0 // pred_check
    _
  $region7: #{lenet_forward.5} parent=0 // pred_check_branch
    %13 = sbr.rel (0) target = $region9
  $region8: #{lenet_forward.5} parent=0 // pred_region
    _
  $region9: #{lenet_forward.5} parent=0 // pred_fallthru
    _
  // Predicated region
  $region10: #{lenet_forward.5} parent=0 // pred_check
    _
  $region11: #{lenet_forward.5} parent=0 // pred_check_branch
    %15 = sbr.rel (0) target = $region13
  $region12: #{lenet_forward.5} parent=0 // pred_region
    _
  $region13: #{lenet_forward.5} parent=0 // pred_fallthru
    _
  // Predicated region
  $region14: #{lenet_forward.5} parent=0 // pred_check
    _
  $region15: #{lenet_forward.5} parent=0 // pred_check_branch
    %17 = sbr.rel (0) target = $region17
  $region16: #{lenet_forward.5} parent=0 // pred_region
    _
  $region17: #{lenet_forward.5} parent=0 // pred_fallthru
    _
  // Predicated region
  $region18: #{lenet_forward.5} parent=0 // pred_check
    _
  $region19: #{lenet_forward.5} parent=0 // pred_check_branch
    %19 = sbr.rel (0) target = $region21
  $region20: #{lenet_forward.5} parent=0 // pred_region
    _
  $region21: #{lenet_forward.5} parent=0 // pred_fallthru
    _
  %v21 = vld [vmem:[%s0] sm:$0xff]
  %v22 = vld [vmem:[%s0 + $0x8] sm:$0xff]
  %v23 = vld [vmem:[%s0 + $0x10] sm:$0xff]
  %v24 = vld [vmem:[%s0 + $0x18] sm:$0xff]
  %v25 = vld [vmem:[%s0 + $0x20] sm:$0xff]
  %v26 = vld [vmem:[%s0 + $0x28] sm:$0xff]
  %v27 = vld [vmem:[%s0 + $0x30] sm:$0xff]
  %v28 = vld [vmem:[%s0 + $0x38] sm:$0xff]
  %v29 = vld [vmem:[%s0 + $0x40] sm:$0xff]
  %v30 = vld [vmem:[%s0 + $0x48] sm:$0xff]
  %v31 = vld [vmem:[%s0 + $0x50] sm:$0xff]
  %v32 = vld [vmem:[%s0 + $0x58] sm:$0xff]
  %v33 = vld [vmem:[%s0 + $0x60] sm:$0xff]
  %v34 = vld [vmem:[%s0 + $0x68] sm:$0xff]
  %v35 = vld [vmem:[%s0 + $0x70] sm:$0xff]
  %v36 = vld [vmem:[%s0 + $0x78] sm:$0xff]
  %v37 = vld [vmem:[%s1] sm:$0xff]
  %v38 = vld [vmem:[%s1 + $0x8] sm:$0xff]
  %v39 = vld [vmem:[%s1 + $0x10] sm:$0xff]
  %v40 = vld [vmem:[%s1 + $0x18] sm:$0xff]
  %v41 = vld [vmem:[%s1 + $0x20] sm:$0xff]
  %v42 = vld [vmem:[%s1 + $0x28] sm:$0xff]
  %v43 = vld [vmem:[%s1 + $0x30] sm:$0xff]
  %v44 = vld [vmem:[%s1 + $0x38] sm:$0xff]
  %v45 = vld [vmem:[%s1 + $0x40] sm:$0xff]
  %v46 = vld [vmem:[%s1 + $0x48] sm:$0xff]
  %v47 = vld [vmem:[%s1 + $0x50] sm:$0xff]
  %v48 = vld [vmem:[%s1 + $0x58] sm:$0xff]
  %v49 = vld [vmem:[%s1 + $0x60] sm:$0xff]
  %v50 = vld [vmem:[%s1 + $0x68] sm:$0xff]
  %v51 = vld [vmem:[%s1 + $0x70] sm:$0xff]
  %v52 = vld [vmem:[%s1 + $0x78] sm:$0xff]
  %v53 = vld [vmem:[%s1 + $0x80] sm:$0xff]
  %v54 = vld [vmem:[%s1 + $0x88] sm:$0xff]
  %v55 = vld [vmem:[%s1 + $0x90] sm:$0xff]
  %v56 = vld [vmem:[%s1 + $0x98] sm:$0xff]
  %v57 = vld [vmem:[%s1 + $0xa0] sm:$0xff]
  %v58 = vld [vmem:[%s1 + $0xa8] sm:$0xff]
  %v59 = vld [vmem:[%s1 + $0xb0] sm:$0xff]
  %v60 = vld [vmem:[%s1 + $0xb8] sm:$0xff]
  %v61 = vld [vmem:[%s1 + $0xc0] sm:$0xff]
  %v62 = vld [vmem:[%s1 + $0xc8] sm:$0xff]
  %v63 = vld [vmem:[%s1 + $0xd0] sm:$0xff]
  %v64 = vld [vmem:[%s1 + $0xd8] sm:$0xff]
  %v65 = vld [vmem:[%s1 + $0xe0] sm:$0xff]
  %v66 = vld [vmem:[%s1 + $0xe8] sm:$0xff]
  %v67 = vld [vmem:[%s1 + $0xf0] sm:$0xff]
  %v68 = vld [vmem:[%s1 + $0xf8] sm:$0xff]
  %v69 = vld [vmem:[%s1 + $0x100] sm:$0xff]
  %v70 = vld [vmem:[%s1 + $0x108] sm:$0xff]
  %v71 = vld [vmem:[%s1 + $0x110] sm:$0xff]
  %v72 = vld [vmem:[%s1 + $0x118] sm:$0xff]
  %v73 = vld [vmem:[%s1 + $0x120] sm:$0xff]
  %v74 = vld [vmem:[%s1 + $0x128] sm:$0xff]
  %v75 = vld [vmem:[%s1 + $0x130] sm:$0xff]
  %v76 = vld [vmem:[%s1 + $0x138] sm:$0xff]
  %v77 = vld [vmem:[%s1 + $0x140] sm:$0xff]
  %v78 = vld [vmem:[%s1 + $0x148] sm:$0xff]
  %v79 = vld [vmem:[%s1 + $0x150] sm:$0xff]
  %v80 = vld [vmem:[%s1 + $0x158] sm:$0xff]
  %v81 = vld [vmem:[%s1 + $0x160] sm:$0xff]
  %v82 = vld [vmem:[%s1 + $0x168] sm:$0xff]
  %v83 = vld [vmem:[%s1 + $0x170] sm:$0xff]
  %v84 = vld [vmem:[%s1 + $0x178] sm:$0xff]
  %v85 = vld [vmem:[%s1 + $0x180] sm:$0xff]
  %v86 = vld [vmem:[%s1 + $0x188] sm:$0xff]
  %v87 = vld [vmem:[%s1 + $0x190] sm:$0xff]
  %v88 = vld [vmem:[%s1 + $0x198] sm:$0xff]
  %v89 = vld [vmem:[%s1 + $0x1a0] sm:$0xff]
  %v90 = vld [vmem:[%s1 + $0x1a8] sm:$0xff]
  %v91 = vld [vmem:[%s1 + $0x1b0] sm:$0xff]
  %v92 = vld [vmem:[%s1 + $0x1b8] sm:$0xff]
  %v93 = vld [vmem:[%s1 + $0x1c0] sm:$0xff]
  %v94 = vld [vmem:[%s1 + $0x1c8] sm:$0xff]
  %v95 = vld [vmem:[%s1 + $0x1d0] sm:$0xff]
  %v96 = vld [vmem:[%s1 + $0x1d8] sm:$0xff]
  %v97 = vld [vmem:[%s1 + $0x1e0] sm:$0xff]
  %v98 = vld [vmem:[%s1 + $0x1e8] sm:$0xff]
  %v99 = vld [vmem:[%s1 + $0x1f0] sm:$0xff]
  %v100 = vld [vmem:[%s1 + $0x1f8] sm:$0xff]
  %v101 = vld [vmem:[%s1 + $0x200] sm:$0xff]
  %v102 = vld [vmem:[%s1 + $0x208] sm:$0xff]
  %v103 = vld [vmem:[%s1 + $0x210] sm:$0xff]
  %v104 = vld [vmem:[%s1 + $0x218] sm:$0xff]
  %v105 = vld [vmem:[%s1 + $0x220] sm:$0xff]
  %v106 = vld [vmem:[%s1 + $0x228] sm:$0xff]
  %v107 = vld [vmem:[%s1 + $0x230] sm:$0xff]
  %v108 = vld [vmem:[%s1 + $0x238] sm:$0xff]
  %v109 = vld [vmem:[%s1 + $0x240] sm:$0xff]
  %v110 = vld [vmem:[%s1 + $0x248] sm:$0xff]
  %v111 = vld [vmem:[%s1 + $0x250] sm:$0xff]
  %v112 = vld [vmem:[%s1 + $0x258] sm:$0xff]
  %v113 = vld [vmem:[%s1 + $0x260] sm:$0xff]
  %v114 = vld [vmem:[%s1 + $0x268] sm:$0xff]
  %v115 = vld [vmem:[%s1 + $0x270] sm:$0xff]
  %v116 = vld [vmem:[%s1 + $0x278] sm:$0xff]
  %v117 = vld [vmem:[%s1 + $0x280] sm:$0xff]
  %v118 = vld [vmem:[%s1 + $0x288] sm:$0xff]
  %v119 = vld [vmem:[%s1 + $0x290] sm:$0xff]
  %v120 = vld [vmem:[%s1 + $0x298] sm:$0xff]
  %v121 = vld [vmem:[%s1 + $0x2a0] sm:$0xff]
  %v122 = vld [vmem:[%s1 + $0x2a8] sm:$0xff]
  %v123 = vld [vmem:[%s1 + $0x2b0] sm:$0xff]
  %v124 = vld [vmem:[%s1 + $0x2b8] sm:$0xff]
  %v125 = vld [vmem:[%s1 + $0x2c0] sm:$0xff]
  %v126 = vld [vmem:[%s1 + $0x2c8] sm:$0xff]
  %v127 = vld [vmem:[%s1 + $0x2d0] sm:$0xff]
  %v128 = vld [vmem:[%s1 + $0x2d8] sm:$0xff]
  %v129 = vld [vmem:[%s1 + $0x2e0] sm:$0xff]
  %v130 = vld [vmem:[%s1 + $0x2e8] sm:$0xff]
  %v131 = vld [vmem:[%s1 + $0x2f0] sm:$0xff]
  %v132 = vld [vmem:[%s1 + $0x2f8] sm:$0xff]
  %v133 = vld [vmem:[%s1 + $0x300] sm:$0xff]
  %v134 = vld [vmem:[%s1 + $0x308] sm:$0xff]
  %v135 = vld [vmem:[%s1 + $0x310] sm:$0xff]
  %v136 = vld [vmem:[%s1 + $0x318] sm:$0xff]
  %v137 = vld [vmem:[%s1 + $0x320] sm:$0xff]
  %v138 = vld [vmem:[%s1 + $0x328] sm:$0xff]
  %v139 = vld [vmem:[%s1 + $0x330] sm:$0xff]
  %v140 = vld [vmem:[%s1 + $0x338] sm:$0xff]
  %v141 = vld [vmem:[%s1 + $0x340] sm:$0xff]
  %v142 = vld [vmem:[%s1 + $0x348] sm:$0xff]
  %v143 = vld [vmem:[%s1 + $0x350] sm:$0xff]
  %v144 = vld [vmem:[%s1 + $0x358] sm:$0xff]
  %v145 = vld [vmem:[%s1 + $0x360] sm:$0xff]
  %v146 = vld [vmem:[%s1 + $0x368] sm:$0xff]
  %v147 = vld [vmem:[%s1 + $0x370] sm:$0xff]
  %v148 = vld [vmem:[%s1 + $0x378] sm:$0xff]
  %v149 = vld [vmem:[%s1 + $0x380] sm:$0xff]
  %v150 = vld [vmem:[%s1 + $0x388] sm:$0xff]
  %v151 = vld [vmem:[%s1 + $0x390] sm:$0xff]
  %v152 = vld [vmem:[%s1 + $0x398] sm:$0xff]
  %v153 = vld [vmem:[%s1 + $0x3a0] sm:$0xff]
  %v154 = vld [vmem:[%s1 + $0x3a8] sm:$0xff]
  %v155 = vld [vmem:[%s1 + $0x3b0] sm:$0xff]
  %v156 = vld [vmem:[%s1 + $0x3b8] sm:$0xff]
  %v157 = vld [vmem:[%s1 + $0x3c0] sm:$0xff]
  %v158 = vld [vmem:[%s1 + $0x3c8] sm:$0xff]
  %v159 = vld [vmem:[%s1 + $0x3d0] sm:$0xff]
  %v160 = vld [vmem:[%s1 + $0x3d8] sm:$0xff]
  %v161 = vld [vmem:[%s1 + $0x3e0] sm:$0xff]
  %v162 = vld [vmem:[%s1 + $0x3e8] sm:$0xff]
  %v163 = vld [vmem:[%s1 + $0x3f0] sm:$0xff]
  %v164 = vld [vmem:[%s1 + $0x3f8] sm:$0xff]
  %v165 = vld [vmem:[%s1 + $0x400] sm:$0xff]
  %v166 = vld [vmem:[%s1 + $0x408] sm:$0xff]
  %v167 = vld [vmem:[%s1 + $0x410] sm:$0xff]
  %v168 = vld [vmem:[%s1 + $0x418] sm:$0xff]
  %v169 = vld [vmem:[%s1 + $0x420] sm:$0xff]
  %v170 = vld [vmem:[%s1 + $0x428] sm:$0xff]
  %v171 = vld [vmem:[%s1 + $0x430] sm:$0xff]
  %v172 = vld [vmem:[%s1 + $0x438] sm:$0xff]
  %v173 = vld [vmem:[%s1 + $0x440] sm:$0xff]
  %v174 = vld [vmem:[%s1 + $0x448] sm:$0xff]
  %v175 = vld [vmem:[%s1 + $0x450] sm:$0xff]
  %v176 = vld [vmem:[%s1 + $0x458] sm:$0xff]
  %v177 = vld [vmem:[%s1 + $0x460] sm:$0xff]
  %v178 = vld [vmem:[%s1 + $0x468] sm:$0xff]
  %v179 = vld [vmem:[%s1 + $0x470] sm:$0xff]
  %v180 = vld [vmem:[%s1 + $0x478] sm:$0xff]
  %v181 = vld [vmem:[%s1 + $0x480] sm:$0xff]
  %v182 = vld [vmem:[%s1 + $0x488] sm:$0xff]
  %v183 = vld [vmem:[%s1 + $0x490] sm:$0xff]
  %v184 = vld [vmem:[%s1 + $0x498] sm:$0xff]
  %v185 = vld [vmem:[%s1 + $0x4a0] sm:$0xff]
  %v186 = vld [vmem:[%s1 + $0x4a8] sm:$0xff]
  %v187 = vld [vmem:[%s1 + $0x4b0] sm:$0xff]
  %v188 = vld [vmem:[%s1 + $0x4b8] sm:$0xff]
  %v189 = vld [vmem:[%s1 + $0x4c0] sm:$0xff]
  %v190 = vld [vmem:[%s1 + $0x4c8] sm:$0xff]
  %v191 = vld [vmem:[%s1 + $0x4d0] sm:$0xff]
  %v192 = vld [vmem:[%s1 + $0x4d8] sm:$0xff]
  %v193 = vld [vmem:[%s1 + $0x4e0] sm:$0xff]
  %v194 = vld [vmem:[%s1 + $0x4e8] sm:$0xff]
  %v195 = vld [vmem:[%s1 + $0x4f0] sm:$0xff]
  %v196 = vld [vmem:[%s1 + $0x4f8] sm:$0xff]
  %v197 = vld [vmem:[%s1 + $0x500] sm:$0xff]
  %v198 = vld [vmem:[%s1 + $0x508] sm:$0xff]
  %v199 = vld [vmem:[%s1 + $0x510] sm:$0xff]
  %v200 = vld [vmem:[%s1 + $0x518] sm:$0xff]
  %v201 = vld [vmem:[%s1 + $0x520] sm:$0xff]
  %v202 = vld [vmem:[%s1 + $0x528] sm:$0xff]
  %v203 = vld [vmem:[%s1 + $0x530] sm:$0xff]
  %v204 = vld [vmem:[%s1 + $0x538] sm:$0xff]
  %v205 = vld [vmem:[%s1 + $0x540] sm:$0xff]
  %v206 = vld [vmem:[%s1 + $0x548] sm:$0xff]
  %v207 = vld [vmem:[%s1 + $0x550] sm:$0xff]
  %v208 = vld [vmem:[%s1 + $0x558] sm:$0xff]
  %v209 = vld [vmem:[%s1 + $0x560] sm:$0xff]
  %v210 = vld [vmem:[%s1 + $0x568] sm:$0xff]
  %v211 = vld [vmem:[%s1 + $0x570] sm:$0xff]
  %v212 = vld [vmem:[%s1 + $0x578] sm:$0xff]
  %v213 = vld [vmem:[%s1 + $0x580] sm:$0xff]
  %v214 = vld [vmem:[%s1 + $0x588] sm:$0xff]
  %v215 = vld [vmem:[%s1 + $0x590] sm:$0xff]
  %v216 = vld [vmem:[%s1 + $0x598] sm:$0xff]
  %v217 = vld [vmem:[%s1 + $0x5a0] sm:$0xff]
  %v218 = vld [vmem:[%s1 + $0x5a8] sm:$0xff]
  %v219 = vld [vmem:[%s1 + $0x5b0] sm:$0xff]
  %v220 = vld [vmem:[%s1 + $0x5b8] sm:$0xff]
  %v221 = vld [vmem:[%s1 + $0x5c0] sm:$0xff]
  %v222 = vld [vmem:[%s1 + $0x5c8] sm:$0xff]
  %v223 = vld [vmem:[%s1 + $0x5d0] sm:$0xff]
  %v224 = vld [vmem:[%s1 + $0x5d8] sm:$0xff]
  %v225 = vld [vmem:[%s1 + $0x5e0] sm:$0xff]
  %v226 = vld [vmem:[%s1 + $0x5e8] sm:$0xff]
  %v227 = vld [vmem:[%s1 + $0x5f0] sm:$0xff]
  %v228 = vld [vmem:[%s1 + $0x5f8] sm:$0xff]
  %v229 = vld [vmem:[%s1 + $0x600] sm:$0xff]
  %v230 = vld [vmem:[%s1 + $0x608] sm:$0xff]
  %v231 = vld [vmem:[%s1 + $0x610] sm:$0xff]
  %v232 = vld [vmem:[%s1 + $0x618] sm:$0xff]
  %v233 = vld [vmem:[%s1 + $0x620] sm:$0xff]
  %v234 = vld [vmem:[%s1 + $0x628] sm:$0xff]
  %v235 = vld [vmem:[%s1 + $0x630] sm:$0xff]
  %v236 = vld [vmem:[%s1 + $0x638] sm:$0xff]
  %v237 = vld [vmem:[%s1 + $0x640] sm:$0xff]
  %v238 = vld [vmem:[%s1 + $0x648] sm:$0xff]
  %v239 = vld [vmem:[%s1 + $0x650] sm:$0xff]
  %v240 = vld [vmem:[%s1 + $0x658] sm:$0xff]
  %v241 = vld [vmem:[%s1 + $0x660] sm:$0xff]
  %v242 = vld [vmem:[%s1 + $0x668] sm:$0xff]
  %v243 = vld [vmem:[%s1 + $0x670] sm:$0xff]
  %v244 = vld [vmem:[%s1 + $0x678] sm:$0xff]
  %v245 = vld [vmem:[%s1 + $0x680] sm:$0xff]
  %v246 = vld [vmem:[%s1 + $0x688] sm:$0xff]
  %v247 = vld [vmem:[%s1 + $0x690] sm:$0xff]
  %v248 = vld [vmem:[%s1 + $0x698] sm:$0xff]
  %v249 = vld [vmem:[%s1 + $0x6a0] sm:$0xff]
  %v250 = vld [vmem:[%s1 + $0x6a8] sm:$0xff]
  %v251 = vld [vmem:[%s1 + $0x6b0] sm:$0xff]
  %v252 = vld [vmem:[%s1 + $0x6b8] sm:$0xff]
  %v253 = vld [vmem:[%s1 + $0x6c0] sm:$0xff]
  %v254 = vld [vmem:[%s1 + $0x6c8] sm:$0xff]
  %v255 = vld [vmem:[%s1 + $0x6d0] sm:$0xff]
  %v256 = vld [vmem:[%s1 + $0x6d8] sm:$0xff]
  %v257 = vld [vmem:[%s1 + $0x6e0] sm:$0xff]
  %v258 = vld [vmem:[%s1 + $0x6e8] sm:$0xff]
  %v259 = vld [vmem:[%s1 + $0x6f0] sm:$0xff]
  %v260 = vld [vmem:[%s1 + $0x6f8] sm:$0xff]
  %v261 = vld [vmem:[%s1 + $0x700] sm:$0xff]
  %v262 = vld [vmem:[%s1 + $0x708] sm:$0xff]
  %v263 = vld [vmem:[%s1 + $0x710] sm:$0xff]
  %v264 = vld [vmem:[%s1 + $0x718] sm:$0xff]
  %v265 = vld [vmem:[%s1 + $0x720] sm:$0xff]
  %v266 = vld [vmem:[%s1 + $0x728] sm:$0xff]
  %v267 = vld [vmem:[%s1 + $0x730] sm:$0xff]
  %v268 = vld [vmem:[%s1 + $0x738] sm:$0xff]
  %v269 = vld [vmem:[%s1 + $0x740] sm:$0xff]
  %v270 = vld [vmem:[%s1 + $0x748] sm:$0xff]
  %v271 = vld [vmem:[%s1 + $0x750] sm:$0xff]
  %v272 = vld [vmem:[%s1 + $0x758] sm:$0xff]
  %v273 = vld [vmem:[%s1 + $0x760] sm:$0xff]
  %v274 = vld [vmem:[%s1 + $0x768] sm:$0xff]
  %v275 = vld [vmem:[%s1 + $0x770] sm:$0xff]
  %v276 = vld [vmem:[%s1 + $0x778] sm:$0xff]
  %v277 = vld [vmem:[%s1 + $0x780] sm:$0xff]
  %v278 = vld [vmem:[%s1 + $0x788] sm:$0xff]
  %v279 = vld [vmem:[%s1 + $0x790] sm:$0xff]
  %v280 = vld [vmem:[%s1 + $0x798] sm:$0xff]
  %v281 = vld [vmem:[%s1 + $0x7a0] sm:$0xff]
  %v282 = vld [vmem:[%s1 + $0x7a8] sm:$0xff]
  %v283 = vld [vmem:[%s1 + $0x7b0] sm:$0xff]
  %v284 = vld [vmem:[%s1 + $0x7b8] sm:$0xff]
  %v285 = vld [vmem:[%s1 + $0x7c0] sm:$0xff]
  %v286 = vld [vmem:[%s1 + $0x7c8] sm:$0xff]
  %v287 = vld [vmem:[%s1 + $0x7d0] sm:$0xff]
  %v288 = vld [vmem:[%s1 + $0x7d8] sm:$0xff]
  %v289 = vld [vmem:[%s1 + $0x7e0] sm:$0xff]
  %v290 = vld [vmem:[%s1 + $0x7e8] sm:$0xff]
  %v291 = vld [vmem:[%s1 + $0x7f0] sm:$0xff]
  %v292 = vld [vmem:[%s1 + $0x7f8] sm:$0xff]
  %v293 = vld [vmem:[%s1 + $0x800] sm:$0xff]
  %v294 = vld [vmem:[%s1 + $0x808] sm:$0xff]
  %v295 = vld [vmem:[%s1 + $0x810] sm:$0xff]
  %v296 = vld [vmem:[%s1 + $0x818] sm:$0xff]
  %v297 = vld [vmem:[%s1 + $0x820] sm:$0xff]
  %v298 = vld [vmem:[%s1 + $0x828] sm:$0xff]
  %v299 = vld [vmem:[%s1 + $0x830] sm:$0xff]
  %v300 = vld [vmem:[%s1 + $0x838] sm:$0xff]
  %v301 = vld [vmem:[%s1 + $0x840] sm:$0xff]
  %v302 = vld [vmem:[%s1 + $0x848] sm:$0xff]
  %v303 = vld [vmem:[%s1 + $0x850] sm:$0xff]
  %v304 = vld [vmem:[%s1 + $0x858] sm:$0xff]
  %v305 = vld [vmem:[%s1 + $0x860] sm:$0xff]
  %v306 = vld [vmem:[%s1 + $0x868] sm:$0xff]
  %v307 = vld [vmem:[%s1 + $0x870] sm:$0xff]
  %v308 = vld [vmem:[%s1 + $0x878] sm:$0xff]
  %v309 = vld [vmem:[%s1 + $0x880] sm:$0xff]
  %v310 = vld [vmem:[%s1 + $0x888] sm:$0xff]
  %v311 = vld [vmem:[%s1 + $0x890] sm:$0xff]
  %v312 = vld [vmem:[%s1 + $0x898] sm:$0xff]
  %v313 = vld [vmem:[%s1 + $0x8a0] sm:$0xff]
  %v314 = vld [vmem:[%s1 + $0x8a8] sm:$0xff]
  %v315 = vld [vmem:[%s1 + $0x8b0] sm:$0xff]
  %v316 = vld [vmem:[%s1 + $0x8b8] sm:$0xff]
  %v317 = vld [vmem:[%s1 + $0x8c0] sm:$0xff]
  %v318 = vld [vmem:[%s1 + $0x8c8] sm:$0xff]
  %v319 = vld [vmem:[%s1 + $0x8d0] sm:$0xff]
  %v320 = vld [vmem:[%s1 + $0x8d8] sm:$0xff]
  %v321 = vld [vmem:[%s1 + $0x8e0] sm:$0xff]
  %v322 = vld [vmem:[%s1 + $0x8e8] sm:$0xff]
  %v323 = vld [vmem:[%s1 + $0x8f0] sm:$0xff]
  %v324 = vld [vmem:[%s1 + $0x8f8] sm:$0xff]
  %v325 = vld [vmem:[%s1 + $0x900] sm:$0xff]
  %v326 = vld [vmem:[%s1 + $0x908] sm:$0xff]
  %v327 = vld [vmem:[%s1 + $0x910] sm:$0xff]
  %v328 = vld [vmem:[%s1 + $0x918] sm:$0xff]
  %v329 = vld [vmem:[%s1 + $0x920] sm:$0xff]
  %v330 = vld [vmem:[%s1 + $0x928] sm:$0xff]
  %v331 = vld [vmem:[%s1 + $0x930] sm:$0xff]
  %v332 = vld [vmem:[%s1 + $0x938] sm:$0xff]
  %v333 = vld [vmem:[%s1 + $0x940] sm:$0xff]
  %v334 = vld [vmem:[%s1 + $0x948] sm:$0xff]
  %v335 = vld [vmem:[%s1 + $0x950] sm:$0xff]
  %v336 = vld [vmem:[%s1 + $0x958] sm:$0xff]
  %v337 = vld [vmem:[%s1 + $0x960] sm:$0xff]
  %v338 = vld [vmem:[%s1 + $0x968] sm:$0xff]
  %v339 = vld [vmem:[%s1 + $0x970] sm:$0xff]
  %v340 = vld [vmem:[%s1 + $0x978] sm:$0xff]
  %v341 = vld [vmem:[%s1 + $0x980] sm:$0xff]
  %v342 = vld [vmem:[%s1 + $0x988] sm:$0xff]
  %v343 = vld [vmem:[%s1 + $0x990] sm:$0xff]
  %v344 = vld [vmem:[%s1 + $0x998] sm:$0xff]
  %v345 = vld [vmem:[%s1 + $0x9a0] sm:$0xff]
  %v346 = vld [vmem:[%s1 + $0x9a8] sm:$0xff]
  %v347 = vld [vmem:[%s1 + $0x9b0] sm:$0xff]
  %v348 = vld [vmem:[%s1 + $0x9b8] sm:$0xff]
  %v349 = vld [vmem:[%s1 + $0x9c0] sm:$0xff]
  %v350 = vld [vmem:[%s1 + $0x9c8] sm:$0xff]
  %v351 = vld [vmem:[%s1 + $0x9d0] sm:$0xff]
  %v352 = vld [vmem:[%s1 + $0x9d8] sm:$0xff]
  %v353 = vld [vmem:[%s1 + $0x9e0] sm:$0xff]
  %v354 = vld [vmem:[%s1 + $0x9e8] sm:$0xff]
  %v355 = vld [vmem:[%s1 + $0x9f0] sm:$0xff]
  %v356 = vld [vmem:[%s1 + $0x9f8] sm:$0xff]
  %v357 = vld [vmem:[%s1 + $0xa00] sm:$0xff]
  %v358 = vld [vmem:[%s1 + $0xa08] sm:$0xff]
  %v359 = vld [vmem:[%s1 + $0xa10] sm:$0xff]
  %v360 = vld [vmem:[%s1 + $0xa18] sm:$0xff]
  %v361 = vld [vmem:[%s1 + $0xa20] sm:$0xff]
  %v362 = vld [vmem:[%s1 + $0xa28] sm:$0xff]
  %v363 = vld [vmem:[%s1 + $0xa30] sm:$0xff]
  %v364 = vld [vmem:[%s1 + $0xa38] sm:$0xff]
  %v365 = vld [vmem:[%s1 + $0xa40] sm:$0xff]
  %v366 = vld [vmem:[%s1 + $0xa48] sm:$0xff]
  %v367 = vld [vmem:[%s1 + $0xa50] sm:$0xff]
  %v368 = vld [vmem:[%s1 + $0xa58] sm:$0xff]
  %v369 = vld [vmem:[%s1 + $0xa60] sm:$0xff]
  %v370 = vld [vmem:[%s1 + $0xa68] sm:$0xff]
  %v371 = vld [vmem:[%s1 + $0xa70] sm:$0xff]
  %v372 = vld [vmem:[%s1 + $0xa78] sm:$0xff]
  %v373 = vld [vmem:[%s1 + $0xa80] sm:$0xff]
  %v374 = vld [vmem:[%s1 + $0xa88] sm:$0xff]
  %v375 = vld [vmem:[%s1 + $0xa90] sm:$0xff]
  %v376 = vld [vmem:[%s1 + $0xa98] sm:$0xff]
  %v377 = vld [vmem:[%s1 + $0xaa0] sm:$0xff]
  %v378 = vld [vmem:[%s1 + $0xaa8] sm:$0xff]
  %v379 = vld [vmem:[%s1 + $0xab0] sm:$0xff]
  %v380 = vld [vmem:[%s1 + $0xab8] sm:$0xff]
  %v381 = vld [vmem:[%s1 + $0xac0] sm:$0xff]
  %v382 = vld [vmem:[%s1 + $0xac8] sm:$0xff]
  %v383 = vld [vmem:[%s1 + $0xad0] sm:$0xff]
  %v384 = vld [vmem:[%s1 + $0xad8] sm:$0xff]
  %v385 = vld [vmem:[%s1 + $0xae0] sm:$0xff]
  %v386 = vld [vmem:[%s1 + $0xae8] sm:$0xff]
  %v387 = vld [vmem:[%s1 + $0xaf0] sm:$0xff]
  %v388 = vld [vmem:[%s1 + $0xaf8] sm:$0xff]
  %v389 = vld [vmem:[%s1 + $0xb00] sm:$0xff]
  %v390 = vld [vmem:[%s1 + $0xb08] sm:$0xff]
  %v391 = vld [vmem:[%s1 + $0xb10] sm:$0xff]
  %v392 = vld [vmem:[%s1 + $0xb18] sm:$0xff]
  %v393 = vld [vmem:[%s1 + $0xb20] sm:$0xff]
  %v394 = vld [vmem:[%s1 + $0xb28] sm:$0xff]
  %v395 = vld [vmem:[%s1 + $0xb30] sm:$0xff]
  %v396 = vld [vmem:[%s1 + $0xb38] sm:$0xff]
  %v397 = vld [vmem:[%s1 + $0xb40] sm:$0xff]
  %v398 = vld [vmem:[%s1 + $0xb48] sm:$0xff]
  %v399 = vld [vmem:[%s1 + $0xb50] sm:$0xff]
  %v400 = vld [vmem:[%s1 + $0xb58] sm:$0xff]
  %v401 = vld [vmem:[%s1 + $0xb60] sm:$0xff]
  %v402 = vld [vmem:[%s1 + $0xb68] sm:$0xff]
  %v403 = vld [vmem:[%s1 + $0xb70] sm:$0xff]
  %v404 = vld [vmem:[%s1 + $0xb78] sm:$0xff]
  %v405 = vld [vmem:[%s1 + $0xb80] sm:$0xff]
  %v406 = vld [vmem:[%s1 + $0xb88] sm:$0xff]
  %v407 = vld [vmem:[%s1 + $0xb90] sm:$0xff]
  %v408 = vld [vmem:[%s1 + $0xb98] sm:$0xff]
  %v409 = vld [vmem:[%s1 + $0xba0] sm:$0xff]
  %v410 = vld [vmem:[%s1 + $0xba8] sm:$0xff]
  %v411 = vld [vmem:[%s1 + $0xbb0] sm:$0xff]
  %v412 = vld [vmem:[%s1 + $0xbb8] sm:$0xff]
  %v413 = vld [vmem:[%s1 + $0xbc0] sm:$0xff]
  %v414 = vld [vmem:[%s1 + $0xbc8] sm:$0xff]
  %v415 = vld [vmem:[%s1 + $0xbd0] sm:$0xff]
  %v416 = vld [vmem:[%s1 + $0xbd8] sm:$0xff]
  %v417 = vld [vmem:[%s1 + $0xbe0] sm:$0xff]
  %v418 = vld [vmem:[%s1 + $0xbe8] sm:$0xff]
  %v419 = vld [vmem:[%s1 + $0xbf0] sm:$0xff]
  %v420 = vld [vmem:[%s1 + $0xbf8] sm:$0xff]
  %v421 = vld [vmem:[%s1 + $0xc00] sm:$0xff]
  %v422 = vld [vmem:[%s1 + $0xc08] sm:$0xff]
  %v423 = vld [vmem:[%s1 + $0xc10] sm:$0xff]
  %v424 = vld [vmem:[%s1 + $0xc18] sm:$0xff]
  %v425 = vld [vmem:[%s1 + $0xc20] sm:$0xff]
  %v426 = vld [vmem:[%s1 + $0xc28] sm:$0xff]
  %v427 = vld [vmem:[%s1 + $0xc30] sm:$0xff]
  %v428 = vld [vmem:[%s1 + $0xc38] sm:$0xff]
  %v429 = vld [vmem:[%s1 + $0xc40] sm:$0xff]
  %v430 = vld [vmem:[%s1 + $0xc48] sm:$0xff]
  %v431 = vld [vmem:[%s1 + $0xc50] sm:$0xff]
  %v432 = vld [vmem:[%s1 + $0xc58] sm:$0xff]
  %v433 = vld [vmem:[%s1 + $0xc60] sm:$0xff]
  %v434 = vld [vmem:[%s1 + $0xc68] sm:$0xff]
  %v435 = vld [vmem:[%s1 + $0xc70] sm:$0xff]
  %v436 = vld [vmem:[%s1 + $0xc78] sm:$0xff]
  %v437 = vld [vmem:[%s1 + $0xc80] sm:$0xff]
  %v438 = vld [vmem:[%s1 + $0xc88] sm:$0xff]
  %v439 = vld [vmem:[%s1 + $0xc90] sm:$0xff]
  %v440 = vld [vmem:[%s1 + $0xc98] sm:$0xff]
  %v441 = vld [vmem:[%s1 + $0xca0] sm:$0xff]
  %v442 = vld [vmem:[%s1 + $0xca8] sm:$0xff]
  %v443 = vld [vmem:[%s1 + $0xcb0] sm:$0xff]
  %v444 = vld [vmem:[%s1 + $0xcb8] sm:$0xff]
  %v445 = vld [vmem:[%s1 + $0xcc0] sm:$0xff]
  %v446 = vld [vmem:[%s1 + $0xcc8] sm:$0xff]
  %v447 = vld [vmem:[%s1 + $0xcd0] sm:$0xff]
  %v448 = vld [vmem:[%s1 + $0xcd8] sm:$0xff]
  %v449 = vld [vmem:[%s1 + $0xce0] sm:$0xff]
  %v450 = vld [vmem:[%s1 + $0xce8] sm:$0xff]
  %v451 = vld [vmem:[%s1 + $0xcf0] sm:$0xff]
  %v452 = vld [vmem:[%s1 + $0xcf8] sm:$0xff]
  %v453 = vld [vmem:[%s1 + $0xd00] sm:$0xff]
  %v454 = vld [vmem:[%s1 + $0xd08] sm:$0xff]
  %v455 = vld [vmem:[%s1 + $0xd10] sm:$0xff]
  %v456 = vld [vmem:[%s1 + $0xd18] sm:$0xff]
  %v457 = vld [vmem:[%s1 + $0xd20] sm:$0xff]
  %v458 = vld [vmem:[%s1 + $0xd28] sm:$0xff]
  %v459 = vld [vmem:[%s1 + $0xd30] sm:$0xff]
  %v460 = vld [vmem:[%s1 + $0xd38] sm:$0xff]
  %v461 = vld [vmem:[%s1 + $0xd40] sm:$0xff]
  %v462 = vld [vmem:[%s1 + $0xd48] sm:$0xff]
  %v463 = vld [vmem:[%s1 + $0xd50] sm:$0xff]
  %v464 = vld [vmem:[%s1 + $0xd58] sm:$0xff]
  %v465 = vld [vmem:[%s1 + $0xd60] sm:$0xff]
  %v466 = vld [vmem:[%s1 + $0xd68] sm:$0xff]
  %v467 = vld [vmem:[%s1 + $0xd70] sm:$0xff]
  %v468 = vld [vmem:[%s1 + $0xd78] sm:$0xff]
  %v469 = vld [vmem:[%s1 + $0xd80] sm:$0xff]
  %v470 = vld [vmem:[%s1 + $0xd88] sm:$0xff]
  %v471 = vld [vmem:[%s1 + $0xd90] sm:$0xff]
  %v472 = vld [vmem:[%s1 + $0xd98] sm:$0xff]
  %v473 = vld [vmem:[%s1 + $0xda0] sm:$0xff]
  %v474 = vld [vmem:[%s1 + $0xda8] sm:$0xff]
  %v475 = vld [vmem:[%s1 + $0xdb0] sm:$0xff]
  %v476 = vld [vmem:[%s1 + $0xdb8] sm:$0xff]
  %v477 = vld [vmem:[%s1 + $0xdc0] sm:$0xff]
  %v478 = vld [vmem:[%s1 + $0xdc8] sm:$0xff]
  %v479 = vld [vmem:[%s1 + $0xdd0] sm:$0xff]
  %v480 = vld [vmem:[%s1 + $0xdd8] sm:$0xff]
  %v481 = vld [vmem:[%s1 + $0xde0] sm:$0xff]
  %v482 = vld [vmem:[%s1 + $0xde8] sm:$0xff]
  %v483 = vld [vmem:[%s1 + $0xdf0] sm:$0xff]
  %v484 = vld [vmem:[%s1 + $0xdf8] sm:$0xff]
  %v485 = vld [vmem:[%s1 + $0xe00] sm:$0xff]
  %v486 = vld [vmem:[%s1 + $0xe08] sm:$0xff]
  %v487 = vld [vmem:[%s1 + $0xe10] sm:$0xff]
  %v488 = vld [vmem:[%s1 + $0xe18] sm:$0xff]
  %v489 = vld [vmem:[%s1 + $0xe20] sm:$0xff]
  %v490 = vld [vmem:[%s1 + $0xe28] sm:$0xff]
  %v491 = vld [vmem:[%s1 + $0xe30] sm:$0xff]
  %v492 = vld [vmem:[%s1 + $0xe38] sm:$0xff]
  %v493 = vld [vmem:[%s1 + $0xe40] sm:$0xff]
  %v494 = vld [vmem:[%s1 + $0xe48] sm:$0xff]
  %v495 = vld [vmem:[%s1 + $0xe50] sm:$0xff]
  %v496 = vld [vmem:[%s1 + $0xe58] sm:$0xff]
  %v497 = vld [vmem:[%s1 + $0xe60] sm:$0xff]
  %v498 = vld [vmem:[%s1 + $0xe68] sm:$0xff]
  %v499 = vld [vmem:[%s1 + $0xe70] sm:$0xff]
  %v500 = vld [vmem:[%s1 + $0xe78] sm:$0xff]
  %v501 = vld [vmem:[%s1 + $0xe80] sm:$0xff]
  %v502 = vld [vmem:[%s1 + $0xe88] sm:$0xff]
  %v503 = vld [vmem:[%s1 + $0xe90] sm:$0xff]
  %v504 = vld [vmem:[%s1 + $0xe98] sm:$0xff]
  %v505 = vld [vmem:[%s1 + $0xea0] sm:$0xff]
  %v506 = vld [vmem:[%s1 + $0xea8] sm:$0xff]
  %v507 = vld [vmem:[%s1 + $0xeb0] sm:$0xff]
  %v508 = vld [vmem:[%s1 + $0xeb8] sm:$0xff]
  %v509 = vld [vmem:[%s1 + $0xec0] sm:$0xff]
  %v510 = vld [vmem:[%s1 + $0xec8] sm:$0xff]
  %v511 = vld [vmem:[%s1 + $0xed0] sm:$0xff]
  %v512 = vld [vmem:[%s1 + $0xed8] sm:$0xff]
  %v513 = vld [vmem:[%s1 + $0xee0] sm:$0xff]
  %v514 = vld [vmem:[%s1 + $0xee8] sm:$0xff]
  %v515 = vld [vmem:[%s1 + $0xef0] sm:$0xff]
  %v516 = vld [vmem:[%s1 + $0xef8] sm:$0xff]
  %v517 = vld [vmem:[%s1 + $0xf00] sm:$0xff]
  %v518 = vld [vmem:[%s1 + $0xf08] sm:$0xff]
  %v519 = vld [vmem:[%s1 + $0xf10] sm:$0xff]
  %v520 = vld [vmem:[%s1 + $0xf18] sm:$0xff]
  %v521 = vld [vmem:[%s1 + $0xf20] sm:$0xff]
  %v522 = vld [vmem:[%s1 + $0xf28] sm:$0xff]
  %v523 = vld [vmem:[%s1 + $0xf30] sm:$0xff]
  %v524 = vld [vmem:[%s1 + $0xf38] sm:$0xff]
  %v525 = vld [vmem:[%s1 + $0xf40] sm:$0xff]
  %v526 = vld [vmem:[%s1 + $0xf48] sm:$0xff]
  %v527 = vld [vmem:[%s1 + $0xf50] sm:$0xff]
  %v528 = vld [vmem:[%s1 + $0xf58] sm:$0xff]
  %v529 = vld [vmem:[%s1 + $0xf60] sm:$0xff]
  %v530 = vld [vmem:[%s1 + $0xf68] sm:$0xff]
  %v531 = vld [vmem:[%s1 + $0xf70] sm:$0xff]
  %v532 = vld [vmem:[%s1 + $0xf78] sm:$0xff]
  %v533 = vld [vmem:[%s1 + $0xf80] sm:$0xff]
  %v534 = vld [vmem:[%s1 + $0xf88] sm:$0xff]
  %v535 = vld [vmem:[%s1 + $0xf90] sm:$0xff]
  %v536 = vld [vmem:[%s1 + $0xf98] sm:$0xff]
  %v537 = vld [vmem:[%s1 + $0xfa0] sm:$0xff]
  %v538 = vld [vmem:[%s1 + $0xfa8] sm:$0xff]
  %v539 = vld [vmem:[%s1 + $0xfb0] sm:$0xff]
  %v540 = vld [vmem:[%s1 + $0xfb8] sm:$0xff]
  %v541 = vld [vmem:[%s1 + $0xfc0] sm:$0xff]
  %v542 = vld [vmem:[%s1 + $0xfc8] sm:$0xff]
  %v543 = vld [vmem:[%s1 + $0xfd0] sm:$0xff]
  %v544 = vld [vmem:[%s1 + $0xfd8] sm:$0xff]
  %v545 = vld [vmem:[%s1 + $0xfe0] sm:$0xff]
  %v546 = vld [vmem:[%s1 + $0xfe8] sm:$0xff]
  %v547 = vld [vmem:[%s1 + $0xff0] sm:$0xff]
  %v548 = vld [vmem:[%s1 + $0xff8] sm:$0xff]
  %v549 = vld [vmem:[%s2] sm:$0xf]
  %v551 = vlaneseq
  %v552 = vshrl.u32 %v551, 7
  %v553 = vsub.s32 0, %v552
  %v554 = vrot.slane %v549, %v553
  %v555 = vlaneseq
  %v556 = vshrl.u32 %v555, 7
  %v557 = vsub.s32 1, %v556
  %v558 = vrot.slane %v549, %v557
  %v559 = vlaneseq
  %v560 = vshrl.u32 %v559, 7
  %v561 = vsub.s32 2, %v560
  %v562 = vrot.slane %v549, %v561
  %v563 = vlaneseq
  %v564 = vshrl.u32 %v563, 7
  %v565 = vsub.s32 3, %v564
  %v566 = vrot.slane %v549, %v565
  %v587 = vunpack.c.l.b16 %v21
  %v588 = vunpack.c.h.b16 %v21
  %v589 = vunpack.c.l.b16 %v22
  %v590 = vunpack.c.h.b16 %v22
  %v591 = vunpack.c.l.b16 %v23
  %v592 = vunpack.c.h.b16 %v23
  %v593 = vunpack.c.l.b16 %v24
  %v594 = vunpack.c.h.b16 %v24
  %v595 = vunpack.c.l.b16 %v25
  %v596 = vunpack.c.h.b16 %v25
  %v597 = vunpack.c.l.b16 %v26
  %v598 = vunpack.c.h.b16 %v26
  %v599 = vunpack.c.l.b16 %v27
  %v600 = vunpack.c.h.b16 %v27
  %v601 = vunpack.c.l.b16 %v28
  %v602 = vunpack.c.h.b16 %v28
  %v603 = vunpack.c.l.b16 %v29
  %v604 = vunpack.c.h.b16 %v29
  %v605 = vunpack.c.l.b16 %v30
  %v606 = vunpack.c.h.b16 %v30
  %v607 = vunpack.c.l.b16 %v31
  %v608 = vunpack.c.h.b16 %v31
  %v609 = vunpack.c.l.b16 %v32
  %v610 = vunpack.c.h.b16 %v32
  %v611 = vunpack.c.l.b16 %v33
  %v612 = vunpack.c.h.b16 %v33
  %v613 = vunpack.c.l.b16 %v34
  %v614 = vunpack.c.h.b16 %v34
  %v615 = vunpack.c.l.b16 %v35
  %v616 = vunpack.c.h.b16 %v35
  %v617 = vunpack.c.l.b16 %v36
  %v618 = vunpack.c.h.b16 %v36
  %v619 = vpack.c.b16 %v603, %v587
  %v620 = vpack.c.b16 %v604, %v588
  %v621 = vpack.c.b16 %v605, %v589
  %v622 = vpack.c.b16 %v606, %v590
  %v623 = vpack.c.b16 %v607, %v591
  %v624 = vpack.c.b16 %v608, %v592
  %v625 = vpack.c.b16 %v609, %v593
  %v626 = vpack.c.b16 %v610, %v594
  %v627 = vpack.c.b16 %v611, %v595
  %v628 = vpack.c.b16 %v612, %v596
  %v629 = vpack.c.b16 %v613, %v597
  %v630 = vpack.c.b16 %v614, %v598
  %v631 = vpack.c.b16 %v615, %v599
  %v632 = vpack.c.b16 %v616, %v600
  %v633 = vpack.c.b16 %v617, %v601
  %v634 = vpack.c.b16 %v618, %v602
  %v1163 = vunpack.c.l.b16 %v37
  %v1164 = vunpack.c.h.b16 %v37
  %v1165 = vunpack.c.l.b16 %v38
  %v1166 = vunpack.c.h.b16 %v38
  %v1167 = vunpack.c.l.b16 %v39
  %v1168 = vunpack.c.h.b16 %v39
  %v1169 = vunpack.c.l.b16 %v40
  %v1170 = vunpack.c.h.b16 %v40
  %v1171 = vunpack.c.l.b16 %v41
  %v1172 = vunpack.c.h.b16 %v41
  %v1173 = vunpack.c.l.b16 %v42
  %v1174 = vunpack.c.h.b16 %v42
  %v1175 = vunpack.c.l.b16 %v43
  %v1176 = vunpack.c.h.b16 %v43
  %v1177 = vunpack.c.l.b16 %v44
  %v1178 = vunpack.c.h.b16 %v44
  %v1179 = vunpack.c.l.b16 %v45
  %v1180 = vunpack.c.h.b16 %v45
  %v1181 = vunpack.c.l.b16 %v46
  %v1182 = vunpack.c.h.b16 %v46
  %v1183 = vunpack.c.l.b16 %v47
  %v1184 = vunpack.c.h.b16 %v47
  %v1185 = vunpack.c.l.b16 %v48
  %v1186 = vunpack.c.h.b16 %v48
  %v1187 = vunpack.c.l.b16 %v49
  %v1188 = vunpack.c.h.b16 %v49
  %v1189 = vunpack.c.l.b16 %v50
  %v1190 = vunpack.c.h.b16 %v50
  %v1191 = vunpack.c.l.b16 %v51
  %v1192 = vunpack.c.h.b16 %v51
  %v1193 = vunpack.c.l.b16 %v52
  %v1194 = vunpack.c.h.b16 %v52
  %v1195 = vunpack.c.l.b16 %v53
  %v1196 = vunpack.c.h.b16 %v53
  %v1197 = vunpack.c.l.b16 %v54
  %v1198 = vunpack.c.h.b16 %v54
  %v1199 = vunpack.c.l.b16 %v55
  %v1200 = vunpack.c.h.b16 %v55
  %v1201 = vunpack.c.l.b16 %v56
  %v1202 = vunpack.c.h.b16 %v56
  %v1203 = vunpack.c.l.b16 %v57
  %v1204 = vunpack.c.h.b16 %v57
  %v1205 = vunpack.c.l.b16 %v58
  %v1206 = vunpack.c.h.b16 %v58
  %v1207 = vunpack.c.l.b16 %v59
  %v1208 = vunpack.c.h.b16 %v59
  %v1209 = vunpack.c.l.b16 %v60
  %v1210 = vunpack.c.h.b16 %v60
  %v1211 = vunpack.c.l.b16 %v61
  %v1212 = vunpack.c.h.b16 %v61
  %v1213 = vunpack.c.l.b16 %v62
  %v1214 = vunpack.c.h.b16 %v62
  %v1215 = vunpack.c.l.b16 %v63
  %v1216 = vunpack.c.h.b16 %v63
  %v1217 = vunpack.c.l.b16 %v64
  %v1218 = vunpack.c.h.b16 %v64
  %v1219 = vunpack.c.l.b16 %v65
  %v1220 = vunpack.c.h.b16 %v65
  %v1221 = vunpack.c.l.b16 %v66
  %v1222 = vunpack.c.h.b16 %v66
  %v1223 = vunpack.c.l.b16 %v67
  %v1224 = vunpack.c.h.b16 %v67
  %v1225 = vunpack.c.l.b16 %v68
  %v1226 = vunpack.c.h.b16 %v68
  %v1227 = vunpack.c.l.b16 %v69
  %v1228 = vunpack.c.h.b16 %v69
  %v1229 = vunpack.c.l.b16 %v70
  %v1230 = vunpack.c.h.b16 %v70
  %v1231 = vunpack.c.l.b16 %v71
  %v1232 = vunpack.c.h.b16 %v71
  %v1233 = vunpack.c.l.b16 %v72
  %v1234 = vunpack.c.h.b16 %v72
  %v1235 = vunpack.c.l.b16 %v73
  %v1236 = vunpack.c.h.b16 %v73
  %v1237 = vunpack.c.l.b16 %v74
  %v1238 = vunpack.c.h.b16 %v74
  %v1239 = vunpack.c.l.b16 %v75
  %v1240 = vunpack.c.h.b16 %v75
  %v1241 = vunpack.c.l.b16 %v76
  %v1242 = vunpack.c.h.b16 %v76
  %v1243 = vunpack.c.l.b16 %v77
  %v1244 = vunpack.c.h.b16 %v77
  %v1245 = vunpack.c.l.b16 %v78
  %v1246 = vunpack.c.h.b16 %v78
  %v1247 = vunpack.c.l.b16 %v79
  %v1248 = vunpack.c.h.b16 %v79
  %v1249 = vunpack.c.l.b16 %v80
  %v1250 = vunpack.c.h.b16 %v80
  %v1251 = vunpack.c.l.b16 %v81
  %v1252 = vunpack.c.h.b16 %v81
  %v1253 = vunpack.c.l.b16 %v82
  %v1254 = vunpack.c.h.b16 %v82
  %v1255 = vunpack.c.l.b16 %v83
  %v1256 = vunpack.c.h.b16 %v83
  %v1257 = vunpack.c.l.b16 %v84
  %v1258 = vunpack.c.h.b16 %v84
  %v1259 = vunpack.c.l.b16 %v85
  %v1260 = vunpack.c.h.b16 %v85
  %v1261 = vunpack.c.l.b16 %v86
  %v1262 = vunpack.c.h.b16 %v86
  %v1263 = vunpack.c.l.b16 %v87
  %v1264 = vunpack.c.h.b16 %v87
  %v1265 = vunpack.c.l.b16 %v88
  %v1266 = vunpack.c.h.b16 %v88
  %v1267 = vunpack.c.l.b16 %v89
  %v1268 = vunpack.c.h.b16 %v89
  %v1269 = vunpack.c.l.b16 %v90
  %v1270 = vunpack.c.h.b16 %v90
  %v1271 = vunpack.c.l.b16 %v91
  %v1272 = vunpack.c.h.b16 %v91
  %v1273 = vunpack.c.l.b16 %v92
  %v1274 = vunpack.c.h.b16 %v92
  %v1275 = vunpack.c.l.b16 %v93
  %v1276 = vunpack.c.h.b16 %v93
  %v1277 = vunpack.c.l.b16 %v94
  %v1278 = vunpack.c.h.b16 %v94
  %v1279 = vunpack.c.l.b16 %v95
  %v1280 = vunpack.c.h.b16 %v95
  %v1281 = vunpack.c.l.b16 %v96
  %v1282 = vunpack.c.h.b16 %v96
  %v1283 = vunpack.c.l.b16 %v97
  %v1284 = vunpack.c.h.b16 %v97
  %v1285 = vunpack.c.l.b16 %v98
  %v1286 = vunpack.c.h.b16 %v98
  %v1287 = vunpack.c.l.b16 %v99
  %v1288 = vunpack.c.h.b16 %v99
  %v1289 = vunpack.c.l.b16 %v100
  %v1290 = vunpack.c.h.b16 %v100
  %v1291 = vunpack.c.l.b16 %v101
  %v1292 = vunpack.c.h.b16 %v101
  %v1293 = vunpack.c.l.b16 %v102
  %v1294 = vunpack.c.h.b16 %v102
  %v1295 = vunpack.c.l.b16 %v103
  %v1296 = vunpack.c.h.b16 %v103
  %v1297 = vunpack.c.l.b16 %v104
  %v1298 = vunpack.c.h.b16 %v104
  %v1299 = vunpack.c.l.b16 %v105
  %v1300 = vunpack.c.h.b16 %v105
  %v1301 = vunpack.c.l.b16 %v106
  %v1302 = vunpack.c.h.b16 %v106
  %v1303 = vunpack.c.l.b16 %v107
  %v1304 = vunpack.c.h.b16 %v107
  %v1305 = vunpack.c.l.b16 %v108
  %v1306 = vunpack.c.h.b16 %v108
  %v1307 = vunpack.c.l.b16 %v109
  %v1308 = vunpack.c.h.b16 %v109
  %v1309 = vunpack.c.l.b16 %v110
  %v1310 = vunpack.c.h.b16 %v110
  %v1311 = vunpack.c.l.b16 %v111
  %v1312 = vunpack.c.h.b16 %v111
  %v1313 = vunpack.c.l.b16 %v112
  %v1314 = vunpack.c.h.b16 %v112
  %v1315 = vunpack.c.l.b16 %v113
  %v1316 = vunpack.c.h.b16 %v113
  %v1317 = vunpack.c.l.b16 %v114
  %v1318 = vunpack.c.h.b16 %v114
  %v1319 = vunpack.c.l.b16 %v115
  %v1320 = vunpack.c.h.b16 %v115
  %v1321 = vunpack.c.l.b16 %v116
  %v1322 = vunpack.c.h.b16 %v116
  %v1323 = vunpack.c.l.b16 %v117
  %v1324 = vunpack.c.h.b16 %v117
  %v1325 = vunpack.c.l.b16 %v118
  %v1326 = vunpack.c.h.b16 %v118
  %v1327 = vunpack.c.l.b16 %v119
  %v1328 = vunpack.c.h.b16 %v119
  %v1329 = vunpack.c.l.b16 %v120
  %v1330 = vunpack.c.h.b16 %v120
  %v1331 = vunpack.c.l.b16 %v121
  %v1332 = vunpack.c.h.b16 %v121
  %v1333 = vunpack.c.l.b16 %v122
  %v1334 = vunpack.c.h.b16 %v122
  %v1335 = vunpack.c.l.b16 %v123
  %v1336 = vunpack.c.h.b16 %v123
  %v1337 = vunpack.c.l.b16 %v124
  %v1338 = vunpack.c.h.b16 %v124
  %v1339 = vunpack.c.l.b16 %v125
  %v1340 = vunpack.c.h.b16 %v125
  %v1341 = vunpack.c.l.b16 %v126
  %v1342 = vunpack.c.h.b16 %v126
  %v1343 = vunpack.c.l.b16 %v127
  %v1344 = vunpack.c.h.b16 %v127
  %v1345 = vunpack.c.l.b16 %v128
  %v1346 = vunpack.c.h.b16 %v128
  %v1347 = vunpack.c.l.b16 %v129
  %v1348 = vunpack.c.h.b16 %v129
  %v1349 = vunpack.c.l.b16 %v130
  %v1350 = vunpack.c.h.b16 %v130
  %v1351 = vunpack.c.l.b16 %v131
  %v1352 = vunpack.c.h.b16 %v131
  %v1353 = vunpack.c.l.b16 %v132
  %v1354 = vunpack.c.h.b16 %v132
  %v1355 = vunpack.c.l.b16 %v133
  %v1356 = vunpack.c.h.b16 %v133
  %v1357 = vunpack.c.l.b16 %v134
  %v1358 = vunpack.c.h.b16 %v134
  %v1359 = vunpack.c.l.b16 %v135
  %v1360 = vunpack.c.h.b16 %v135
  %v1361 = vunpack.c.l.b16 %v136
  %v1362 = vunpack.c.h.b16 %v136
  %v1363 = vunpack.c.l.b16 %v137
  %v1364 = vunpack.c.h.b16 %v137
  %v1365 = vunpack.c.l.b16 %v138
  %v1366 = vunpack.c.h.b16 %v138
  %v1367 = vunpack.c.l.b16 %v139
  %v1368 = vunpack.c.h.b16 %v139
  %v1369 = vunpack.c.l.b16 %v140
  %v1370 = vunpack.c.h.b16 %v140
  %v1371 = vunpack.c.l.b16 %v141
  %v1372 = vunpack.c.h.b16 %v141
  %v1373 = vunpack.c.l.b16 %v142
  %v1374 = vunpack.c.h.b16 %v142
  %v1375 = vunpack.c.l.b16 %v143
  %v1376 = vunpack.c.h.b16 %v143
  %v1377 = vunpack.c.l.b16 %v144
  %v1378 = vunpack.c.h.b16 %v144
  %v1379 = vunpack.c.l.b16 %v145
  %v1380 = vunpack.c.h.b16 %v145
  %v1381 = vunpack.c.l.b16 %v146
  %v1382 = vunpack.c.h.b16 %v146
  %v1383 = vunpack.c.l.b16 %v147
  %v1384 = vunpack.c.h.b16 %v147
  %v1385 = vunpack.c.l.b16 %v148
  %v1386 = vunpack.c.h.b16 %v148
  %v1387 = vunpack.c.l.b16 %v149
  %v1388 = vunpack.c.h.b16 %v149
  %v1389 = vunpack.c.l.b16 %v150
  %v1390 = vunpack.c.h.b16 %v150
  %v1391 = vunpack.c.l.b16 %v151
  %v1392 = vunpack.c.h.b16 %v151
  %v1393 = vunpack.c.l.b16 %v152
  %v1394 = vunpack.c.h.b16 %v152
  %v1395 = vunpack.c.l.b16 %v153
  %v1396 = vunpack.c.h.b16 %v153
  %v1397 = vunpack.c.l.b16 %v154
  %v1398 = vunpack.c.h.b16 %v154
  %v1399 = vunpack.c.l.b16 %v155
  %v1400 = vunpack.c.h.b16 %v155
  %v1401 = vunpack.c.l.b16 %v156
  %v1402 = vunpack.c.h.b16 %v156
  %v1403 = vunpack.c.l.b16 %v157
  %v1404 = vunpack.c.h.b16 %v157
  %v1405 = vunpack.c.l.b16 %v158
  %v1406 = vunpack.c.h.b16 %v158
  %v1407 = vunpack.c.l.b16 %v159
  %v1408 = vunpack.c.h.b16 %v159
  %v1409 = vunpack.c.l.b16 %v160
  %v1410 = vunpack.c.h.b16 %v160
  %v1411 = vunpack.c.l.b16 %v161
  %v1412 = vunpack.c.h.b16 %v161
  %v1413 = vunpack.c.l.b16 %v162
  %v1414 = vunpack.c.h.b16 %v162
  %v1415 = vunpack.c.l.b16 %v163
  %v1416 = vunpack.c.h.b16 %v163
  %v1417 = vunpack.c.l.b16 %v164
  %v1418 = vunpack.c.h.b16 %v164
  %v1419 = vunpack.c.l.b16 %v165
  %v1420 = vunpack.c.h.b16 %v165
  %v1421 = vunpack.c.l.b16 %v166
  %v1422 = vunpack.c.h.b16 %v166
  %v1423 = vunpack.c.l.b16 %v167
  %v1424 = vunpack.c.h.b16 %v167
  %v1425 = vunpack.c.l.b16 %v168
  %v1426 = vunpack.c.h.b16 %v168
  %v1427 = vunpack.c.l.b16 %v169
  %v1428 = vunpack.c.h.b16 %v169
  %v1429 = vunpack.c.l.b16 %v170
  %v1430 = vunpack.c.h.b16 %v170
  %v1431 = vunpack.c.l.b16 %v171
  %v1432 = vunpack.c.h.b16 %v171
  %v1433 = vunpack.c.l.b16 %v172
  %v1434 = vunpack.c.h.b16 %v172
  %v1435 = vunpack.c.l.b16 %v173
  %v1436 = vunpack.c.h.b16 %v173
  %v1437 = vunpack.c.l.b16 %v174
  %v1438 = vunpack.c.h.b16 %v174
  %v1439 = vunpack.c.l.b16 %v175
  %v1440 = vunpack.c.h.b16 %v175
  %v1441 = vunpack.c.l.b16 %v176
  %v1442 = vunpack.c.h.b16 %v176
  %v1443 = vunpack.c.l.b16 %v177
  %v1444 = vunpack.c.h.b16 %v177
  %v1445 = vunpack.c.l.b16 %v178
  %v1446 = vunpack.c.h.b16 %v178
  %v1447 = vunpack.c.l.b16 %v179
  %v1448 = vunpack.c.h.b16 %v179
  %v1449 = vunpack.c.l.b16 %v180
  %v1450 = vunpack.c.h.b16 %v180
  %v1451 = vunpack.c.l.b16 %v181
  %v1452 = vunpack.c.h.b16 %v181
  %v1453 = vunpack.c.l.b16 %v182
  %v1454 = vunpack.c.h.b16 %v182
  %v1455 = vunpack.c.l.b16 %v183
  %v1456 = vunpack.c.h.b16 %v183
  %v1457 = vunpack.c.l.b16 %v184
  %v1458 = vunpack.c.h.b16 %v184
  %v1459 = vunpack.c.l.b16 %v185
  %v1460 = vunpack.c.h.b16 %v185
  %v1461 = vunpack.c.l.b16 %v186
  %v1462 = vunpack.c.h.b16 %v186
  %v1463 = vunpack.c.l.b16 %v187
  %v1464 = vunpack.c.h.b16 %v187
  %v1465 = vunpack.c.l.b16 %v188
  %v1466 = vunpack.c.h.b16 %v188
  %v1467 = vunpack.c.l.b16 %v189
  %v1468 = vunpack.c.h.b16 %v189
  %v1469 = vunpack.c.l.b16 %v190
  %v1470 = vunpack.c.h.b16 %v190
  %v1471 = vunpack.c.l.b16 %v191
  %v1472 = vunpack.c.h.b16 %v191
  %v1473 = vunpack.c.l.b16 %v192
  %v1474 = vunpack.c.h.b16 %v192
  %v1475 = vunpack.c.l.b16 %v193
  %v1476 = vunpack.c.h.b16 %v193
  %v1477 = vunpack.c.l.b16 %v194
  %v1478 = vunpack.c.h.b16 %v194
  %v1479 = vunpack.c.l.b16 %v195
  %v1480 = vunpack.c.h.b16 %v195
  %v1481 = vunpack.c.l.b16 %v196
  %v1482 = vunpack.c.h.b16 %v196
  %v1483 = vunpack.c.l.b16 %v197
  %v1484 = vunpack.c.h.b16 %v197
  %v1485 = vunpack.c.l.b16 %v198
  %v1486 = vunpack.c.h.b16 %v198
  %v1487 = vunpack.c.l.b16 %v199
  %v1488 = vunpack.c.h.b16 %v199
  %v1489 = vunpack.c.l.b16 %v200
  %v1490 = vunpack.c.h.b16 %v200
  %v1491 = vunpack.c.l.b16 %v201
  %v1492 = vunpack.c.h.b16 %v201
  %v1493 = vunpack.c.l.b16 %v202
  %v1494 = vunpack.c.h.b16 %v202
  %v1495 = vunpack.c.l.b16 %v203
  %v1496 = vunpack.c.h.b16 %v203
  %v1497 = vunpack.c.l.b16 %v204
  %v1498 = vunpack.c.h.b16 %v204
  %v1499 = vunpack.c.l.b16 %v205
  %v1500 = vunpack.c.h.b16 %v205
  %v1501 = vunpack.c.l.b16 %v206
  %v1502 = vunpack.c.h.b16 %v206
  %v1503 = vunpack.c.l.b16 %v207
  %v1504 = vunpack.c.h.b16 %v207
  %v1505 = vunpack.c.l.b16 %v208
  %v1506 = vunpack.c.h.b16 %v208
  %v1507 = vunpack.c.l.b16 %v209
  %v1508 = vunpack.c.h.b16 %v209
  %v1509 = vunpack.c.l.b16 %v210
  %v1510 = vunpack.c.h.b16 %v210
  %v1511 = vunpack.c.l.b16 %v211
  %v1512 = vunpack.c.h.b16 %v211
  %v1513 = vunpack.c.l.b16 %v212
  %v1514 = vunpack.c.h.b16 %v212
  %v1515 = vunpack.c.l.b16 %v213
  %v1516 = vunpack.c.h.b16 %v213
  %v1517 = vunpack.c.l.b16 %v214
  %v1518 = vunpack.c.h.b16 %v214
  %v1519 = vunpack.c.l.b16 %v215
  %v1520 = vunpack.c.h.b16 %v215
  %v1521 = vunpack.c.l.b16 %v216
  %v1522 = vunpack.c.h.b16 %v216
  %v1523 = vunpack.c.l.b16 %v217
  %v1524 = vunpack.c.h.b16 %v217
  %v1525 = vunpack.c.l.b16 %v218
  %v1526 = vunpack.c.h.b16 %v218
  %v1527 = vunpack.c.l.b16 %v219
  %v1528 = vunpack.c.h.b16 %v219
  %v1529 = vunpack.c.l.b16 %v220
  %v1530 = vunpack.c.h.b16 %v220
  %v1531 = vunpack.c.l.b16 %v221
  %v1532 = vunpack.c.h.b16 %v221
  %v1533 = vunpack.c.l.b16 %v222
  %v1534 = vunpack.c.h.b16 %v222
  %v1535 = vunpack.c.l.b16 %v223
  %v1536 = vunpack.c.h.b16 %v223
  %v1537 = vunpack.c.l.b16 %v224
  %v1538 = vunpack.c.h.b16 %v224
  %v1539 = vunpack.c.l.b16 %v225
  %v1540 = vunpack.c.h.b16 %v225
  %v1541 = vunpack.c.l.b16 %v226
  %v1542 = vunpack.c.h.b16 %v226
  %v1543 = vunpack.c.l.b16 %v227
  %v1544 = vunpack.c.h.b16 %v227
  %v1545 = vunpack.c.l.b16 %v228
  %v1546 = vunpack.c.h.b16 %v228
  %v1547 = vunpack.c.l.b16 %v229
  %v1548 = vunpack.c.h.b16 %v229
  %v1549 = vunpack.c.l.b16 %v230
  %v1550 = vunpack.c.h.b16 %v230
  %v1551 = vunpack.c.l.b16 %v231
  %v1552 = vunpack.c.h.b16 %v231
  %v1553 = vunpack.c.l.b16 %v232
  %v1554 = vunpack.c.h.b16 %v232
  %v1555 = vunpack.c.l.b16 %v233
  %v1556 = vunpack.c.h.b16 %v233
  %v1557 = vunpack.c.l.b16 %v234
  %v1558 = vunpack.c.h.b16 %v234
  %v1559 = vunpack.c.l.b16 %v235
  %v1560 = vunpack.c.h.b16 %v235
  %v1561 = vunpack.c.l.b16 %v236
  %v1562 = vunpack.c.h.b16 %v236
  %v1563 = vunpack.c.l.b16 %v237
  %v1564 = vunpack.c.h.b16 %v237
  %v1565 = vunpack.c.l.b16 %v238
  %v1566 = vunpack.c.h.b16 %v238
  %v1567 = vunpack.c.l.b16 %v239
  %v1568 = vunpack.c.h.b16 %v239
  %v1569 = vunpack.c.l.b16 %v240
  %v1570 = vunpack.c.h.b16 %v240
  %v1571 = vunpack.c.l.b16 %v241
  %v1572 = vunpack.c.h.b16 %v241
  %v1573 = vunpack.c.l.b16 %v242
  %v1574 = vunpack.c.h.b16 %v242
  %v1575 = vunpack.c.l.b16 %v243
  %v1576 = vunpack.c.h.b16 %v243
  %v1577 = vunpack.c.l.b16 %v244
  %v1578 = vunpack.c.h.b16 %v244
  %v1579 = vunpack.c.l.b16 %v245
  %v1580 = vunpack.c.h.b16 %v245
  %v1581 = vunpack.c.l.b16 %v246
  %v1582 = vunpack.c.h.b16 %v246
  %v1583 = vunpack.c.l.b16 %v247
  %v1584 = vunpack.c.h.b16 %v247
  %v1585 = vunpack.c.l.b16 %v248
  %v1586 = vunpack.c.h.b16 %v248
  %v1587 = vunpack.c.l.b16 %v249
  %v1588 = vunpack.c.h.b16 %v249
  %v1589 = vunpack.c.l.b16 %v250
  %v1590 = vunpack.c.h.b16 %v250
  %v1591 = vunpack.c.l.b16 %v251
  %v1592 = vunpack.c.h.b16 %v251
  %v1593 = vunpack.c.l.b16 %v252
  %v1594 = vunpack.c.h.b16 %v252
  %v1595 = vunpack.c.l.b16 %v253
  %v1596 = vunpack.c.h.b16 %v253
  %v1597 = vunpack.c.l.b16 %v254
  %v1598 = vunpack.c.h.b16 %v254
  %v1599 = vunpack.c.l.b16 %v255
  %v1600 = vunpack.c.h.b16 %v255
  %v1601 = vunpack.c.l.b16 %v256
  %v1602 = vunpack.c.h.b16 %v256
  %v1603 = vunpack.c.l.b16 %v257
  %v1604 = vunpack.c.h.b16 %v257
  %v1605 = vunpack.c.l.b16 %v258
  %v1606 = vunpack.c.h.b16 %v258
  %v1607 = vunpack.c.l.b16 %v259
  %v1608 = vunpack.c.h.b16 %v259
  %v1609 = vunpack.c.l.b16 %v260
  %v1610 = vunpack.c.h.b16 %v260
  %v1611 = vunpack.c.l.b16 %v261
  %v1612 = vunpack.c.h.b16 %v261
  %v1613 = vunpack.c.l.b16 %v262
  %v1614 = vunpack.c.h.b16 %v262
  %v1615 = vunpack.c.l.b16 %v263
  %v1616 = vunpack.c.h.b16 %v263
  %v1617 = vunpack.c.l.b16 %v264
  %v1618 = vunpack.c.h.b16 %v264
  %v1619 = vunpack.c.l.b16 %v265
  %v1620 = vunpack.c.h.b16 %v265
  %v1621 = vunpack.c.l.b16 %v266
  %v1622 = vunpack.c.h.b16 %v266
  %v1623 = vunpack.c.l.b16 %v267
  %v1624 = vunpack.c.h.b16 %v267
  %v1625 = vunpack.c.l.b16 %v268
  %v1626 = vunpack.c.h.b16 %v268
  %v1627 = vunpack.c.l.b16 %v269
  %v1628 = vunpack.c.h.b16 %v269
  %v1629 = vunpack.c.l.b16 %v270
  %v1630 = vunpack.c.h.b16 %v270
  %v1631 = vunpack.c.l.b16 %v271
  %v1632 = vunpack.c.h.b16 %v271
  %v1633 = vunpack.c.l.b16 %v272
  %v1634 = vunpack.c.h.b16 %v272
  %v1635 = vunpack.c.l.b16 %v273
  %v1636 = vunpack.c.h.b16 %v273
  %v1637 = vunpack.c.l.b16 %v274
  %v1638 = vunpack.c.h.b16 %v274
  %v1639 = vunpack.c.l.b16 %v275
  %v1640 = vunpack.c.h.b16 %v275
  %v1641 = vunpack.c.l.b16 %v276
  %v1642 = vunpack.c.h.b16 %v276
  %v1643 = vunpack.c.l.b16 %v277
  %v1644 = vunpack.c.h.b16 %v277
  %v1645 = vunpack.c.l.b16 %v278
  %v1646 = vunpack.c.h.b16 %v278
  %v1647 = vunpack.c.l.b16 %v279
  %v1648 = vunpack.c.h.b16 %v279
  %v1649 = vunpack.c.l.b16 %v280
  %v1650 = vunpack.c.h.b16 %v280
  %v1651 = vunpack.c.l.b16 %v281
  %v1652 = vunpack.c.h.b16 %v281
  %v1653 = vunpack.c.l.b16 %v282
  %v1654 = vunpack.c.h.b16 %v282
  %v1655 = vunpack.c.l.b16 %v283
  %v1656 = vunpack.c.h.b16 %v283
  %v1657 = vunpack.c.l.b16 %v284
  %v1658 = vunpack.c.h.b16 %v284
  %v1659 = vunpack.c.l.b16 %v285
  %v1660 = vunpack.c.h.b16 %v285
  %v1661 = vunpack.c.l.b16 %v286
  %v1662 = vunpack.c.h.b16 %v286
  %v1663 = vunpack.c.l.b16 %v287
  %v1664 = vunpack.c.h.b16 %v287
  %v1665 = vunpack.c.l.b16 %v288
  %v1666 = vunpack.c.h.b16 %v288
  %v1667 = vunpack.c.l.b16 %v289
  %v1668 = vunpack.c.h.b16 %v289
  %v1669 = vunpack.c.l.b16 %v290
  %v1670 = vunpack.c.h.b16 %v290
  %v1671 = vunpack.c.l.b16 %v291
  %v1672 = vunpack.c.h.b16 %v291
  %v1673 = vunpack.c.l.b16 %v292
  %v1674 = vunpack.c.h.b16 %v292
  %v1675 = vunpack.c.l.b16 %v293
  %v1676 = vunpack.c.h.b16 %v293
  %v1677 = vunpack.c.l.b16 %v294
  %v1678 = vunpack.c.h.b16 %v294
  %v1679 = vunpack.c.l.b16 %v295
  %v1680 = vunpack.c.h.b16 %v295
  %v1681 = vunpack.c.l.b16 %v296
  %v1682 = vunpack.c.h.b16 %v296
  %v1683 = vunpack.c.l.b16 %v297
  %v1684 = vunpack.c.h.b16 %v297
  %v1685 = vunpack.c.l.b16 %v298
  %v1686 = vunpack.c.h.b16 %v298
  %v1687 = vunpack.c.l.b16 %v299
  %v1688 = vunpack.c.h.b16 %v299
  %v1689 = vunpack.c.l.b16 %v300
  %v1690 = vunpack.c.h.b16 %v300
  %v1691 = vunpack.c.l.b16 %v301
  %v1692 = vunpack.c.h.b16 %v301
  %v1693 = vunpack.c.l.b16 %v302
  %v1694 = vunpack.c.h.b16 %v302
  %v1695 = vunpack.c.l.b16 %v303
  %v1696 = vunpack.c.h.b16 %v303
  %v1697 = vunpack.c.l.b16 %v304
  %v1698 = vunpack.c.h.b16 %v304
  %v1699 = vunpack.c.l.b16 %v305
  %v1700 = vunpack.c.h.b16 %v305
  %v1701 = vunpack.c.l.b16 %v306
  %v1702 = vunpack.c.h.b16 %v306
  %v1703 = vunpack.c.l.b16 %v307
  %v1704 = vunpack.c.h.b16 %v307
  %v1705 = vunpack.c.l.b16 %v308
  %v1706 = vunpack.c.h.b16 %v308
  %v1707 = vunpack.c.l.b16 %v309
  %v1708 = vunpack.c.h.b16 %v309
  %v1709 = vunpack.c.l.b16 %v310
  %v1710 = vunpack.c.h.b16 %v310
  %v1711 = vunpack.c.l.b16 %v311
  %v1712 = vunpack.c.h.b16 %v311
  %v1713 = vunpack.c.l.b16 %v312
  %v1714 = vunpack.c.h.b16 %v312
  %v1715 = vunpack.c.l.b16 %v313
  %v1716 = vunpack.c.h.b16 %v313
  %v1717 = vunpack.c.l.b16 %v314
  %v1718 = vunpack.c.h.b16 %v314
  %v1719 = vunpack.c.l.b16 %v315
  %v1720 = vunpack.c.h.b16 %v315
  %v1721 = vunpack.c.l.b16 %v316
  %v1722 = vunpack.c.h.b16 %v316
  %v1723 = vunpack.c.l.b16 %v317
  %v1724 = vunpack.c.h.b16 %v317
  %v1725 = vunpack.c.l.b16 %v318
  %v1726 = vunpack.c.h.b16 %v318
  %v1727 = vunpack.c.l.b16 %v319
  %v1728 = vunpack.c.h.b16 %v319
  %v1729 = vunpack.c.l.b16 %v320
  %v1730 = vunpack.c.h.b16 %v320
  %v1731 = vunpack.c.l.b16 %v321
  %v1732 = vunpack.c.h.b16 %v321
  %v1733 = vunpack.c.l.b16 %v322
  %v1734 = vunpack.c.h.b16 %v322
  %v1735 = vunpack.c.l.b16 %v323
  %v1736 = vunpack.c.h.b16 %v323
  %v1737 = vunpack.c.l.b16 %v324
  %v1738 = vunpack.c.h.b16 %v324
  %v1739 = vunpack.c.l.b16 %v325
  %v1740 = vunpack.c.h.b16 %v325
  %v1741 = vunpack.c.l.b16 %v326
  %v1742 = vunpack.c.h.b16 %v326
  %v1743 = vunpack.c.l.b16 %v327
  %v1744 = vunpack.c.h.b16 %v327
  %v1745 = vunpack.c.l.b16 %v328
  %v1746 = vunpack.c.h.b16 %v328
  %v1747 = vunpack.c.l.b16 %v329
  %v1748 = vunpack.c.h.b16 %v329
  %v1749 = vunpack.c.l.b16 %v330
  %v1750 = vunpack.c.h.b16 %v330
  %v1751 = vunpack.c.l.b16 %v331
  %v1752 = vunpack.c.h.b16 %v331
  %v1753 = vunpack.c.l.b16 %v332
  %v1754 = vunpack.c.h.b16 %v332
  %v1755 = vunpack.c.l.b16 %v333
  %v1756 = vunpack.c.h.b16 %v333
  %v1757 = vunpack.c.l.b16 %v334
  %v1758 = vunpack.c.h.b16 %v334
  %v1759 = vunpack.c.l.b16 %v335
  %v1760 = vunpack.c.h.b16 %v335
  %v1761 = vunpack.c.l.b16 %v336
  %v1762 = vunpack.c.h.b16 %v336
  %v1763 = vunpack.c.l.b16 %v337
  %v1764 = vunpack.c.h.b16 %v337
  %v1765 = vunpack.c.l.b16 %v338
  %v1766 = vunpack.c.h.b16 %v338
  %v1767 = vunpack.c.l.b16 %v339
  %v1768 = vunpack.c.h.b16 %v339
  %v1769 = vunpack.c.l.b16 %v340
  %v1770 = vunpack.c.h.b16 %v340
  %v1771 = vunpack.c.l.b16 %v341
  %v1772 = vunpack.c.h.b16 %v341
  %v1773 = vunpack.c.l.b16 %v342
  %v1774 = vunpack.c.h.b16 %v342
  %v1775 = vunpack.c.l.b16 %v343
  %v1776 = vunpack.c.h.b16 %v343
  %v1777 = vunpack.c.l.b16 %v344
  %v1778 = vunpack.c.h.b16 %v344
  %v1779 = vunpack.c.l.b16 %v345
  %v1780 = vunpack.c.h.b16 %v345
  %v1781 = vunpack.c.l.b16 %v346
  %v1782 = vunpack.c.h.b16 %v346
  %v1783 = vunpack.c.l.b16 %v347
  %v1784 = vunpack.c.h.b16 %v347
  %v1785 = vunpack.c.l.b16 %v348
  %v1786 = vunpack.c.h.b16 %v348
  %v1787 = vunpack.c.l.b16 %v349
  %v1788 = vunpack.c.h.b16 %v349
  %v1789 = vunpack.c.l.b16 %v350
  %v1790 = vunpack.c.h.b16 %v350
  %v1791 = vunpack.c.l.b16 %v351
  %v1792 = vunpack.c.h.b16 %v351
  %v1793 = vunpack.c.l.b16 %v352
  %v1794 = vunpack.c.h.b16 %v352
  %v1795 = vunpack.c.l.b16 %v353
  %v1796 = vunpack.c.h.b16 %v353
  %v1797 = vunpack.c.l.b16 %v354
  %v1798 = vunpack.c.h.b16 %v354
  %v1799 = vunpack.c.l.b16 %v355
  %v1800 = vunpack.c.h.b16 %v355
  %v1801 = vunpack.c.l.b16 %v356
  %v1802 = vunpack.c.h.b16 %v356
  %v1803 = vunpack.c.l.b16 %v357
  %v1804 = vunpack.c.h.b16 %v357
  %v1805 = vunpack.c.l.b16 %v358
  %v1806 = vunpack.c.h.b16 %v358
  %v1807 = vunpack.c.l.b16 %v359
  %v1808 = vunpack.c.h.b16 %v359
  %v1809 = vunpack.c.l.b16 %v360
  %v1810 = vunpack.c.h.b16 %v360
  %v1811 = vunpack.c.l.b16 %v361
  %v1812 = vunpack.c.h.b16 %v361
  %v1813 = vunpack.c.l.b16 %v362
  %v1814 = vunpack.c.h.b16 %v362
  %v1815 = vunpack.c.l.b16 %v363
  %v1816 = vunpack.c.h.b16 %v363
  %v1817 = vunpack.c.l.b16 %v364
  %v1818 = vunpack.c.h.b16 %v364
  %v1819 = vunpack.c.l.b16 %v365
  %v1820 = vunpack.c.h.b16 %v365
  %v1821 = vunpack.c.l.b16 %v366
  %v1822 = vunpack.c.h.b16 %v366
  %v1823 = vunpack.c.l.b16 %v367
  %v1824 = vunpack.c.h.b16 %v367
  %v1825 = vunpack.c.l.b16 %v368
  %v1826 = vunpack.c.h.b16 %v368
  %v1827 = vunpack.c.l.b16 %v369
  %v1828 = vunpack.c.h.b16 %v369
  %v1829 = vunpack.c.l.b16 %v370
  %v1830 = vunpack.c.h.b16 %v370
  %v1831 = vunpack.c.l.b16 %v371
  %v1832 = vunpack.c.h.b16 %v371
  %v1833 = vunpack.c.l.b16 %v372
  %v1834 = vunpack.c.h.b16 %v372
  %v1835 = vunpack.c.l.b16 %v373
  %v1836 = vunpack.c.h.b16 %v373
  %v1837 = vunpack.c.l.b16 %v374
  %v1838 = vunpack.c.h.b16 %v374
  %v1839 = vunpack.c.l.b16 %v375
  %v1840 = vunpack.c.h.b16 %v375
  %v1841 = vunpack.c.l.b16 %v376
  %v1842 = vunpack.c.h.b16 %v376
  %v1843 = vunpack.c.l.b16 %v377
  %v1844 = vunpack.c.h.b16 %v377
  %v1845 = vunpack.c.l.b16 %v378
  %v1846 = vunpack.c.h.b16 %v378
  %v1847 = vunpack.c.l.b16 %v379
  %v1848 = vunpack.c.h.b16 %v379
  %v1849 = vunpack.c.l.b16 %v380
  %v1850 = vunpack.c.h.b16 %v380
  %v1851 = vunpack.c.l.b16 %v381
  %v1852 = vunpack.c.h.b16 %v381
  %v1853 = vunpack.c.l.b16 %v382
  %v1854 = vunpack.c.h.b16 %v382
  %v1855 = vunpack.c.l.b16 %v383
  %v1856 = vunpack.c.h.b16 %v383
  %v1857 = vunpack.c.l.b16 %v384
  %v1858 = vunpack.c.h.b16 %v384
  %v1859 = vunpack.c.l.b16 %v385
  %v1860 = vunpack.c.h.b16 %v385
  %v1861 = vunpack.c.l.b16 %v386
  %v1862 = vunpack.c.h.b16 %v386
  %v1863 = vunpack.c.l.b16 %v387
  %v1864 = vunpack.c.h.b16 %v387
  %v1865 = vunpack.c.l.b16 %v388
  %v1866 = vunpack.c.h.b16 %v388
  %v1867 = vunpack.c.l.b16 %v389
  %v1868 = vunpack.c.h.b16 %v389
  %v1869 = vunpack.c.l.b16 %v390
  %v1870 = vunpack.c.h.b16 %v390
  %v1871 = vunpack.c.l.b16 %v391
  %v1872 = vunpack.c.h.b16 %v391
  %v1873 = vunpack.c.l.b16 %v392
  %v1874 = vunpack.c.h.b16 %v392
  %v1875 = vunpack.c.l.b16 %v393
  %v1876 = vunpack.c.h.b16 %v393
  %v1877 = vunpack.c.l.b16 %v394
  %v1878 = vunpack.c.h.b16 %v394
  %v1879 = vunpack.c.l.b16 %v395
  %v1880 = vunpack.c.h.b16 %v395
  %v1881 = vunpack.c.l.b16 %v396
  %v1882 = vunpack.c.h.b16 %v396
  %v1883 = vunpack.c.l.b16 %v397
  %v1884 = vunpack.c.h.b16 %v397
  %v1885 = vunpack.c.l.b16 %v398
  %v1886 = vunpack.c.h.b16 %v398
  %v1887 = vunpack.c.l.b16 %v399
  %v1888 = vunpack.c.h.b16 %v399
  %v1889 = vunpack.c.l.b16 %v400
  %v1890 = vunpack.c.h.b16 %v400
  %v1891 = vunpack.c.l.b16 %v401
  %v1892 = vunpack.c.h.b16 %v401
  %v1893 = vunpack.c.l.b16 %v402
  %v1894 = vunpack.c.h.b16 %v402
  %v1895 = vunpack.c.l.b16 %v403
  %v1896 = vunpack.c.h.b16 %v403
  %v1897 = vunpack.c.l.b16 %v404
  %v1898 = vunpack.c.h.b16 %v404
  %v1899 = vunpack.c.l.b16 %v405
  %v1900 = vunpack.c.h.b16 %v405
  %v1901 = vunpack.c.l.b16 %v406
  %v1902 = vunpack.c.h.b16 %v406
  %v1903 = vunpack.c.l.b16 %v407
  %v1904 = vunpack.c.h.b16 %v407
  %v1905 = vunpack.c.l.b16 %v408
  %v1906 = vunpack.c.h.b16 %v408
  %v1907 = vunpack.c.l.b16 %v409
  %v1908 = vunpack.c.h.b16 %v409
  %v1909 = vunpack.c.l.b16 %v410
  %v1910 = vunpack.c.h.b16 %v410
  %v1911 = vunpack.c.l.b16 %v411
  %v1912 = vunpack.c.h.b16 %v411
  %v1913 = vunpack.c.l.b16 %v412
  %v1914 = vunpack.c.h.b16 %v412
  %v1915 = vunpack.c.l.b16 %v413
  %v1916 = vunpack.c.h.b16 %v413
  %v1917 = vunpack.c.l.b16 %v414
  %v1918 = vunpack.c.h.b16 %v414
  %v1919 = vunpack.c.l.b16 %v415
  %v1920 = vunpack.c.h.b16 %v415
  %v1921 = vunpack.c.l.b16 %v416
  %v1922 = vunpack.c.h.b16 %v416
  %v1923 = vunpack.c.l.b16 %v417
  %v1924 = vunpack.c.h.b16 %v417
  %v1925 = vunpack.c.l.b16 %v418
  %v1926 = vunpack.c.h.b16 %v418
  %v1927 = vunpack.c.l.b16 %v419
  %v1928 = vunpack.c.h.b16 %v419
  %v1929 = vunpack.c.l.b16 %v420
  %v1930 = vunpack.c.h.b16 %v420
  %v1931 = vunpack.c.l.b16 %v421
  %v1932 = vunpack.c.h.b16 %v421
  %v1933 = vunpack.c.l.b16 %v422
  %v1934 = vunpack.c.h.b16 %v422
  %v1935 = vunpack.c.l.b16 %v423
  %v1936 = vunpack.c.h.b16 %v423
  %v1937 = vunpack.c.l.b16 %v424
  %v1938 = vunpack.c.h.b16 %v424
  %v1939 = vunpack.c.l.b16 %v425
  %v1940 = vunpack.c.h.b16 %v425
  %v1941 = vunpack.c.l.b16 %v426
  %v1942 = vunpack.c.h.b16 %v426
  %v1943 = vunpack.c.l.b16 %v427
  %v1944 = vunpack.c.h.b16 %v427
  %v1945 = vunpack.c.l.b16 %v428
  %v1946 = vunpack.c.h.b16 %v428
  %v1947 = vunpack.c.l.b16 %v429
  %v1948 = vunpack.c.h.b16 %v429
  %v1949 = vunpack.c.l.b16 %v430
  %v1950 = vunpack.c.h.b16 %v430
  %v1951 = vunpack.c.l.b16 %v431
  %v1952 = vunpack.c.h.b16 %v431
  %v1953 = vunpack.c.l.b16 %v432
  %v1954 = vunpack.c.h.b16 %v432
  %v1955 = vunpack.c.l.b16 %v433
  %v1956 = vunpack.c.h.b16 %v433
  %v1957 = vunpack.c.l.b16 %v434
  %v1958 = vunpack.c.h.b16 %v434
  %v1959 = vunpack.c.l.b16 %v435
  %v1960 = vunpack.c.h.b16 %v435
  %v1961 = vunpack.c.l.b16 %v436
  %v1962 = vunpack.c.h.b16 %v436
  %v1963 = vunpack.c.l.b16 %v437
  %v1964 = vunpack.c.h.b16 %v437
  %v1965 = vunpack.c.l.b16 %v438
  %v1966 = vunpack.c.h.b16 %v438
  %v1967 = vunpack.c.l.b16 %v439
  %v1968 = vunpack.c.h.b16 %v439
  %v1969 = vunpack.c.l.b16 %v440
  %v1970 = vunpack.c.h.b16 %v440
  %v1971 = vunpack.c.l.b16 %v441
  %v1972 = vunpack.c.h.b16 %v441
  %v1973 = vunpack.c.l.b16 %v442
  %v1974 = vunpack.c.h.b16 %v442
  %v1975 = vunpack.c.l.b16 %v443
  %v1976 = vunpack.c.h.b16 %v443
  %v1977 = vunpack.c.l.b16 %v444
  %v1978 = vunpack.c.h.b16 %v444
  %v1979 = vunpack.c.l.b16 %v445
  %v1980 = vunpack.c.h.b16 %v445
  %v1981 = vunpack.c.l.b16 %v446
  %v1982 = vunpack.c.h.b16 %v446
  %v1983 = vunpack.c.l.b16 %v447
  %v1984 = vunpack.c.h.b16 %v447
  %v1985 = vunpack.c.l.b16 %v448
  %v1986 = vunpack.c.h.b16 %v448
  %v1987 = vunpack.c.l.b16 %v449
  %v1988 = vunpack.c.h.b16 %v449
  %v1989 = vunpack.c.l.b16 %v450
  %v1990 = vunpack.c.h.b16 %v450
  %v1991 = vunpack.c.l.b16 %v451
  %v1992 = vunpack.c.h.b16 %v451
  %v1993 = vunpack.c.l.b16 %v452
  %v1994 = vunpack.c.h.b16 %v452
  %v1995 = vunpack.c.l.b16 %v453
  %v1996 = vunpack.c.h.b16 %v453
  %v1997 = vunpack.c.l.b16 %v454
  %v1998 = vunpack.c.h.b16 %v454
  %v1999 = vunpack.c.l.b16 %v455
  %v2000 = vunpack.c.h.b16 %v455
  %v2001 = vunpack.c.l.b16 %v456
  %v2002 = vunpack.c.h.b16 %v456
  %v2003 = vunpack.c.l.b16 %v457
  %v2004 = vunpack.c.h.b16 %v457
  %v2005 = vunpack.c.l.b16 %v458
  %v2006 = vunpack.c.h.b16 %v458
  %v2007 = vunpack.c.l.b16 %v459
  %v2008 = vunpack.c.h.b16 %v459
  %v2009 = vunpack.c.l.b16 %v460
  %v2010 = vunpack.c.h.b16 %v460
  %v2011 = vunpack.c.l.b16 %v461
  %v2012 = vunpack.c.h.b16 %v461
  %v2013 = vunpack.c.l.b16 %v462
  %v2014 = vunpack.c.h.b16 %v462
  %v2015 = vunpack.c.l.b16 %v463
  %v2016 = vunpack.c.h.b16 %v463
  %v2017 = vunpack.c.l.b16 %v464
  %v2018 = vunpack.c.h.b16 %v464
  %v2019 = vunpack.c.l.b16 %v465
  %v2020 = vunpack.c.h.b16 %v465
  %v2021 = vunpack.c.l.b16 %v466
  %v2022 = vunpack.c.h.b16 %v466
  %v2023 = vunpack.c.l.b16 %v467
  %v2024 = vunpack.c.h.b16 %v467
  %v2025 = vunpack.c.l.b16 %v468
  %v2026 = vunpack.c.h.b16 %v468
  %v2027 = vunpack.c.l.b16 %v469
  %v2028 = vunpack.c.h.b16 %v469
  %v2029 = vunpack.c.l.b16 %v470
  %v2030 = vunpack.c.h.b16 %v470
  %v2031 = vunpack.c.l.b16 %v471
  %v2032 = vunpack.c.h.b16 %v471
  %v2033 = vunpack.c.l.b16 %v472
  %v2034 = vunpack.c.h.b16 %v472
  %v2035 = vunpack.c.l.b16 %v473
  %v2036 = vunpack.c.h.b16 %v473
  %v2037 = vunpack.c.l.b16 %v474
  %v2038 = vunpack.c.h.b16 %v474
  %v2039 = vunpack.c.l.b16 %v475
  %v2040 = vunpack.c.h.b16 %v475
  %v2041 = vunpack.c.l.b16 %v476
  %v2042 = vunpack.c.h.b16 %v476
  %v2043 = vunpack.c.l.b16 %v477
  %v2044 = vunpack.c.h.b16 %v477
  %v2045 = vunpack.c.l.b16 %v478
  %v2046 = vunpack.c.h.b16 %v478
  %v2047 = vunpack.c.l.b16 %v479
  %v2048 = vunpack.c.h.b16 %v479
  %v2049 = vunpack.c.l.b16 %v480
  %v2050 = vunpack.c.h.b16 %v480
  %v2051 = vunpack.c.l.b16 %v481
  %v2052 = vunpack.c.h.b16 %v481
  %v2053 = vunpack.c.l.b16 %v482
  %v2054 = vunpack.c.h.b16 %v482
  %v2055 = vunpack.c.l.b16 %v483
  %v2056 = vunpack.c.h.b16 %v483
  %v2057 = vunpack.c.l.b16 %v484
  %v2058 = vunpack.c.h.b16 %v484
  %v2059 = vunpack.c.l.b16 %v485
  %v2060 = vunpack.c.h.b16 %v485
  %v2061 = vunpack.c.l.b16 %v486
  %v2062 = vunpack.c.h.b16 %v486
  %v2063 = vunpack.c.l.b16 %v487
  %v2064 = vunpack.c.h.b16 %v487
  %v2065 = vunpack.c.l.b16 %v488
  %v2066 = vunpack.c.h.b16 %v488
  %v2067 = vunpack.c.l.b16 %v489
  %v2068 = vunpack.c.h.b16 %v489
  %v2069 = vunpack.c.l.b16 %v490
  %v2070 = vunpack.c.h.b16 %v490
  %v2071 = vunpack.c.l.b16 %v491
  %v2072 = vunpack.c.h.b16 %v491
  %v2073 = vunpack.c.l.b16 %v492
  %v2074 = vunpack.c.h.b16 %v492
  %v2075 = vunpack.c.l.b16 %v493
  %v2076 = vunpack.c.h.b16 %v493
  %v2077 = vunpack.c.l.b16 %v494
  %v2078 = vunpack.c.h.b16 %v494
  %v2079 = vunpack.c.l.b16 %v495
  %v2080 = vunpack.c.h.b16 %v495
  %v2081 = vunpack.c.l.b16 %v496
  %v2082 = vunpack.c.h.b16 %v496
  %v2083 = vunpack.c.l.b16 %v497
  %v2084 = vunpack.c.h.b16 %v497
  %v2085 = vunpack.c.l.b16 %v498
  %v2086 = vunpack.c.h.b16 %v498
  %v2087 = vunpack.c.l.b16 %v499
  %v2088 = vunpack.c.h.b16 %v499
  %v2089 = vunpack.c.l.b16 %v500
  %v2090 = vunpack.c.h.b16 %v500
  %v2091 = vunpack.c.l.b16 %v501
  %v2092 = vunpack.c.h.b16 %v501
  %v2093 = vunpack.c.l.b16 %v502
  %v2094 = vunpack.c.h.b16 %v502
  %v2095 = vunpack.c.l.b16 %v503
  %v2096 = vunpack.c.h.b16 %v503
  %v2097 = vunpack.c.l.b16 %v504
  %v2098 = vunpack.c.h.b16 %v504
  %v2099 = vunpack.c.l.b16 %v505
  %v2100 = vunpack.c.h.b16 %v505
  %v2101 = vunpack.c.l.b16 %v506
  %v2102 = vunpack.c.h.b16 %v506
  %v2103 = vunpack.c.l.b16 %v507
  %v2104 = vunpack.c.h.b16 %v507
  %v2105 = vunpack.c.l.b16 %v508
  %v2106 = vunpack.c.h.b16 %v508
  %v2107 = vunpack.c.l.b16 %v509
  %v2108 = vunpack.c.h.b16 %v509
  %v2109 = vunpack.c.l.b16 %v510
  %v2110 = vunpack.c.h.b16 %v510
  %v2111 = vunpack.c.l.b16 %v511
  %v2112 = vunpack.c.h.b16 %v511
  %v2113 = vunpack.c.l.b16 %v512
  %v2114 = vunpack.c.h.b16 %v512
  %v2115 = vunpack.c.l.b16 %v513
  %v2116 = vunpack.c.h.b16 %v513
  %v2117 = vunpack.c.l.b16 %v514
  %v2118 = vunpack.c.h.b16 %v514
  %v2119 = vunpack.c.l.b16 %v515
  %v2120 = vunpack.c.h.b16 %v515
  %v2121 = vunpack.c.l.b16 %v516
  %v2122 = vunpack.c.h.b16 %v516
  %v2123 = vunpack.c.l.b16 %v517
  %v2124 = vunpack.c.h.b16 %v517
  %v2125 = vunpack.c.l.b16 %v518
  %v2126 = vunpack.c.h.b16 %v518
  %v2127 = vunpack.c.l.b16 %v519
  %v2128 = vunpack.c.h.b16 %v519
  %v2129 = vunpack.c.l.b16 %v520
  %v2130 = vunpack.c.h.b16 %v520
  %v2131 = vunpack.c.l.b16 %v521
  %v2132 = vunpack.c.h.b16 %v521
  %v2133 = vunpack.c.l.b16 %v522
  %v2134 = vunpack.c.h.b16 %v522
  %v2135 = vunpack.c.l.b16 %v523
  %v2136 = vunpack.c.h.b16 %v523
  %v2137 = vunpack.c.l.b16 %v524
  %v2138 = vunpack.c.h.b16 %v524
  %v2139 = vunpack.c.l.b16 %v525
  %v2140 = vunpack.c.h.b16 %v525
  %v2141 = vunpack.c.l.b16 %v526
  %v2142 = vunpack.c.h.b16 %v526
  %v2143 = vunpack.c.l.b16 %v527
  %v2144 = vunpack.c.h.b16 %v527
  %v2145 = vunpack.c.l.b16 %v528
  %v2146 = vunpack.c.h.b16 %v528
  %v2147 = vunpack.c.l.b16 %v529
  %v2148 = vunpack.c.h.b16 %v529
  %v2149 = vunpack.c.l.b16 %v530
  %v2150 = vunpack.c.h.b16 %v530
  %v2151 = vunpack.c.l.b16 %v531
  %v2152 = vunpack.c.h.b16 %v531
  %v2153 = vunpack.c.l.b16 %v532
  %v2154 = vunpack.c.h.b16 %v532
  %v2155 = vunpack.c.l.b16 %v533
  %v2156 = vunpack.c.h.b16 %v533
  %v2157 = vunpack.c.l.b16 %v534
  %v2158 = vunpack.c.h.b16 %v534
  %v2159 = vunpack.c.l.b16 %v535
  %v2160 = vunpack.c.h.b16 %v535
  %v2161 = vunpack.c.l.b16 %v536
  %v2162 = vunpack.c.h.b16 %v536
  %v2163 = vunpack.c.l.b16 %v537
  %v2164 = vunpack.c.h.b16 %v537
  %v2165 = vunpack.c.l.b16 %v538
  %v2166 = vunpack.c.h.b16 %v538
  %v2167 = vunpack.c.l.b16 %v539
  %v2168 = vunpack.c.h.b16 %v539
  %v2169 = vunpack.c.l.b16 %v540
  %v2170 = vunpack.c.h.b16 %v540
  %v2171 = vunpack.c.l.b16 %v541
  %v2172 = vunpack.c.h.b16 %v541
  %v2173 = vunpack.c.l.b16 %v542
  %v2174 = vunpack.c.h.b16 %v542
  %v2175 = vunpack.c.l.b16 %v543
  %v2176 = vunpack.c.h.b16 %v543
  %v2177 = vunpack.c.l.b16 %v544
  %v2178 = vunpack.c.h.b16 %v544
  %v2179 = vunpack.c.l.b16 %v545
  %v2180 = vunpack.c.h.b16 %v545
  %v2181 = vunpack.c.l.b16 %v546
  %v2182 = vunpack.c.h.b16 %v546
  %v2183 = vunpack.c.l.b16 %v547
  %v2184 = vunpack.c.h.b16 %v547
  %v2185 = vunpack.c.l.b16 %v548
  %v2186 = vunpack.c.h.b16 %v548
  %v2187 = vpack.c.b16 %v1167, %v1163
  %v2188 = vpack.c.b16 %v1168, %v1164
  %v2189 = vpack.c.b16 %v1169, %v1165
  %v2190 = vpack.c.b16 %v1170, %v1166
  %v2191 = vpack.c.b16 %v1175, %v1171
  %v2192 = vpack.c.b16 %v1176, %v1172
  %v2193 = vpack.c.b16 %v1177, %v1173
  %v2194 = vpack.c.b16 %v1178, %v1174
  %v2195 = vpack.c.b16 %v1183, %v1179
  %v2196 = vpack.c.b16 %v1184, %v1180
  %v2197 = vpack.c.b16 %v1185, %v1181
  %v2198 = vpack.c.b16 %v1186, %v1182
  %v2199 = vpack.c.b16 %v1191, %v1187
  %v2200 = vpack.c.b16 %v1192, %v1188
  %v2201 = vpack.c.b16 %v1193, %v1189
  %v2202 = vpack.c.b16 %v1194, %v1190
  %v2203 = vpack.c.b16 %v1199, %v1195
  %v2204 = vpack.c.b16 %v1200, %v1196
  %v2205 = vpack.c.b16 %v1201, %v1197
  %v2206 = vpack.c.b16 %v1202, %v1198
  %v2207 = vpack.c.b16 %v1207, %v1203
  %v2208 = vpack.c.b16 %v1208, %v1204
  %v2209 = vpack.c.b16 %v1209, %v1205
  %v2210 = vpack.c.b16 %v1210, %v1206
  %v2211 = vpack.c.b16 %v1215, %v1211
  %v2212 = vpack.c.b16 %v1216, %v1212
  %v2213 = vpack.c.b16 %v1217, %v1213
  %v2214 = vpack.c.b16 %v1218, %v1214
  %v2215 = vpack.c.b16 %v1223, %v1219
  %v2216 = vpack.c.b16 %v1224, %v1220
  %v2217 = vpack.c.b16 %v1225, %v1221
  %v2218 = vpack.c.b16 %v1226, %v1222
  %v2219 = vpack.c.b16 %v1231, %v1227
  %v2220 = vpack.c.b16 %v1232, %v1228
  %v2221 = vpack.c.b16 %v1233, %v1229
  %v2222 = vpack.c.b16 %v1234, %v1230
  %v2223 = vpack.c.b16 %v1239, %v1235
  %v2224 = vpack.c.b16 %v1240, %v1236
  %v2225 = vpack.c.b16 %v1241, %v1237
  %v2226 = vpack.c.b16 %v1242, %v1238
  %v2227 = vpack.c.b16 %v1247, %v1243
  %v2228 = vpack.c.b16 %v1248, %v1244
  %v2229 = vpack.c.b16 %v1249, %v1245
  %v2230 = vpack.c.b16 %v1250, %v1246
  %v2231 = vpack.c.b16 %v1255, %v1251
  %v2232 = vpack.c.b16 %v1256, %v1252
  %v2233 = vpack.c.b16 %v1257, %v1253
  %v2234 = vpack.c.b16 %v1258, %v1254
  %v2235 = vpack.c.b16 %v1263, %v1259
  %v2236 = vpack.c.b16 %v1264, %v1260
  %v2237 = vpack.c.b16 %v1265, %v1261
  %v2238 = vpack.c.b16 %v1266, %v1262
  %v2239 = vpack.c.b16 %v1271, %v1267
  %v2240 = vpack.c.b16 %v1272, %v1268
  %v2241 = vpack.c.b16 %v1273, %v1269
  %v2242 = vpack.c.b16 %v1274, %v1270
  %v2243 = vpack.c.b16 %v1279, %v1275
  %v2244 = vpack.c.b16 %v1280, %v1276
  %v2245 = vpack.c.b16 %v1281, %v1277
  %v2246 = vpack.c.b16 %v1282, %v1278
  %v2247 = vpack.c.b16 %v1287, %v1283
  %v2248 = vpack.c.b16 %v1288, %v1284
  %v2249 = vpack.c.b16 %v1289, %v1285
  %v2250 = vpack.c.b16 %v1290, %v1286
  %v2251 = vpack.c.b16 %v1295, %v1291
  %v2252 = vpack.c.b16 %v1296, %v1292
  %v2253 = vpack.c.b16 %v1297, %v1293
  %v2254 = vpack.c.b16 %v1298, %v1294
  %v2255 = vpack.c.b16 %v1303, %v1299
  %v2256 = vpack.c.b16 %v1304, %v1300
  %v2257 = vpack.c.b16 %v1305, %v1301
  %v2258 = vpack.c.b16 %v1306, %v1302
  %v2259 = vpack.c.b16 %v1311, %v1307
  %v2260 = vpack.c.b16 %v1312, %v1308
  %v2261 = vpack.c.b16 %v1313, %v1309
  %v2262 = vpack.c.b16 %v1314, %v1310
  %v2263 = vpack.c.b16 %v1319, %v1315
  %v2264 = vpack.c.b16 %v1320, %v1316
  %v2265 = vpack.c.b16 %v1321, %v1317
  %v2266 = vpack.c.b16 %v1322, %v1318
  %v2267 = vpack.c.b16 %v1327, %v1323
  %v2268 = vpack.c.b16 %v1328, %v1324
  %v2269 = vpack.c.b16 %v1329, %v1325
  %v2270 = vpack.c.b16 %v1330, %v1326
  %v2271 = vpack.c.b16 %v1335, %v1331
  %v2272 = vpack.c.b16 %v1336, %v1332
  %v2273 = vpack.c.b16 %v1337, %v1333
  %v2274 = vpack.c.b16 %v1338, %v1334
  %v2275 = vpack.c.b16 %v1343, %v1339
  %v2276 = vpack.c.b16 %v1344, %v1340
  %v2277 = vpack.c.b16 %v1345, %v1341
  %v2278 = vpack.c.b16 %v1346, %v1342
  %v2279 = vpack.c.b16 %v1351, %v1347
  %v2280 = vpack.c.b16 %v1352, %v1348
  %v2281 = vpack.c.b16 %v1353, %v1349
  %v2282 = vpack.c.b16 %v1354, %v1350
  %v2283 = vpack.c.b16 %v1359, %v1355
  %v2284 = vpack.c.b16 %v1360, %v1356
  %v2285 = vpack.c.b16 %v1361, %v1357
  %v2286 = vpack.c.b16 %v1362, %v1358
  %v2287 = vpack.c.b16 %v1367, %v1363
  %v2288 = vpack.c.b16 %v1368, %v1364
  %v2289 = vpack.c.b16 %v1369, %v1365
  %v2290 = vpack.c.b16 %v1370, %v1366
  %v2291 = vpack.c.b16 %v1375, %v1371
  %v2292 = vpack.c.b16 %v1376, %v1372
  %v2293 = vpack.c.b16 %v1377, %v1373
  %v2294 = vpack.c.b16 %v1378, %v1374
  %v2295 = vpack.c.b16 %v1383, %v1379
  %v2296 = vpack.c.b16 %v1384, %v1380
  %v2297 = vpack.c.b16 %v1385, %v1381
  %v2298 = vpack.c.b16 %v1386, %v1382
  %v2299 = vpack.c.b16 %v1391, %v1387
  %v2300 = vpack.c.b16 %v1392, %v1388
  %v2301 = vpack.c.b16 %v1393, %v1389
  %v2302 = vpack.c.b16 %v1394, %v1390
  %v2303 = vpack.c.b16 %v1399, %v1395
  %v2304 = vpack.c.b16 %v1400, %v1396
  %v2305 = vpack.c.b16 %v1401, %v1397
  %v2306 = vpack.c.b16 %v1402, %v1398
  %v2307 = vpack.c.b16 %v1407, %v1403
  %v2308 = vpack.c.b16 %v1408, %v1404
  %v2309 = vpack.c.b16 %v1409, %v1405
  %v2310 = vpack.c.b16 %v1410, %v1406
  %v2311 = vpack.c.b16 %v1415, %v1411
  %v2312 = vpack.c.b16 %v1416, %v1412
  %v2313 = vpack.c.b16 %v1417, %v1413
  %v2314 = vpack.c.b16 %v1418, %v1414
  %v2315 = vpack.c.b16 %v1423, %v1419
  %v2316 = vpack.c.b16 %v1424, %v1420
  %v2317 = vpack.c.b16 %v1425, %v1421
  %v2318 = vpack.c.b16 %v1426, %v1422
  %v2319 = vpack.c.b16 %v1431, %v1427
  %v2320 = vpack.c.b16 %v1432, %v1428
  %v2321 = vpack.c.b16 %v1433, %v1429
  %v2322 = vpack.c.b16 %v1434, %v1430
  %v2323 = vpack.c.b16 %v1439, %v1435
  %v2324 = vpack.c.b16 %v1440, %v1436
  %v2325 = vpack.c.b16 %v1441, %v1437
  %v2326 = vpack.c.b16 %v1442, %v1438
  %v2327 = vpack.c.b16 %v1447, %v1443
  %v2328 = vpack.c.b16 %v1448, %v1444
  %v2329 = vpack.c.b16 %v1449, %v1445
  %v2330 = vpack.c.b16 %v1450, %v1446
  %v2331 = vpack.c.b16 %v1455, %v1451
  %v2332 = vpack.c.b16 %v1456, %v1452
  %v2333 = vpack.c.b16 %v1457, %v1453
  %v2334 = vpack.c.b16 %v1458, %v1454
  %v2335 = vpack.c.b16 %v1463, %v1459
  %v2336 = vpack.c.b16 %v1464, %v1460
  %v2337 = vpack.c.b16 %v1465, %v1461
  %v2338 = vpack.c.b16 %v1466, %v1462
  %v2339 = vpack.c.b16 %v1471, %v1467
  %v2340 = vpack.c.b16 %v1472, %v1468
  %v2341 = vpack.c.b16 %v1473, %v1469
  %v2342 = vpack.c.b16 %v1474, %v1470
  %v2343 = vpack.c.b16 %v1479, %v1475
  %v2344 = vpack.c.b16 %v1480, %v1476
  %v2345 = vpack.c.b16 %v1481, %v1477
  %v2346 = vpack.c.b16 %v1482, %v1478
  %v2347 = vpack.c.b16 %v1487, %v1483
  %v2348 = vpack.c.b16 %v1488, %v1484
  %v2349 = vpack.c.b16 %v1489, %v1485
  %v2350 = vpack.c.b16 %v1490, %v1486
  %v2351 = vpack.c.b16 %v1495, %v1491
  %v2352 = vpack.c.b16 %v1496, %v1492
  %v2353 = vpack.c.b16 %v1497, %v1493
  %v2354 = vpack.c.b16 %v1498, %v1494
  %v2355 = vpack.c.b16 %v1503, %v1499
  %v2356 = vpack.c.b16 %v1504, %v1500
  %v2357 = vpack.c.b16 %v1505, %v1501
  %v2358 = vpack.c.b16 %v1506, %v1502
  %v2359 = vpack.c.b16 %v1511, %v1507
  %v2360 = vpack.c.b16 %v1512, %v1508
  %v2361 = vpack.c.b16 %v1513, %v1509
  %v2362 = vpack.c.b16 %v1514, %v1510
  %v2363 = vpack.c.b16 %v1519, %v1515
  %v2364 = vpack.c.b16 %v1520, %v1516
  %v2365 = vpack.c.b16 %v1521, %v1517
  %v2366 = vpack.c.b16 %v1522, %v1518
  %v2367 = vpack.c.b16 %v1527, %v1523
  %v2368 = vpack.c.b16 %v1528, %v1524
  %v2369 = vpack.c.b16 %v1529, %v1525
  %v2370 = vpack.c.b16 %v1530, %v1526
  %v2371 = vpack.c.b16 %v1535, %v1531
  %v2372 = vpack.c.b16 %v1536, %v1532
  %v2373 = vpack.c.b16 %v1537, %v1533
  %v2374 = vpack.c.b16 %v1538, %v1534
  %v2375 = vpack.c.b16 %v1543, %v1539
  %v2376 = vpack.c.b16 %v1544, %v1540
  %v2377 = vpack.c.b16 %v1545, %v1541
  %v2378 = vpack.c.b16 %v1546, %v1542
  %v2379 = vpack.c.b16 %v1551, %v1547
  %v2380 = vpack.c.b16 %v1552, %v1548
  %v2381 = vpack.c.b16 %v1553, %v1549
  %v2382 = vpack.c.b16 %v1554, %v1550
  %v2383 = vpack.c.b16 %v1559, %v1555
  %v2384 = vpack.c.b16 %v1560, %v1556
  %v2385 = vpack.c.b16 %v1561, %v1557
  %v2386 = vpack.c.b16 %v1562, %v1558
  %v2387 = vpack.c.b16 %v1567, %v1563
  %v2388 = vpack.c.b16 %v1568, %v1564
  %v2389 = vpack.c.b16 %v1569, %v1565
  %v2390 = vpack.c.b16 %v1570, %v1566
  %v2391 = vpack.c.b16 %v1575, %v1571
  %v2392 = vpack.c.b16 %v1576, %v1572
  %v2393 = vpack.c.b16 %v1577, %v1573
  %v2394 = vpack.c.b16 %v1578, %v1574
  %v2395 = vpack.c.b16 %v1583, %v1579
  %v2396 = vpack.c.b16 %v1584, %v1580
  %v2397 = vpack.c.b16 %v1585, %v1581
  %v2398 = vpack.c.b16 %v1586, %v1582
  %v2399 = vpack.c.b16 %v1591, %v1587
  %v2400 = vpack.c.b16 %v1592, %v1588
  %v2401 = vpack.c.b16 %v1593, %v1589
  %v2402 = vpack.c.b16 %v1594, %v1590
  %v2403 = vpack.c.b16 %v1599, %v1595
  %v2404 = vpack.c.b16 %v1600, %v1596
  %v2405 = vpack.c.b16 %v1601, %v1597
  %v2406 = vpack.c.b16 %v1602, %v1598
  %v2407 = vpack.c.b16 %v1607, %v1603
  %v2408 = vpack.c.b16 %v1608, %v1604
  %v2409 = vpack.c.b16 %v1609, %v1605
  %v2410 = vpack.c.b16 %v1610, %v1606
  %v2411 = vpack.c.b16 %v1615, %v1611
  %v2412 = vpack.c.b16 %v1616, %v1612
  %v2413 = vpack.c.b16 %v1617, %v1613
  %v2414 = vpack.c.b16 %v1618, %v1614
  %v2415 = vpack.c.b16 %v1623, %v1619
  %v2416 = vpack.c.b16 %v1624, %v1620
  %v2417 = vpack.c.b16 %v1625, %v1621
  %v2418 = vpack.c.b16 %v1626, %v1622
  %v2419 = vpack.c.b16 %v1631, %v1627
  %v2420 = vpack.c.b16 %v1632, %v1628
  %v2421 = vpack.c.b16 %v1633, %v1629
  %v2422 = vpack.c.b16 %v1634, %v1630
  %v2423 = vpack.c.b16 %v1639, %v1635
  %v2424 = vpack.c.b16 %v1640, %v1636
  %v2425 = vpack.c.b16 %v1641, %v1637
  %v2426 = vpack.c.b16 %v1642, %v1638
  %v2427 = vpack.c.b16 %v1647, %v1643
  %v2428 = vpack.c.b16 %v1648, %v1644
  %v2429 = vpack.c.b16 %v1649, %v1645
  %v2430 = vpack.c.b16 %v1650, %v1646
  %v2431 = vpack.c.b16 %v1655, %v1651
  %v2432 = vpack.c.b16 %v1656, %v1652
  %v2433 = vpack.c.b16 %v1657, %v1653
  %v2434 = vpack.c.b16 %v1658, %v1654
  %v2435 = vpack.c.b16 %v1663, %v1659
  %v2436 = vpack.c.b16 %v1664, %v1660
  %v2437 = vpack.c.b16 %v1665, %v1661
  %v2438 = vpack.c.b16 %v1666, %v1662
  %v2439 = vpack.c.b16 %v1671, %v1667
  %v2440 = vpack.c.b16 %v1672, %v1668
  %v2441 = vpack.c.b16 %v1673, %v1669
  %v2442 = vpack.c.b16 %v1674, %v1670
  %v2443 = vpack.c.b16 %v1679, %v1675
  %v2444 = vpack.c.b16 %v1680, %v1676
  %v2445 = vpack.c.b16 %v1681, %v1677
  %v2446 = vpack.c.b16 %v1682, %v1678
  %v2447 = vpack.c.b16 %v1687, %v1683
  %v2448 = vpack.c.b16 %v1688, %v1684
  %v2449 = vpack.c.b16 %v1689, %v1685
  %v2450 = vpack.c.b16 %v1690, %v1686
  %v2451 = vpack.c.b16 %v1695, %v1691
  %v2452 = vpack.c.b16 %v1696, %v1692
  %v2453 = vpack.c.b16 %v1697, %v1693
  %v2454 = vpack.c.b16 %v1698, %v1694
  %v2455 = vpack.c.b16 %v1703, %v1699
  %v2456 = vpack.c.b16 %v1704, %v1700
  %v2457 = vpack.c.b16 %v1705, %v1701
  %v2458 = vpack.c.b16 %v1706, %v1702
  %v2459 = vpack.c.b16 %v1711, %v1707
  %v2460 = vpack.c.b16 %v1712, %v1708
  %v2461 = vpack.c.b16 %v1713, %v1709
  %v2462 = vpack.c.b16 %v1714, %v1710
  %v2463 = vpack.c.b16 %v1719, %v1715
  %v2464 = vpack.c.b16 %v1720, %v1716
  %v2465 = vpack.c.b16 %v1721, %v1717
  %v2466 = vpack.c.b16 %v1722, %v1718
  %v2467 = vpack.c.b16 %v1727, %v1723
  %v2468 = vpack.c.b16 %v1728, %v1724
  %v2469 = vpack.c.b16 %v1729, %v1725
  %v2470 = vpack.c.b16 %v1730, %v1726
  %v2471 = vpack.c.b16 %v1735, %v1731
  %v2472 = vpack.c.b16 %v1736, %v1732
  %v2473 = vpack.c.b16 %v1737, %v1733
  %v2474 = vpack.c.b16 %v1738, %v1734
  %v2475 = vpack.c.b16 %v1743, %v1739
  %v2476 = vpack.c.b16 %v1744, %v1740
  %v2477 = vpack.c.b16 %v1745, %v1741
  %v2478 = vpack.c.b16 %v1746, %v1742
  %v2479 = vpack.c.b16 %v1751, %v1747
  %v2480 = vpack.c.b16 %v1752, %v1748
  %v2481 = vpack.c.b16 %v1753, %v1749
  %v2482 = vpack.c.b16 %v1754, %v1750
  %v2483 = vpack.c.b16 %v1759, %v1755
  %v2484 = vpack.c.b16 %v1760, %v1756
  %v2485 = vpack.c.b16 %v1761, %v1757
  %v2486 = vpack.c.b16 %v1762, %v1758
  %v2487 = vpack.c.b16 %v1767, %v1763
  %v2488 = vpack.c.b16 %v1768, %v1764
  %v2489 = vpack.c.b16 %v1769, %v1765
  %v2490 = vpack.c.b16 %v1770, %v1766
  %v2491 = vpack.c.b16 %v1775, %v1771
  %v2492 = vpack.c.b16 %v1776, %v1772
  %v2493 = vpack.c.b16 %v1777, %v1773
  %v2494 = vpack.c.b16 %v1778, %v1774
  %v2495 = vpack.c.b16 %v1783, %v1779
  %v2496 = vpack.c.b16 %v1784, %v1780
  %v2497 = vpack.c.b16 %v1785, %v1781
  %v2498 = vpack.c.b16 %v1786, %v1782
  %v2499 = vpack.c.b16 %v1791, %v1787
  %v2500 = vpack.c.b16 %v1792, %v1788
  %v2501 = vpack.c.b16 %v1793, %v1789
  %v2502 = vpack.c.b16 %v1794, %v1790
  %v2503 = vpack.c.b16 %v1799, %v1795
  %v2504 = vpack.c.b16 %v1800, %v1796
  %v2505 = vpack.c.b16 %v1801, %v1797
  %v2506 = vpack.c.b16 %v1802, %v1798
  %v2507 = vpack.c.b16 %v1807, %v1803
  %v2508 = vpack.c.b16 %v1808, %v1804
  %v2509 = vpack.c.b16 %v1809, %v1805
  %v2510 = vpack.c.b16 %v1810, %v1806
  %v2511 = vpack.c.b16 %v1815, %v1811
  %v2512 = vpack.c.b16 %v1816, %v1812
  %v2513 = vpack.c.b16 %v1817, %v1813
  %v2514 = vpack.c.b16 %v1818, %v1814
  %v2515 = vpack.c.b16 %v1823, %v1819
  %v2516 = vpack.c.b16 %v1824, %v1820
  %v2517 = vpack.c.b16 %v1825, %v1821
  %v2518 = vpack.c.b16 %v1826, %v1822
  %v2519 = vpack.c.b16 %v1831, %v1827
  %v2520 = vpack.c.b16 %v1832, %v1828
  %v2521 = vpack.c.b16 %v1833, %v1829
  %v2522 = vpack.c.b16 %v1834, %v1830
  %v2523 = vpack.c.b16 %v1839, %v1835
  %v2524 = vpack.c.b16 %v1840, %v1836
  %v2525 = vpack.c.b16 %v1841, %v1837
  %v2526 = vpack.c.b16 %v1842, %v1838
  %v2527 = vpack.c.b16 %v1847, %v1843
  %v2528 = vpack.c.b16 %v1848, %v1844
  %v2529 = vpack.c.b16 %v1849, %v1845
  %v2530 = vpack.c.b16 %v1850, %v1846
  %v2531 = vpack.c.b16 %v1855, %v1851
  %v2532 = vpack.c.b16 %v1856, %v1852
  %v2533 = vpack.c.b16 %v1857, %v1853
  %v2534 = vpack.c.b16 %v1858, %v1854
  %v2535 = vpack.c.b16 %v1863, %v1859
  %v2536 = vpack.c.b16 %v1864, %v1860
  %v2537 = vpack.c.b16 %v1865, %v1861
  %v2538 = vpack.c.b16 %v1866, %v1862
  %v2539 = vpack.c.b16 %v1871, %v1867
  %v2540 = vpack.c.b16 %v1872, %v1868
  %v2541 = vpack.c.b16 %v1873, %v1869
  %v2542 = vpack.c.b16 %v1874, %v1870
  %v2543 = vpack.c.b16 %v1879, %v1875
  %v2544 = vpack.c.b16 %v1880, %v1876
  %v2545 = vpack.c.b16 %v1881, %v1877
  %v2546 = vpack.c.b16 %v1882, %v1878
  %v2547 = vpack.c.b16 %v1887, %v1883
  %v2548 = vpack.c.b16 %v1888, %v1884
  %v2549 = vpack.c.b16 %v1889, %v1885
  %v2550 = vpack.c.b16 %v1890, %v1886
  %v2551 = vpack.c.b16 %v1895, %v1891
  %v2552 = vpack.c.b16 %v1896, %v1892
  %v2553 = vpack.c.b16 %v1897, %v1893
  %v2554 = vpack.c.b16 %v1898, %v1894
  %v2555 = vpack.c.b16 %v1903, %v1899
  %v2556 = vpack.c.b16 %v1904, %v1900
  %v2557 = vpack.c.b16 %v1905, %v1901
  %v2558 = vpack.c.b16 %v1906, %v1902
  %v2559 = vpack.c.b16 %v1911, %v1907
  %v2560 = vpack.c.b16 %v1912, %v1908
  %v2561 = vpack.c.b16 %v1913, %v1909
  %v2562 = vpack.c.b16 %v1914, %v1910
  %v2563 = vpack.c.b16 %v1919, %v1915
  %v2564 = vpack.c.b16 %v1920, %v1916
  %v2565 = vpack.c.b16 %v1921, %v1917
  %v2566 = vpack.c.b16 %v1922, %v1918
  %v2567 = vpack.c.b16 %v1927, %v1923
  %v2568 = vpack.c.b16 %v1928, %v1924
  %v2569 = vpack.c.b16 %v1929, %v1925
  %v2570 = vpack.c.b16 %v1930, %v1926
  %v2571 = vpack.c.b16 %v1935, %v1931
  %v2572 = vpack.c.b16 %v1936, %v1932
  %v2573 = vpack.c.b16 %v1937, %v1933
  %v2574 = vpack.c.b16 %v1938, %v1934
  %v2575 = vpack.c.b16 %v1943, %v1939
  %v2576 = vpack.c.b16 %v1944, %v1940
  %v2577 = vpack.c.b16 %v1945, %v1941
  %v2578 = vpack.c.b16 %v1946, %v1942
  %v2579 = vpack.c.b16 %v1951, %v1947
  %v2580 = vpack.c.b16 %v1952, %v1948
  %v2581 = vpack.c.b16 %v1953, %v1949
  %v2582 = vpack.c.b16 %v1954, %v1950
  %v2583 = vpack.c.b16 %v1959, %v1955
  %v2584 = vpack.c.b16 %v1960, %v1956
  %v2585 = vpack.c.b16 %v1961, %v1957
  %v2586 = vpack.c.b16 %v1962, %v1958
  %v2587 = vpack.c.b16 %v1967, %v1963
  %v2588 = vpack.c.b16 %v1968, %v1964
  %v2589 = vpack.c.b16 %v1969, %v1965
  %v2590 = vpack.c.b16 %v1970, %v1966
  %v2591 = vpack.c.b16 %v1975, %v1971
  %v2592 = vpack.c.b16 %v1976, %v1972
  %v2593 = vpack.c.b16 %v1977, %v1973
  %v2594 = vpack.c.b16 %v1978, %v1974
  %v2595 = vpack.c.b16 %v1983, %v1979
  %v2596 = vpack.c.b16 %v1984, %v1980
  %v2597 = vpack.c.b16 %v1985, %v1981
  %v2598 = vpack.c.b16 %v1986, %v1982
  %v2599 = vpack.c.b16 %v1991, %v1987
  %v2600 = vpack.c.b16 %v1992, %v1988
  %v2601 = vpack.c.b16 %v1993, %v1989
  %v2602 = vpack.c.b16 %v1994, %v1990
  %v2603 = vpack.c.b16 %v1999, %v1995
  %v2604 = vpack.c.b16 %v2000, %v1996
  %v2605 = vpack.c.b16 %v2001, %v1997
  %v2606 = vpack.c.b16 %v2002, %v1998
  %v2607 = vpack.c.b16 %v2007, %v2003
  %v2608 = vpack.c.b16 %v2008, %v2004
  %v2609 = vpack.c.b16 %v2009, %v2005
  %v2610 = vpack.c.b16 %v2010, %v2006
  %v2611 = vpack.c.b16 %v2015, %v2011
  %v2612 = vpack.c.b16 %v2016, %v2012
  %v2613 = vpack.c.b16 %v2017, %v2013
  %v2614 = vpack.c.b16 %v2018, %v2014
  %v2615 = vpack.c.b16 %v2023, %v2019
  %v2616 = vpack.c.b16 %v2024, %v2020
  %v2617 = vpack.c.b16 %v2025, %v2021
  %v2618 = vpack.c.b16 %v2026, %v2022
  %v2619 = vpack.c.b16 %v2031, %v2027
  %v2620 = vpack.c.b16 %v2032, %v2028
  %v2621 = vpack.c.b16 %v2033, %v2029
  %v2622 = vpack.c.b16 %v2034, %v2030
  %v2623 = vpack.c.b16 %v2039, %v2035
  %v2624 = vpack.c.b16 %v2040, %v2036
  %v2625 = vpack.c.b16 %v2041, %v2037
  %v2626 = vpack.c.b16 %v2042, %v2038
  %v2627 = vpack.c.b16 %v2047, %v2043
  %v2628 = vpack.c.b16 %v2048, %v2044
  %v2629 = vpack.c.b16 %v2049, %v2045
  %v2630 = vpack.c.b16 %v2050, %v2046
  %v2631 = vpack.c.b16 %v2055, %v2051
  %v2632 = vpack.c.b16 %v2056, %v2052
  %v2633 = vpack.c.b16 %v2057, %v2053
  %v2634 = vpack.c.b16 %v2058, %v2054
  %v2635 = vpack.c.b16 %v2063, %v2059
  %v2636 = vpack.c.b16 %v2064, %v2060
  %v2637 = vpack.c.b16 %v2065, %v2061
  %v2638 = vpack.c.b16 %v2066, %v2062
  %v2639 = vpack.c.b16 %v2071, %v2067
  %v2640 = vpack.c.b16 %v2072, %v2068
  %v2641 = vpack.c.b16 %v2073, %v2069
  %v2642 = vpack.c.b16 %v2074, %v2070
  %v2643 = vpack.c.b16 %v2079, %v2075
  %v2644 = vpack.c.b16 %v2080, %v2076
  %v2645 = vpack.c.b16 %v2081, %v2077
  %v2646 = vpack.c.b16 %v2082, %v2078
  %v2647 = vpack.c.b16 %v2087, %v2083
  %v2648 = vpack.c.b16 %v2088, %v2084
  %v2649 = vpack.c.b16 %v2089, %v2085
  %v2650 = vpack.c.b16 %v2090, %v2086
  %v2651 = vpack.c.b16 %v2095, %v2091
  %v2652 = vpack.c.b16 %v2096, %v2092
  %v2653 = vpack.c.b16 %v2097, %v2093
  %v2654 = vpack.c.b16 %v2098, %v2094
  %v2655 = vpack.c.b16 %v2103, %v2099
  %v2656 = vpack.c.b16 %v2104, %v2100
  %v2657 = vpack.c.b16 %v2105, %v2101
  %v2658 = vpack.c.b16 %v2106, %v2102
  %v2659 = vpack.c.b16 %v2111, %v2107
  %v2660 = vpack.c.b16 %v2112, %v2108
  %v2661 = vpack.c.b16 %v2113, %v2109
  %v2662 = vpack.c.b16 %v2114, %v2110
  %v2663 = vpack.c.b16 %v2119, %v2115
  %v2664 = vpack.c.b16 %v2120, %v2116
  %v2665 = vpack.c.b16 %v2121, %v2117
  %v2666 = vpack.c.b16 %v2122, %v2118
  %v2667 = vpack.c.b16 %v2127, %v2123
  %v2668 = vpack.c.b16 %v2128, %v2124
  %v2669 = vpack.c.b16 %v2129, %v2125
  %v2670 = vpack.c.b16 %v2130, %v2126
  %v2671 = vpack.c.b16 %v2135, %v2131
  %v2672 = vpack.c.b16 %v2136, %v2132
  %v2673 = vpack.c.b16 %v2137, %v2133
  %v2674 = vpack.c.b16 %v2138, %v2134
  %v2675 = vpack.c.b16 %v2143, %v2139
  %v2676 = vpack.c.b16 %v2144, %v2140
  %v2677 = vpack.c.b16 %v2145, %v2141
  %v2678 = vpack.c.b16 %v2146, %v2142
  %v2679 = vpack.c.b16 %v2151, %v2147
  %v2680 = vpack.c.b16 %v2152, %v2148
  %v2681 = vpack.c.b16 %v2153, %v2149
  %v2682 = vpack.c.b16 %v2154, %v2150
  %v2683 = vpack.c.b16 %v2159, %v2155
  %v2684 = vpack.c.b16 %v2160, %v2156
  %v2685 = vpack.c.b16 %v2161, %v2157
  %v2686 = vpack.c.b16 %v2162, %v2158
  %v2687 = vpack.c.b16 %v2167, %v2163
  %v2688 = vpack.c.b16 %v2168, %v2164
  %v2689 = vpack.c.b16 %v2169, %v2165
  %v2690 = vpack.c.b16 %v2170, %v2166
  %v2691 = vpack.c.b16 %v2175, %v2171
  %v2692 = vpack.c.b16 %v2176, %v2172
  %v2693 = vpack.c.b16 %v2177, %v2173
  %v2694 = vpack.c.b16 %v2178, %v2174
  %v2695 = vpack.c.b16 %v2183, %v2179
  %v2696 = vpack.c.b16 %v2184, %v2180
  %v2697 = vpack.c.b16 %v2185, %v2181
  %v2698 = vpack.c.b16 %v2186, %v2182
  %3211 = vmatprep.subr.bf16.mxu0 %v2188
  %3212 = vmatpush1.bf16.msra.mxu0 %v2187
  %3213 = vmatprep.subr.bf16.mxu0 %v2192
  %3214 = vmatpush1.bf16.msra.mxu0 %v2191
  %3215 = vmatprep.subr.bf16.mxu0 %v2196
  %3216 = vmatpush1.bf16.msra.mxu0 %v2195
  %3217 = vmatprep.subr.bf16.mxu0 %v2200
  %3218 = vmatpush1.bf16.msra.mxu0 %v2199
  %3219 = vmatprep.subr.bf16.mxu0 %v2204
  %3220 = vmatpush1.bf16.msra.mxu0 %v2203
  %3221 = vmatprep.subr.bf16.mxu0 %v2208
  %3222 = vmatpush1.bf16.msra.mxu0 %v2207
  %3223 = vmatprep.subr.bf16.mxu0 %v2212
  %3224 = vmatpush1.bf16.msra.mxu0 %v2211
  %3225 = vmatprep.subr.bf16.mxu0 %v2216
  %3226 = vmatpush1.bf16.msra.mxu0 %v2215
  %3227 = vmatprep.subr.bf16.mxu0 %v2220
  %3228 = vmatpush1.bf16.msra.mxu0 %v2219
  %3229 = vmatprep.subr.bf16.mxu0 %v2224
  %3230 = vmatpush1.bf16.msra.mxu0 %v2223
  %3231 = vmatprep.subr.bf16.mxu0 %v2228
  %3232 = vmatpush1.bf16.msra.mxu0 %v2227
  %3233 = vmatprep.subr.bf16.mxu0 %v2232
  %3234 = vmatpush1.bf16.msra.mxu0 %v2231
  %3235 = vmatprep.subr.bf16.mxu0 %v2236
  %3236 = vmatpush1.bf16.msra.mxu0 %v2235
  %3237 = vmatprep.subr.bf16.mxu0 %v2240
  %3238 = vmatpush1.bf16.msra.mxu0 %v2239
  %3239 = vmatprep.subr.bf16.mxu0 %v2244
  %3240 = vmatpush1.bf16.msra.mxu0 %v2243
  %3241 = vmatprep.subr.bf16.mxu0 %v2248
  %3242 = vmatpush1.bf16.msra.mxu0 %v2247
  %3243 = vmatprep.mubr.bf16.mxu0 %v620
  %3244 = vmatmul.mubr.bf16.gmra.mrb[0].mxu0 %v619
  %v3245 = vpop.f32.mrb[0].mxu0
  %v3246 = vadd.f32 %v554, %v3245
  %v3247 = vpop.f32.mrb[0].mxu0
  %v3248 = vadd.f32 %v558, %v3247
  %v3249 = vpop.f32.mrb[0].mxu0
  %v3250 = vadd.f32 %v554, %v3249
  %v3251 = vpop.f32.mrb[0].mxu0
  %v3252 = vadd.f32 %v558, %v3251
  %3253 = vdwg.mxu0
  %3254 = vmatprep.subr.bf16.mxu0 %v2252
  %3255 = vmatpush1.bf16.msra.mxu0 %v2251
  %3256 = vmatprep.subr.bf16.mxu0 %v2256
  %3257 = vmatpush1.bf16.msra.mxu0 %v2255
  %3258 = vmatprep.subr.bf16.mxu0 %v2260
  %3259 = vmatpush1.bf16.msra.mxu0 %v2259
  %3260 = vmatprep.subr.bf16.mxu0 %v2264
  %3261 = vmatpush1.bf16.msra.mxu0 %v2263
  %3262 = vmatprep.subr.bf16.mxu0 %v2268
  %3263 = vmatpush1.bf16.msra.mxu0 %v2267
  %3264 = vmatprep.subr.bf16.mxu0 %v2272
  %3265 = vmatpush1.bf16.msra.mxu0 %v2271
  %3266 = vmatprep.subr.bf16.mxu0 %v2276
  %3267 = vmatpush1.bf16.msra.mxu0 %v2275
  %3268 = vmatprep.subr.bf16.mxu0 %v2280
  %3269 = vmatpush1.bf16.msra.mxu0 %v2279
  %3270 = vmatprep.subr.bf16.mxu0 %v2284
  %3271 = vmatpush1.bf16.msra.mxu0 %v2283
  %3272 = vmatprep.subr.bf16.mxu0 %v2288
  %3273 = vmatpush1.bf16.msra.mxu0 %v2287
  %3274 = vmatprep.subr.bf16.mxu0 %v2292
  %3275 = vmatpush1.bf16.msra.mxu0 %v2291
  %3276 = vmatprep.subr.bf16.mxu0 %v2296
  %3277 = vmatpush1.bf16.msra.mxu0 %v2295
  %3278 = vmatprep.subr.bf16.mxu0 %v2300
  %3279 = vmatpush1.bf16.msra.mxu0 %v2299
  %3280 = vmatprep.subr.bf16.mxu0 %v2304
  %3281 = vmatpush1.bf16.msra.mxu0 %v2303
  %3282 = vmatprep.subr.bf16.mxu0 %v2308
  %3283 = vmatpush1.bf16.msra.mxu0 %v2307
  %3284 = vmatprep.subr.bf16.mxu0 %v2312
  %3285 = vmatpush1.bf16.msra.mxu0 %v2311
  %3286 = vmatprep.mubr.bf16.mxu0 %v622
  %3287 = vmatmul.mubr.bf16.gmra.mrb[0].mxu0 %v621
  %v3288 = vpop.f32.mrb[0].mxu0
  %v3289 = vadd.f32 %v3246, %v3288
  %v3290 = vpop.f32.mrb[0].mxu0
  %v3291 = vadd.f32 %v3248, %v3290
  %v3292 = vpop.f32.mrb[0].mxu0
  %v3293 = vadd.f32 %v3250, %v3292
  %v3294 = vpop.f32.mrb[0].mxu0
  %v3295 = vadd.f32 %v3252, %v3294
  %3296 = vdwg.mxu0
  %3297 = vmatprep.subr.bf16.mxu0 %v2316
  %3298 = vmatpush1.bf16.msra.mxu0 %v2315
  %3299 = vmatprep.subr.bf16.mxu0 %v2320
  %3300 = vmatpush1.bf16.msra.mxu0 %v2319
  %3301 = vmatprep.subr.bf16.mxu0 %v2324
  %3302 = vmatpush1.bf16.msra.mxu0 %v2323
  %3303 = vmatprep.subr.bf16.mxu0 %v2328
  %3304 = vmatpush1.bf16.msra.mxu0 %v2327
  %3305 = vmatprep.subr.bf16.mxu0 %v2332
  %3306 = vmatpush1.bf16.msra.mxu0 %v2331
  %3307 = vmatprep.subr.bf16.mxu0 %v2336
  %3308 = vmatpush1.bf16.msra.mxu0 %v2335
  %3309 = vmatprep.subr.bf16.mxu0 %v2340
  %3310 = vmatpush1.bf16.msra.mxu0 %v2339
  %3311 = vmatprep.subr.bf16.mxu0 %v2344
  %3312 = vmatpush1.bf16.msra.mxu0 %v2343
  %3313 = vmatprep.subr.bf16.mxu0 %v2348
  %3314 = vmatpush1.bf16.msra.mxu0 %v2347
  %3315 = vmatprep.subr.bf16.mxu0 %v2352
  %3316 = vmatpush1.bf16.msra.mxu0 %v2351
  %3317 = vmatprep.subr.bf16.mxu0 %v2356
  %3318 = vmatpush1.bf16.msra.mxu0 %v2355
  %3319 = vmatprep.subr.bf16.mxu0 %v2360
  %3320 = vmatpush1.bf16.msra.mxu0 %v2359
  %3321 = vmatprep.subr.bf16.mxu0 %v2364
  %3322 = vmatpush1.bf16.msra.mxu0 %v2363
  %3323 = vmatprep.subr.bf16.mxu0 %v2368
  %3324 = vmatpush1.bf16.msra.mxu0 %v2367
  %3325 = vmatprep.subr.bf16.mxu0 %v2372
  %3326 = vmatpush1.bf16.msra.mxu0 %v2371
  %3327 = vmatprep.subr.bf16.mxu0 %v2376
  %3328 = vmatpush1.bf16.msra.mxu0 %v2375
  %3329 = vmatprep.mubr.bf16.mxu0 %v624
  %3330 = vmatmul.mubr.bf16.gmra.mrb[0].mxu0 %v623
  %v3331 = vpop.f32.mrb[0].mxu0
  %v3332 = vadd.f32 %v3289, %v3331
  %v3333 = vpop.f32.mrb[0].mxu0
  %v3334 = vadd.f32 %v3291, %v3333
  %v3335 = vpop.f32.mrb[0].mxu0
  %v3336 = vadd.f32 %v3293, %v3335
  %v3337 = vpop.f32.mrb[0].mxu0
  %v3338 = vadd.f32 %v3295, %v3337
  %3339 = vdwg.mxu0
  %3340 = vmatprep.subr.bf16.mxu0 %v2380
  %3341 = vmatpush1.bf16.msra.mxu0 %v2379
  %3342 = vmatprep.subr.bf16.mxu0 %v2384
  %3343 = vmatpush1.bf16.msra.mxu0 %v2383
  %3344 = vmatprep.subr.bf16.mxu0 %v2388
  %3345 = vmatpush1.bf16.msra.mxu0 %v2387
  %3346 = vmatprep.subr.bf16.mxu0 %v2392
  %3347 = vmatpush1.bf16.msra.mxu0 %v2391
  %3348 = vmatprep.subr.bf16.mxu0 %v2396
  %3349 = vmatpush1.bf16.msra.mxu0 %v2395
  %3350 = vmatprep.subr.bf16.mxu0 %v2400
  %3351 = vmatpush1.bf16.msra.mxu0 %v2399
  %3352 = vmatprep.subr.bf16.mxu0 %v2404
  %3353 = vmatpush1.bf16.msra.mxu0 %v2403
  %3354 = vmatprep.subr.bf16.mxu0 %v2408
  %3355 = vmatpush1.bf16.msra.mxu0 %v2407
  %3356 = vmatprep.subr.bf16.mxu0 %v2412
  %3357 = vmatpush1.bf16.msra.mxu0 %v2411
  %3358 = vmatprep.subr.bf16.mxu0 %v2416
  %3359 = vmatpush1.bf16.msra.mxu0 %v2415
  %3360 = vmatprep.subr.bf16.mxu0 %v2420
  %3361 = vmatpush1.bf16.msra.mxu0 %v2419
  %3362 = vmatprep.subr.bf16.mxu0 %v2424
  %3363 = vmatpush1.bf16.msra.mxu0 %v2423
  %3364 = vmatprep.subr.bf16.mxu0 %v2428
  %3365 = vmatpush1.bf16.msra.mxu0 %v2427
  %3366 = vmatprep.subr.bf16.mxu0 %v2432
  %3367 = vmatpush1.bf16.msra.mxu0 %v2431
  %3368 = vmatprep.subr.bf16.mxu0 %v2436
  %3369 = vmatpush1.bf16.msra.mxu0 %v2435
  %3370 = vmatprep.subr.bf16.mxu0 %v2440
  %3371 = vmatpush1.bf16.msra.mxu0 %v2439
  %3372 = vmatprep.mubr.bf16.mxu0 %v626
  %3373 = vmatmul.mubr.bf16.gmra.mrb[0].mxu0 %v625
  %v3374 = vpop.f32.mrb[0].mxu0
  %v3375 = vadd.f32 %v3332, %v3374
  %v3376 = vpop.f32.mrb[0].mxu0
  %v3377 = vadd.f32 %v3334, %v3376
  %v3378 = vpop.f32.mrb[0].mxu0
  %v3379 = vadd.f32 %v3336, %v3378
  %v3380 = vpop.f32.mrb[0].mxu0
  %v3381 = vadd.f32 %v3338, %v3380
  %3382 = vdwg.mxu0
  %3383 = vmatprep.subr.bf16.mxu0 %v2444
  %3384 = vmatpush1.bf16.msra.mxu0 %v2443
  %3385 = vmatprep.subr.bf16.mxu0 %v2448
  %3386 = vmatpush1.bf16.msra.mxu0 %v2447
  %3387 = vmatprep.subr.bf16.mxu0 %v2452
  %3388 = vmatpush1.bf16.msra.mxu0 %v2451
  %3389 = vmatprep.subr.bf16.mxu0 %v2456
  %3390 = vmatpush1.bf16.msra.mxu0 %v2455
  %3391 = vmatprep.subr.bf16.mxu0 %v2460
  %3392 = vmatpush1.bf16.msra.mxu0 %v2459
  %3393 = vmatprep.subr.bf16.mxu0 %v2464
  %3394 = vmatpush1.bf16.msra.mxu0 %v2463
  %3395 = vmatprep.subr.bf16.mxu0 %v2468
  %3396 = vmatpush1.bf16.msra.mxu0 %v2467
  %3397 = vmatprep.subr.bf16.mxu0 %v2472
  %3398 = vmatpush1.bf16.msra.mxu0 %v2471
  %3399 = vmatprep.subr.bf16.mxu0 %v2476
  %3400 = vmatpush1.bf16.msra.mxu0 %v2475
  %3401 = vmatprep.subr.bf16.mxu0 %v2480
  %3402 = vmatpush1.bf16.msra.mxu0 %v2479
  %3403 = vmatprep.subr.bf16.mxu0 %v2484
  %3404 = vmatpush1.bf16.msra.mxu0 %v2483
  %3405 = vmatprep.subr.bf16.mxu0 %v2488
  %3406 = vmatpush1.bf16.msra.mxu0 %v2487
  %3407 = vmatprep.subr.bf16.mxu0 %v2492
  %3408 = vmatpush1.bf16.msra.mxu0 %v2491
  %3409 = vmatprep.subr.bf16.mxu0 %v2496
  %3410 = vmatpush1.bf16.msra.mxu0 %v2495
  %3411 = vmatprep.subr.bf16.mxu0 %v2500
  %3412 = vmatpush1.bf16.msra.mxu0 %v2499
  %3413 = vmatprep.subr.bf16.mxu0 %v2504
  %3414 = vmatpush1.bf16.msra.mxu0 %v2503
  %3415 = vmatprep.mubr.bf16.mxu0 %v628
  %3416 = vmatmul.mubr.bf16.gmra.mrb[0].mxu0 %v627
  %v3417 = vpop.f32.mrb[0].mxu0
  %v3418 = vadd.f32 %v3375, %v3417
  %v3419 = vpop.f32.mrb[0].mxu0
  %v3420 = vadd.f32 %v3377, %v3419
  %v3421 = vpop.f32.mrb[0].mxu0
  %v3422 = vadd.f32 %v3379, %v3421
  %v3423 = vpop.f32.mrb[0].mxu0
  %v3424 = vadd.f32 %v3381, %v3423
  %3425 = vdwg.mxu0
  %3426 = vmatprep.subr.bf16.mxu0 %v2508
  %3427 = vmatpush1.bf16.msra.mxu0 %v2507
  %3428 = vmatprep.subr.bf16.mxu0 %v2512
  %3429 = vmatpush1.bf16.msra.mxu0 %v2511
  %3430 = vmatprep.subr.bf16.mxu0 %v2516
  %3431 = vmatpush1.bf16.msra.mxu0 %v2515
  %3432 = vmatprep.subr.bf16.mxu0 %v2520
  %3433 = vmatpush1.bf16.msra.mxu0 %v2519
  %3434 = vmatprep.subr.bf16.mxu0 %v2524
  %3435 = vmatpush1.bf16.msra.mxu0 %v2523
  %3436 = vmatprep.subr.bf16.mxu0 %v2528
  %3437 = vmatpush1.bf16.msra.mxu0 %v2527
  %3438 = vmatprep.subr.bf16.mxu0 %v2532
  %3439 = vmatpush1.bf16.msra.mxu0 %v2531
  %3440 = vmatprep.subr.bf16.mxu0 %v2536
  %3441 = vmatpush1.bf16.msra.mxu0 %v2535
  %3442 = vmatprep.subr.bf16.mxu0 %v2540
  %3443 = vmatpush1.bf16.msra.mxu0 %v2539
  %3444 = vmatprep.subr.bf16.mxu0 %v2544
  %3445 = vmatpush1.bf16.msra.mxu0 %v2543
  %3446 = vmatprep.subr.bf16.mxu0 %v2548
  %3447 = vmatpush1.bf16.msra.mxu0 %v2547
  %3448 = vmatprep.subr.bf16.mxu0 %v2552
  %3449 = vmatpush1.bf16.msra.mxu0 %v2551
  %3450 = vmatprep.subr.bf16.mxu0 %v2556
  %3451 = vmatpush1.bf16.msra.mxu0 %v2555
  %3452 = vmatprep.subr.bf16.mxu0 %v2560
  %3453 = vmatpush1.bf16.msra.mxu0 %v2559
  %3454 = vmatprep.subr.bf16.mxu0 %v2564
  %3455 = vmatpush1.bf16.msra.mxu0 %v2563
  %3456 = vmatprep.subr.bf16.mxu0 %v2568
  %3457 = vmatpush1.bf16.msra.mxu0 %v2567
  %3458 = vmatprep.mubr.bf16.mxu0 %v630
  %3459 = vmatmul.mubr.bf16.gmra.mrb[0].mxu0 %v629
  %v3460 = vpop.f32.mrb[0].mxu0
  %v3461 = vadd.f32 %v3418, %v3460
  %v3462 = vpop.f32.mrb[0].mxu0
  %v3463 = vadd.f32 %v3420, %v3462
  %v3464 = vpop.f32.mrb[0].mxu0
  %v3465 = vadd.f32 %v3422, %v3464
  %v3466 = vpop.f32.mrb[0].mxu0
  %v3467 = vadd.f32 %v3424, %v3466
  %3468 = vdwg.mxu0
  %3469 = vmatprep.subr.bf16.mxu0 %v2572
  %3470 = vmatpush1.bf16.msra.mxu0 %v2571
  %3471 = vmatprep.subr.bf16.mxu0 %v2576
  %3472 = vmatpush1.bf16.msra.mxu0 %v2575
  %3473 = vmatprep.subr.bf16.mxu0 %v2580
  %3474 = vmatpush1.bf16.msra.mxu0 %v2579
  %3475 = vmatprep.subr.bf16.mxu0 %v2584
  %3476 = vmatpush1.bf16.msra.mxu0 %v2583
  %3477 = vmatprep.subr.bf16.mxu0 %v2588
  %3478 = vmatpush1.bf16.msra.mxu0 %v2587
  %3479 = vmatprep.subr.bf16.mxu0 %v2592
  %3480 = vmatpush1.bf16.msra.mxu0 %v2591
  %3481 = vmatprep.subr.bf16.mxu0 %v2596
  %3482 = vmatpush1.bf16.msra.mxu0 %v2595
  %3483 = vmatprep.subr.bf16.mxu0 %v2600
  %3484 = vmatpush1.bf16.msra.mxu0 %v2599
  %3485 = vmatprep.subr.bf16.mxu0 %v2604
  %3486 = vmatpush1.bf16.msra.mxu0 %v2603
  %3487 = vmatprep.subr.bf16.mxu0 %v2608
  %3488 = vmatpush1.bf16.msra.mxu0 %v2607
  %3489 = vmatprep.subr.bf16.mxu0 %v2612
  %3490 = vmatpush1.bf16.msra.mxu0 %v2611
  %3491 = vmatprep.subr.bf16.mxu0 %v2616
  %3492 = vmatpush1.bf16.msra.mxu0 %v2615
  %3493 = vmatprep.subr.bf16.mxu0 %v2620
  %3494 = vmatpush1.bf16.msra.mxu0 %v2619
  %3495 = vmatprep.subr.bf16.mxu0 %v2624
  %3496 = vmatpush1.bf16.msra.mxu0 %v2623
  %3497 = vmatprep.subr.bf16.mxu0 %v2628
  %3498 = vmatpush1.bf16.msra.mxu0 %v2627
  %3499 = vmatprep.subr.bf16.mxu0 %v2632
  %3500 = vmatpush1.bf16.msra.mxu0 %v2631
  %3501 = vmatprep.mubr.bf16.mxu0 %v632
  %3502 = vmatmul.mubr.bf16.gmra.mrb[0].mxu0 %v631
  %v3503 = vpop.f32.mrb[0].mxu0
  %v3504 = vadd.f32 %v3461, %v3503
  %v3505 = vpop.f32.mrb[0].mxu0
  %v3506 = vadd.f32 %v3463, %v3505
  %v3507 = vpop.f32.mrb[0].mxu0
  %v3508 = vadd.f32 %v3465, %v3507
  %v3509 = vpop.f32.mrb[0].mxu0
  %v3510 = vadd.f32 %v3467, %v3509
  %3511 = vdwg.mxu0
  %3512 = vmatprep.subr.bf16.mxu0 %v2636
  %3513 = vmatpush1.bf16.msra.mxu0 %v2635
  %3514 = vmatprep.subr.bf16.mxu0 %v2640
  %3515 = vmatpush1.bf16.msra.mxu0 %v2639
  %3516 = vmatprep.subr.bf16.mxu0 %v2644
  %3517 = vmatpush1.bf16.msra.mxu0 %v2643
  %3518 = vmatprep.subr.bf16.mxu0 %v2648
  %3519 = vmatpush1.bf16.msra.mxu0 %v2647
  %3520 = vmatprep.subr.bf16.mxu0 %v2652
  %3521 = vmatpush1.bf16.msra.mxu0 %v2651
  %3522 = vmatprep.subr.bf16.mxu0 %v2656
  %3523 = vmatpush1.bf16.msra.mxu0 %v2655
  %3524 = vmatprep.subr.bf16.mxu0 %v2660
  %3525 = vmatpush1.bf16.msra.mxu0 %v2659
  %3526 = vmatprep.subr.bf16.mxu0 %v2664
  %3527 = vmatpush1.bf16.msra.mxu0 %v2663
  %3528 = vmatprep.subr.bf16.mxu0 %v2668
  %3529 = vmatpush1.bf16.msra.mxu0 %v2667
  %3530 = vmatprep.subr.bf16.mxu0 %v2672
  %3531 = vmatpush1.bf16.msra.mxu0 %v2671
  %3532 = vmatprep.subr.bf16.mxu0 %v2676
  %3533 = vmatpush1.bf16.msra.mxu0 %v2675
  %3534 = vmatprep.subr.bf16.mxu0 %v2680
  %3535 = vmatpush1.bf16.msra.mxu0 %v2679
  %3536 = vmatprep.subr.bf16.mxu0 %v2684
  %3537 = vmatpush1.bf16.msra.mxu0 %v2683
  %3538 = vmatprep.subr.bf16.mxu0 %v2688
  %3539 = vmatpush1.bf16.msra.mxu0 %v2687
  %3540 = vmatprep.subr.bf16.mxu0 %v2692
  %3541 = vmatpush1.bf16.msra.mxu0 %v2691
  %3542 = vmatprep.subr.bf16.mxu0 %v2696
  %3543 = vmatpush1.bf16.msra.mxu0 %v2695
  %3544 = vmatprep.mubr.bf16.mxu0 %v634
  %3545 = vmatmul.mubr.bf16.gmra.mrb[0].mxu0 %v633
  %v3546 = vpop.f32.mrb[0].mxu0
  %v3547 = vadd.f32 %v3504, %v3546
  %v3548 = vpop.f32.mrb[0].mxu0
  %v3549 = vadd.f32 %v3506, %v3548
  %v3550 = vpop.f32.mrb[0].mxu0
  %v3551 = vadd.f32 %v3508, %v3550
  %v3552 = vpop.f32.mrb[0].mxu0
  %v3553 = vadd.f32 %v3510, %v3552
  %3554 = vdwg.mxu0
  %3555 = vmatprep.subr.bf16.mxu0 %v2190
  %3556 = vmatpush1.bf16.msra.mxu0 %v2189
  %3557 = vmatprep.subr.bf16.mxu0 %v2194
  %3558 = vmatpush1.bf16.msra.mxu0 %v2193
  %3559 = vmatprep.subr.bf16.mxu0 %v2198
  %3560 = vmatpush1.bf16.msra.mxu0 %v2197
  %3561 = vmatprep.subr.bf16.mxu0 %v2202
  %3562 = vmatpush1.bf16.msra.mxu0 %v2201
  %3563 = vmatprep.subr.bf16.mxu0 %v2206
  %3564 = vmatpush1.bf16.msra.mxu0 %v2205
  %3565 = vmatprep.subr.bf16.mxu0 %v2210
  %3566 = vmatpush1.bf16.msra.mxu0 %v2209
  %3567 = vmatprep.subr.bf16.mxu0 %v2214
  %3568 = vmatpush1.bf16.msra.mxu0 %v2213
  %3569 = vmatprep.subr.bf16.mxu0 %v2218
  %3570 = vmatpush1.bf16.msra.mxu0 %v2217
  %3571 = vmatprep.subr.bf16.mxu0 %v2222
  %3572 = vmatpush1.bf16.msra.mxu0 %v2221
  %3573 = vmatprep.subr.bf16.mxu0 %v2226
  %3574 = vmatpush1.bf16.msra.mxu0 %v2225
  %3575 = vmatprep.subr.bf16.mxu0 %v2230
  %3576 = vmatpush1.bf16.msra.mxu0 %v2229
  %3577 = vmatprep.subr.bf16.mxu0 %v2234
  %3578 = vmatpush1.bf16.msra.mxu0 %v2233
  %3579 = vmatprep.subr.bf16.mxu0 %v2238
  %3580 = vmatpush1.bf16.msra.mxu0 %v2237
  %3581 = vmatprep.subr.bf16.mxu0 %v2242
  %3582 = vmatpush1.bf16.msra.mxu0 %v2241
  %3583 = vmatprep.subr.bf16.mxu0 %v2246
  %3584 = vmatpush1.bf16.msra.mxu0 %v2245
  %3585 = vmatprep.subr.bf16.mxu0 %v2250
  %3586 = vmatpush1.bf16.msra.mxu0 %v2249
  %3587 = vmatprep.mubr.bf16.mxu0 %v620
  %3588 = vmatmul.mubr.bf16.gmra.mrb[0].mxu0 %v619
  %v3589 = vpop.f32.mrb[0].mxu0
  %v3590 = vadd.f32 %v562, %v3589
  %v3591 = vpop.f32.mrb[0].mxu0
  %v3592 = vadd.f32 %v566, %v3591
  %v3593 = vpop.f32.mrb[0].mxu0
  %v3594 = vadd.f32 %v562, %v3593
  %v3595 = vpop.f32.mrb[0].mxu0
  %v3596 = vadd.f32 %v566, %v3595
  %3597 = vdwg.mxu0
  %3598 = vmatprep.subr.bf16.mxu0 %v2254
  %3599 = vmatpush1.bf16.msra.mxu0 %v2253
  %3600 = vmatprep.subr.bf16.mxu0 %v2258
  %3601 = vmatpush1.bf16.msra.mxu0 %v2257
  %3602 = vmatprep.subr.bf16.mxu0 %v2262
  %3603 = vmatpush1.bf16.msra.mxu0 %v2261
  %3604 = vmatprep.subr.bf16.mxu0 %v2266
  %3605 = vmatpush1.bf16.msra.mxu0 %v2265
  %3606 = vmatprep.subr.bf16.mxu0 %v2270
  %3607 = vmatpush1.bf16.msra.mxu0 %v2269
  %3608 = vmatprep.subr.bf16.mxu0 %v2274
  %3609 = vmatpush1.bf16.msra.mxu0 %v2273
  %3610 = vmatprep.subr.bf16.mxu0 %v2278
  %3611 = vmatpush1.bf16.msra.mxu0 %v2277
  %3612 = vmatprep.subr.bf16.mxu0 %v2282
  %3613 = vmatpush1.bf16.msra.mxu0 %v2281
  %3614 = vmatprep.subr.bf16.mxu0 %v2286
  %3615 = vmatpush1.bf16.msra.mxu0 %v2285
  %3616 = vmatprep.subr.bf16.mxu0 %v2290
  %3617 = vmatpush1.bf16.msra.mxu0 %v2289
  %3618 = vmatprep.subr.bf16.mxu0 %v2294
  %3619 = vmatpush1.bf16.msra.mxu0 %v2293
  %3620 = vmatprep.subr.bf16.mxu0 %v2298
  %3621 = vmatpush1.bf16.msra.mxu0 %v2297
  %3622 = vmatprep.subr.bf16.mxu0 %v2302
  %3623 = vmatpush1.bf16.msra.mxu0 %v2301
  %3624 = vmatprep.subr.bf16.mxu0 %v2306
  %3625 = vmatpush1.bf16.msra.mxu0 %v2305
  %3626 = vmatprep.subr.bf16.mxu0 %v2310
  %3627 = vmatpush1.bf16.msra.mxu0 %v2309
  %3628 = vmatprep.subr.bf16.mxu0 %v2314
  %3629 = vmatpush1.bf16.msra.mxu0 %v2313
  %3630 = vmatprep.mubr.bf16.mxu0 %v622
  %3631 = vmatmul.mubr.bf16.gmra.mrb[0].mxu0 %v621
  %v3632 = vpop.f32.mrb[0].mxu0
  %v3633 = vadd.f32 %v3590, %v3632
  %v3634 = vpop.f32.mrb[0].mxu0
  %v3635 = vadd.f32 %v3592, %v3634
  %v3636 = vpop.f32.mrb[0].mxu0
  %v3637 = vadd.f32 %v3594, %v3636
  %v3638 = vpop.f32.mrb[0].mxu0
  %v3639 = vadd.f32 %v3596, %v3638
  %3640 = vdwg.mxu0
  %3641 = vmatprep.subr.bf16.mxu0 %v2318
  %3642 = vmatpush1.bf16.msra.mxu0 %v2317
  %3643 = vmatprep.subr.bf16.mxu0 %v2322
  %3644 = vmatpush1.bf16.msra.mxu0 %v2321
  %3645 = vmatprep.subr.bf16.mxu0 %v2326
  %3646 = vmatpush1.bf16.msra.mxu0 %v2325
  %3647 = vmatprep.subr.bf16.mxu0 %v2330
  %3648 = vmatpush1.bf16.msra.mxu0 %v2329
  %3649 = vmatprep.subr.bf16.mxu0 %v2334
  %3650 = vmatpush1.bf16.msra.mxu0 %v2333
  %3651 = vmatprep.subr.bf16.mxu0 %v2338
  %3652 = vmatpush1.bf16.msra.mxu0 %v2337
  %3653 = vmatprep.subr.bf16.mxu0 %v2342
  %3654 = vmatpush1.bf16.msra.mxu0 %v2341
  %3655 = vmatprep.subr.bf16.mxu0 %v2346
  %3656 = vmatpush1.bf16.msra.mxu0 %v2345
  %3657 = vmatprep.subr.bf16.mxu0 %v2350
  %3658 = vmatpush1.bf16.msra.mxu0 %v2349
  %3659 = vmatprep.subr.bf16.mxu0 %v2354
  %3660 = vmatpush1.bf16.msra.mxu0 %v2353
  %3661 = vmatprep.subr.bf16.mxu0 %v2358
  %3662 = vmatpush1.bf16.msra.mxu0 %v2357
  %3663 = vmatprep.subr.bf16.mxu0 %v2362
  %3664 = vmatpush1.bf16.msra.mxu0 %v2361
  %3665 = vmatprep.subr.bf16.mxu0 %v2366
  %3666 = vmatpush1.bf16.msra.mxu0 %v2365
  %3667 = vmatprep.subr.bf16.mxu0 %v2370
  %3668 = vmatpush1.bf16.msra.mxu0 %v2369
  %3669 = vmatprep.subr.bf16.mxu0 %v2374
  %3670 = vmatpush1.bf16.msra.mxu0 %v2373
  %3671 = vmatprep.subr.bf16.mxu0 %v2378
  %3672 = vmatpush1.bf16.msra.mxu0 %v2377
  %3673 = vmatprep.mubr.bf16.mxu0 %v624
  %3674 = vmatmul.mubr.bf16.gmra.mrb[0].mxu0 %v623
  %v3675 = vpop.f32.mrb[0].mxu0
  %v3676 = vadd.f32 %v3633, %v3675
  %v3677 = vpop.f32.mrb[0].mxu0
  %v3678 = vadd.f32 %v3635, %v3677
  %v3679 = vpop.f32.mrb[0].mxu0
  %v3680 = vadd.f32 %v3637, %v3679
  %v3681 = vpop.f32.mrb[0].mxu0
  %v3682 = vadd.f32 %v3639, %v3681
  %3683 = vdwg.mxu0
  %3684 = vmatprep.subr.bf16.mxu0 %v2382
  %3685 = vmatpush1.bf16.msra.mxu0 %v2381
  %3686 = vmatprep.subr.bf16.mxu0 %v2386
  %3687 = vmatpush1.bf16.msra.mxu0 %v2385
  %3688 = vmatprep.subr.bf16.mxu0 %v2390
  %3689 = vmatpush1.bf16.msra.mxu0 %v2389
  %3690 = vmatprep.subr.bf16.mxu0 %v2394
  %3691 = vmatpush1.bf16.msra.mxu0 %v2393
  %3692 = vmatprep.subr.bf16.mxu0 %v2398
  %3693 = vmatpush1.bf16.msra.mxu0 %v2397
  %3694 = vmatprep.subr.bf16.mxu0 %v2402
  %3695 = vmatpush1.bf16.msra.mxu0 %v2401
  %3696 = vmatprep.subr.bf16.mxu0 %v2406
  %3697 = vmatpush1.bf16.msra.mxu0 %v2405
  %3698 = vmatprep.subr.bf16.mxu0 %v2410
  %3699 = vmatpush1.bf16.msra.mxu0 %v2409
  %3700 = vmatprep.subr.bf16.mxu0 %v2414
  %3701 = vmatpush1.bf16.msra.mxu0 %v2413
  %3702 = vmatprep.subr.bf16.mxu0 %v2418
  %3703 = vmatpush1.bf16.msra.mxu0 %v2417
  %3704 = vmatprep.subr.bf16.mxu0 %v2422
  %3705 = vmatpush1.bf16.msra.mxu0 %v2421
  %3706 = vmatprep.subr.bf16.mxu0 %v2426
  %3707 = vmatpush1.bf16.msra.mxu0 %v2425
  %3708 = vmatprep.subr.bf16.mxu0 %v2430
  %3709 = vmatpush1.bf16.msra.mxu0 %v2429
  %3710 = vmatprep.subr.bf16.mxu0 %v2434
  %3711 = vmatpush1.bf16.msra.mxu0 %v2433
  %3712 = vmatprep.subr.bf16.mxu0 %v2438
  %3713 = vmatpush1.bf16.msra.mxu0 %v2437
  %3714 = vmatprep.subr.bf16.mxu0 %v2442
  %3715 = vmatpush1.bf16.msra.mxu0 %v2441
  %3716 = vmatprep.mubr.bf16.mxu0 %v626
  %3717 = vmatmul.mubr.bf16.gmra.mrb[0].mxu0 %v625
  %v3718 = vpop.f32.mrb[0].mxu0
  %v3719 = vadd.f32 %v3676, %v3718
  %v3720 = vpop.f32.mrb[0].mxu0
  %v3721 = vadd.f32 %v3678, %v3720
  %v3722 = vpop.f32.mrb[0].mxu0
  %v3723 = vadd.f32 %v3680, %v3722
  %v3724 = vpop.f32.mrb[0].mxu0
  %v3725 = vadd.f32 %v3682, %v3724
  %3726 = vdwg.mxu0
  %3727 = vmatprep.subr.bf16.mxu0 %v2446
  %3728 = vmatpush1.bf16.msra.mxu0 %v2445
  %3729 = vmatprep.subr.bf16.mxu0 %v2450
  %3730 = vmatpush1.bf16.msra.mxu0 %v2449
  %3731 = vmatprep.subr.bf16.mxu0 %v2454
  %3732 = vmatpush1.bf16.msra.mxu0 %v2453
  %3733 = vmatprep.subr.bf16.mxu0 %v2458
  %3734 = vmatpush1.bf16.msra.mxu0 %v2457
  %3735 = vmatprep.subr.bf16.mxu0 %v2462
  %3736 = vmatpush1.bf16.msra.mxu0 %v2461
  %3737 = vmatprep.subr.bf16.mxu0 %v2466
  %3738 = vmatpush1.bf16.msra.mxu0 %v2465
  %3739 = vmatprep.subr.bf16.mxu0 %v2470
  %3740 = vmatpush1.bf16.msra.mxu0 %v2469
  %3741 = vmatprep.subr.bf16.mxu0 %v2474
  %3742 = vmatpush1.bf16.msra.mxu0 %v2473
  %3743 = vmatprep.subr.bf16.mxu0 %v2478
  %3744 = vmatpush1.bf16.msra.mxu0 %v2477
  %3745 = vmatprep.subr.bf16.mxu0 %v2482
  %3746 = vmatpush1.bf16.msra.mxu0 %v2481
  %3747 = vmatprep.subr.bf16.mxu0 %v2486
  %3748 = vmatpush1.bf16.msra.mxu0 %v2485
  %3749 = vmatprep.subr.bf16.mxu0 %v2490
  %3750 = vmatpush1.bf16.msra.mxu0 %v2489
  %3751 = vmatprep.subr.bf16.mxu0 %v2494
  %3752 = vmatpush1.bf16.msra.mxu0 %v2493
  %3753 = vmatprep.subr.bf16.mxu0 %v2498
  %3754 = vmatpush1.bf16.msra.mxu0 %v2497
  %3755 = vmatprep.subr.bf16.mxu0 %v2502
  %3756 = vmatpush1.bf16.msra.mxu0 %v2501
  %3757 = vmatprep.subr.bf16.mxu0 %v2506
  %3758 = vmatpush1.bf16.msra.mxu0 %v2505
  %3759 = vmatprep.mubr.bf16.mxu0 %v628
  %3760 = vmatmul.mubr.bf16.gmra.mrb[0].mxu0 %v627
  %v3761 = vpop.f32.mrb[0].mxu0
  %v3762 = vadd.f32 %v3719, %v3761
  %v3763 = vpop.f32.mrb[0].mxu0
  %v3764 = vadd.f32 %v3721, %v3763
  %v3765 = vpop.f32.mrb[0].mxu0
  %v3766 = vadd.f32 %v3723, %v3765
  %v3767 = vpop.f32.mrb[0].mxu0
  %v3768 = vadd.f32 %v3725, %v3767
  %3769 = vdwg.mxu0
  %3770 = vmatprep.subr.bf16.mxu0 %v2510
  %3771 = vmatpush1.bf16.msra.mxu0 %v2509
  %3772 = vmatprep.subr.bf16.mxu0 %v2514
  %3773 = vmatpush1.bf16.msra.mxu0 %v2513
  %3774 = vmatprep.subr.bf16.mxu0 %v2518
  %3775 = vmatpush1.bf16.msra.mxu0 %v2517
  %3776 = vmatprep.subr.bf16.mxu0 %v2522
  %3777 = vmatpush1.bf16.msra.mxu0 %v2521
  %3778 = vmatprep.subr.bf16.mxu0 %v2526
  %3779 = vmatpush1.bf16.msra.mxu0 %v2525
  %3780 = vmatprep.subr.bf16.mxu0 %v2530
  %3781 = vmatpush1.bf16.msra.mxu0 %v2529
  %3782 = vmatprep.subr.bf16.mxu0 %v2534
  %3783 = vmatpush1.bf16.msra.mxu0 %v2533
  %3784 = vmatprep.subr.bf16.mxu0 %v2538
  %3785 = vmatpush1.bf16.msra.mxu0 %v2537
  %3786 = vmatprep.subr.bf16.mxu0 %v2542
  %3787 = vmatpush1.bf16.msra.mxu0 %v2541
  %3788 = vmatprep.subr.bf16.mxu0 %v2546
  %3789 = vmatpush1.bf16.msra.mxu0 %v2545
  %3790 = vmatprep.subr.bf16.mxu0 %v2550
  %3791 = vmatpush1.bf16.msra.mxu0 %v2549
  %3792 = vmatprep.subr.bf16.mxu0 %v2554
  %3793 = vmatpush1.bf16.msra.mxu0 %v2553
  %3794 = vmatprep.subr.bf16.mxu0 %v2558
  %3795 = vmatpush1.bf16.msra.mxu0 %v2557
  %3796 = vmatprep.subr.bf16.mxu0 %v2562
  %3797 = vmatpush1.bf16.msra.mxu0 %v2561
  %3798 = vmatprep.subr.bf16.mxu0 %v2566
  %3799 = vmatpush1.bf16.msra.mxu0 %v2565
  %3800 = vmatprep.subr.bf16.mxu0 %v2570
  %3801 = vmatpush1.bf16.msra.mxu0 %v2569
  %3802 = vmatprep.mubr.bf16.mxu0 %v630
  %3803 = vmatmul.mubr.bf16.gmra.mrb[0].mxu0 %v629
  %v3804 = vpop.f32.mrb[0].mxu0
  %v3805 = vadd.f32 %v3762, %v3804
  %v3806 = vpop.f32.mrb[0].mxu0
  %v3807 = vadd.f32 %v3764, %v3806
  %v3808 = vpop.f32.mrb[0].mxu0
  %v3809 = vadd.f32 %v3766, %v3808
  %v3810 = vpop.f32.mrb[0].mxu0
  %v3811 = vadd.f32 %v3768, %v3810
  %3812 = vdwg.mxu0
  %3813 = vmatprep.subr.bf16.mxu0 %v2574
  %3814 = vmatpush1.bf16.msra.mxu0 %v2573
  %3815 = vmatprep.subr.bf16.mxu0 %v2578
  %3816 = vmatpush1.bf16.msra.mxu0 %v2577
  %3817 = vmatprep.subr.bf16.mxu0 %v2582
  %3818 = vmatpush1.bf16.msra.mxu0 %v2581
  %3819 = vmatprep.subr.bf16.mxu0 %v2586
  %3820 = vmatpush1.bf16.msra.mxu0 %v2585
  %3821 = vmatprep.subr.bf16.mxu0 %v2590
  %3822 = vmatpush1.bf16.msra.mxu0 %v2589
  %3823 = vmatprep.subr.bf16.mxu0 %v2594
  %3824 = vmatpush1.bf16.msra.mxu0 %v2593
  %3825 = vmatprep.subr.bf16.mxu0 %v2598
  %3826 = vmatpush1.bf16.msra.mxu0 %v2597
  %3827 = vmatprep.subr.bf16.mxu0 %v2602
  %3828 = vmatpush1.bf16.msra.mxu0 %v2601
  %3829 = vmatprep.subr.bf16.mxu0 %v2606
  %3830 = vmatpush1.bf16.msra.mxu0 %v2605
  %3831 = vmatprep.subr.bf16.mxu0 %v2610
  %3832 = vmatpush1.bf16.msra.mxu0 %v2609
  %3833 = vmatprep.subr.bf16.mxu0 %v2614
  %3834 = vmatpush1.bf16.msra.mxu0 %v2613
  %3835 = vmatprep.subr.bf16.mxu0 %v2618
  %3836 = vmatpush1.bf16.msra.mxu0 %v2617
  %3837 = vmatprep.subr.bf16.mxu0 %v2622
  %3838 = vmatpush1.bf16.msra.mxu0 %v2621
  %3839 = vmatprep.subr.bf16.mxu0 %v2626
  %3840 = vmatpush1.bf16.msra.mxu0 %v2625
  %3841 = vmatprep.subr.bf16.mxu0 %v2630
  %3842 = vmatpush1.bf16.msra.mxu0 %v2629
  %3843 = vmatprep.subr.bf16.mxu0 %v2634
  %3844 = vmatpush1.bf16.msra.mxu0 %v2633
  %3845 = vmatprep.mubr.bf16.mxu0 %v632
  %3846 = vmatmul.mubr.bf16.gmra.mrb[0].mxu0 %v631
  %v3847 = vpop.f32.mrb[0].mxu0
  %v3848 = vadd.f32 %v3805, %v3847
  %v3849 = vpop.f32.mrb[0].mxu0
  %v3850 = vadd.f32 %v3807, %v3849
  %v3851 = vpop.f32.mrb[0].mxu0
  %v3852 = vadd.f32 %v3809, %v3851
  %v3853 = vpop.f32.mrb[0].mxu0
  %v3854 = vadd.f32 %v3811, %v3853
  %3855 = vdwg.mxu0
  %3856 = vmatprep.subr.bf16.mxu0 %v2638
  %3857 = vmatpush1.bf16.msra.mxu0 %v2637
  %3858 = vmatprep.subr.bf16.mxu0 %v2642
  %3859 = vmatpush1.bf16.msra.mxu0 %v2641
  %3860 = vmatprep.subr.bf16.mxu0 %v2646
  %3861 = vmatpush1.bf16.msra.mxu0 %v2645
  %3862 = vmatprep.subr.bf16.mxu0 %v2650
  %3863 = vmatpush1.bf16.msra.mxu0 %v2649
  %3864 = vmatprep.subr.bf16.mxu0 %v2654
  %3865 = vmatpush1.bf16.msra.mxu0 %v2653
  %3866 = vmatprep.subr.bf16.mxu0 %v2658
  %3867 = vmatpush1.bf16.msra.mxu0 %v2657
  %3868 = vmatprep.subr.bf16.mxu0 %v2662
  %3869 = vmatpush1.bf16.msra.mxu0 %v2661
  %3870 = vmatprep.subr.bf16.mxu0 %v2666
  %3871 = vmatpush1.bf16.msra.mxu0 %v2665
  %3872 = vmatprep.subr.bf16.mxu0 %v2670
  %3873 = vmatpush1.bf16.msra.mxu0 %v2669
  %3874 = vmatprep.subr.bf16.mxu0 %v2674
  %3875 = vmatpush1.bf16.msra.mxu0 %v2673
  %3876 = vmatprep.subr.bf16.mxu0 %v2678
  %3877 = vmatpush1.bf16.msra.mxu0 %v2677
  %3878 = vmatprep.subr.bf16.mxu0 %v2682
  %3879 = vmatpush1.bf16.msra.mxu0 %v2681
  %3880 = vmatprep.subr.bf16.mxu0 %v2686
  %3881 = vmatpush1.bf16.msra.mxu0 %v2685
  %3882 = vmatprep.subr.bf16.mxu0 %v2690
  %3883 = vmatpush1.bf16.msra.mxu0 %v2689
  %3884 = vmatprep.subr.bf16.mxu0 %v2694
  %3885 = vmatpush1.bf16.msra.mxu0 %v2693
  %3886 = vmatprep.subr.bf16.mxu0 %v2698
  %3887 = vmatpush1.bf16.msra.mxu0 %v2697
  %3888 = vmatprep.mubr.bf16.mxu0 %v634
  %3889 = vmatmul.mubr.bf16.gmra.mrb[0].mxu0 %v633
  %v3890 = vpop.f32.mrb[0].mxu0
  %v3891 = vadd.f32 %v3848, %v3890
  %v3892 = vpop.f32.mrb[0].mxu0
  %v3893 = vadd.f32 %v3850, %v3892
  %v3894 = vpop.f32.mrb[0].mxu0
  %v3895 = vadd.f32 %v3852, %v3894
  %v3896 = vpop.f32.mrb[0].mxu0
  %v3897 = vadd.f32 %v3854, %v3896
  %3898 = vdwg.mxu0
  %v3899 = vmax.f32 %v3547, 0.0
  %v3900 = vmax.f32 %v3549, 0.0
  %v3901 = vmax.f32 %v3891, 0.0
  %v3902 = vmax.f32 %v3893, 0.0
  %v3903 = vmax.f32 %v3551, 0.0
  %v3904 = vmax.f32 %v3553, 0.0
  %v3905 = vmax.f32 %v3895, 0.0
  %v3906 = vmax.f32 %v3897, 0.0
  %v3907 = vpack.c.bf16 %v3903, %v3899
  %v3908 = vpack.c.bf16 %v3904, %v3900
  %v3909 = vpack.c.bf16 %v3905, %v3901
  %v3910 = vpack.c.bf16 %v3906, %v3902
  %v3911 = vld [vmem:[%s3] sm:$0xf]
  %v3912 = vld [vmem:[%s3 + $0x4] sm:$0xf]
  %v3913 = vld [vmem:[%s3 + $0x8] sm:$0xf]
  %v3914 = vld [vmem:[%s3 + $0xc] sm:$0xf]
  %v3915 = vld [vmem:[%s3 + $0x10] sm:$0xf]
  %v3916 = vld [vmem:[%s3 + $0x14] sm:$0xf]
  %v3917 = vld [vmem:[%s3 + $0x18] sm:$0xf]
  %v3918 = vld [vmem:[%s3 + $0x1c] sm:$0xf]
  %v3919 = vld [vmem:[%s3 + $0x20] sm:$0xf]
  %v3920 = vld [vmem:[%s3 + $0x24] sm:$0xf]
  %v3921 = vld [vmem:[%s3 + $0x28] sm:$0xf]
  %v3922 = vld [vmem:[%s3 + $0x2c] sm:$0xf]
  %v3923 = vld [vmem:[%s3 + $0x30] sm:$0xf]
  %v3924 = vld [vmem:[%s3 + $0x34] sm:$0xf]
  %v3925 = vld [vmem:[%s3 + $0x38] sm:$0xf]
  %v3926 = vld [vmem:[%s3 + $0x3c] sm:$0xf]
  %v3927 = vld [vmem:[%s3 + $0x40] sm:$0xf]
  %v3928 = vld [vmem:[%s3 + $0x44] sm:$0xf]
  %v3929 = vld [vmem:[%s3 + $0x48] sm:$0xf]
  %v3930 = vld [vmem:[%s3 + $0x4c] sm:$0xf]
  %v3931 = vld [vmem:[%s3 + $0x50] sm:$0xf]
  %v3932 = vld [vmem:[%s3 + $0x54] sm:$0xf]
  %v3933 = vld [vmem:[%s3 + $0x58] sm:$0xf]
  %v3934 = vld [vmem:[%s3 + $0x5c] sm:$0xf]
  %v3935 = vld [vmem:[%s3 + $0x60] sm:$0xf]
  %v3936 = vld [vmem:[%s3 + $0x64] sm:$0xf]
  %v3937 = vld [vmem:[%s3 + $0x68] sm:$0xf]
  %v3938 = vld [vmem:[%s3 + $0x6c] sm:$0xf]
  %v3939 = vld [vmem:[%s3 + $0x70] sm:$0xf]
  %v3940 = vld [vmem:[%s3 + $0x74] sm:$0xf]
  %v3941 = vld [vmem:[%s3 + $0x78] sm:$0xf]
  %v3942 = vld [vmem:[%s3 + $0x7c] sm:$0xf]
  %v3943 = vld [vmem:[%s3 + $0x80] sm:$0xf]
  %v3944 = vld [vmem:[%s3 + $0x84] sm:$0xf]
  %v3945 = vld [vmem:[%s3 + $0x88] sm:$0xf]
  %v3946 = vld [vmem:[%s3 + $0x8c] sm:$0xf]
  %v3947 = vld [vmem:[%s3 + $0x90] sm:$0xf]
  %v3948 = vld [vmem:[%s3 + $0x94] sm:$0xf]
  %v3949 = vld [vmem:[%s3 + $0x98] sm:$0xf]
  %v3950 = vld [vmem:[%s3 + $0x9c] sm:$0xf]
  %v3951 = vld [vmem:[%s3 + $0xa0] sm:$0xf]
  %v3952 = vld [vmem:[%s3 + $0xa4] sm:$0xf]
  %v3953 = vld [vmem:[%s3 + $0xa8] sm:$0xf]
  %v3954 = vld [vmem:[%s3 + $0xac] sm:$0xf]
  %v3955 = vld [vmem:[%s3 + $0xb0] sm:$0xf]
  %v3956 = vld [vmem:[%s3 + $0xb4] sm:$0xf]
  %v3957 = vld [vmem:[%s3 + $0xb8] sm:$0xf]
  %v3958 = vld [vmem:[%s3 + $0xbc] sm:$0xf]
  %v3959 = vld [vmem:[%s3 + $0xc0] sm:$0xf]
  %v3960 = vld [vmem:[%s3 + $0xc4] sm:$0xf]
  %v3961 = vld [vmem:[%s3 + $0xc8] sm:$0xf]
  %v3962 = vld [vmem:[%s3 + $0xcc] sm:$0xf]
  %v3963 = vld [vmem:[%s3 + $0xd0] sm:$0xf]
  %v3964 = vld [vmem:[%s3 + $0xd4] sm:$0xf]
  %v3965 = vld [vmem:[%s3 + $0xd8] sm:$0xf]
  %v3966 = vld [vmem:[%s3 + $0xdc] sm:$0xf]
  %v3967 = vld [vmem:[%s3 + $0xe0] sm:$0xf]
  %v3968 = vld [vmem:[%s3 + $0xe4] sm:$0xf]
  %v3969 = vld [vmem:[%s3 + $0xe8] sm:$0xf]
  %v3970 = vld [vmem:[%s3 + $0xec] sm:$0xf]
  %v3971 = vld [vmem:[%s3 + $0xf0] sm:$0xf]
  %v3972 = vld [vmem:[%s3 + $0xf4] sm:$0xf]
  %v3973 = vld [vmem:[%s3 + $0xf8] sm:$0xf]
  %v3974 = vld [vmem:[%s3 + $0xfc] sm:$0xf]
  %v3975 = vld [vmem:[%s4] sm:$0x1]
  %v3977 = vlaneseq
  %v3978 = vshrl.u32 %v3977, 7
  %v3979 = vsub.s32 0, %v3978
  %v3980 = vrot.slane %v3975, %v3979
  %v4046 = vunpack.c.l.b16 %v3911
  %v4047 = vunpack.c.l.b16 %v3912
  %v4048 = vunpack.c.l.b16 %v3913
  %v4049 = vunpack.c.l.b16 %v3914
  %v4050 = vunpack.c.l.b16 %v3915
  %v4051 = vunpack.c.l.b16 %v3916
  %v4052 = vunpack.c.l.b16 %v3917
  %v4053 = vunpack.c.l.b16 %v3918
  %v4054 = vunpack.c.l.b16 %v3919
  %v4055 = vunpack.c.l.b16 %v3920
  %v4056 = vunpack.c.l.b16 %v3921
  %v4057 = vunpack.c.l.b16 %v3922
  %v4058 = vunpack.c.l.b16 %v3923
  %v4059 = vunpack.c.l.b16 %v3924
  %v4060 = vunpack.c.l.b16 %v3925
  %v4061 = vunpack.c.l.b16 %v3926
  %v4062 = vunpack.c.l.b16 %v3927
  %v4063 = vunpack.c.l.b16 %v3928
  %v4064 = vunpack.c.l.b16 %v3929
  %v4065 = vunpack.c.l.b16 %v3930
  %v4066 = vunpack.c.l.b16 %v3931
  %v4067 = vunpack.c.l.b16 %v3932
  %v4068 = vunpack.c.l.b16 %v3933
  %v4069 = vunpack.c.l.b16 %v3934
  %v4070 = vunpack.c.l.b16 %v3935
  %v4071 = vunpack.c.l.b16 %v3936
  %v4072 = vunpack.c.l.b16 %v3937
  %v4073 = vunpack.c.l.b16 %v3938
  %v4074 = vunpack.c.l.b16 %v3939
  %v4075 = vunpack.c.l.b16 %v3940
  %v4076 = vunpack.c.l.b16 %v3941
  %v4077 = vunpack.c.l.b16 %v3942
  %v4078 = vunpack.c.l.b16 %v3943
  %v4079 = vunpack.c.l.b16 %v3944
  %v4080 = vunpack.c.l.b16 %v3945
  %v4081 = vunpack.c.l.b16 %v3946
  %v4082 = vunpack.c.l.b16 %v3947
  %v4083 = vunpack.c.l.b16 %v3948
  %v4084 = vunpack.c.l.b16 %v3949
  %v4085 = vunpack.c.l.b16 %v3950
  %v4086 = vunpack.c.l.b16 %v3951
  %v4087 = vunpack.c.l.b16 %v3952
  %v4088 = vunpack.c.l.b16 %v3953
  %v4089 = vunpack.c.l.b16 %v3954
  %v4090 = vunpack.c.l.b16 %v3955
  %v4091 = vunpack.c.l.b16 %v3956
  %v4092 = vunpack.c.l.b16 %v3957
  %v4093 = vunpack.c.l.b16 %v3958
  %v4094 = vunpack.c.l.b16 %v3959
  %v4095 = vunpack.c.l.b16 %v3960
  %v4096 = vunpack.c.l.b16 %v3961
  %v4097 = vunpack.c.l.b16 %v3962
  %v4098 = vunpack.c.l.b16 %v3963
  %v4099 = vunpack.c.l.b16 %v3964
  %v4100 = vunpack.c.l.b16 %v3965
  %v4101 = vunpack.c.l.b16 %v3966
  %v4102 = vunpack.c.l.b16 %v3967
  %v4103 = vunpack.c.l.b16 %v3968
  %v4104 = vunpack.c.l.b16 %v3969
  %v4105 = vunpack.c.l.b16 %v3970
  %v4106 = vunpack.c.l.b16 %v3971
  %v4107 = vunpack.c.l.b16 %v3972
  %v4108 = vunpack.c.l.b16 %v3973
  %v4109 = vunpack.c.l.b16 %v3974
  %v4110 = vpack.c.b16 %v4047, %v4046
  %v4111 = vpack.c.b16 %v4049, %v4048
  %v4112 = vpack.c.b16 %v4051, %v4050
  %v4113 = vpack.c.b16 %v4053, %v4052
  %v4114 = vpack.c.b16 %v4055, %v4054
  %v4115 = vpack.c.b16 %v4057, %v4056
  %v4116 = vpack.c.b16 %v4059, %v4058
  %v4117 = vpack.c.b16 %v4061, %v4060
  %v4118 = vpack.c.b16 %v4063, %v4062
  %v4119 = vpack.c.b16 %v4065, %v4064
  %v4120 = vpack.c.b16 %v4067, %v4066
  %v4121 = vpack.c.b16 %v4069, %v4068
  %v4122 = vpack.c.b16 %v4071, %v4070
  %v4123 = vpack.c.b16 %v4073, %v4072
  %v4124 = vpack.c.b16 %v4075, %v4074
  %v4125 = vpack.c.b16 %v4077, %v4076
  %v4126 = vpack.c.b16 %v4079, %v4078
  %v4127 = vpack.c.b16 %v4081, %v4080
  %v4128 = vpack.c.b16 %v4083, %v4082
  %v4129 = vpack.c.b16 %v4085, %v4084
  %v4130 = vpack.c.b16 %v4087, %v4086
  %v4131 = vpack.c.b16 %v4089, %v4088
  %v4132 = vpack.c.b16 %v4091, %v4090
  %v4133 = vpack.c.b16 %v4093, %v4092
  %v4134 = vpack.c.b16 %v4095, %v4094
  %v4135 = vpack.c.b16 %v4097, %v4096
  %v4136 = vpack.c.b16 %v4099, %v4098
  %v4137 = vpack.c.b16 %v4101, %v4100
  %v4138 = vpack.c.b16 %v4103, %v4102
  %v4139 = vpack.c.b16 %v4105, %v4104
  %v4140 = vpack.c.b16 %v4107, %v4106
  %v4141 = vpack.c.b16 %v4109, %v4108
  %4174 = vmatprep.subr.bf16.mxu0 0
  %4175 = vmatpush1.bf16.msra.mxu0 %v4110
  %4176 = vmatprep.subr.bf16.mxu0 0
  %4177 = vmatpush1.bf16.msra.mxu0 %v4111
  %4178 = vmatprep.subr.bf16.mxu0 0
  %4179 = vmatpush1.bf16.msra.mxu0 %v4112
  %4180 = vmatprep.subr.bf16.mxu0 0
  %4181 = vmatpush1.bf16.msra.mxu0 %v4113
  %4182 = vmatprep.subr.bf16.mxu0 0
  %4183 = vmatpush1.bf16.msra.mxu0 %v4114
  %4184 = vmatprep.subr.bf16.mxu0 0
  %4185 = vmatpush1.bf16.msra.mxu0 %v4115
  %4186 = vmatprep.subr.bf16.mxu0 0
  %4187 = vmatpush1.bf16.msra.mxu0 %v4116
  %4188 = vmatprep.subr.bf16.mxu0 0
  %4189 = vmatpush1.bf16.msra.mxu0 %v4117
  %4190 = vmatprep.subr.bf16.mxu0 0
  %4191 = vmatpush1.bf16.msra.mxu0 %v4118
  %4192 = vmatprep.subr.bf16.mxu0 0
  %4193 = vmatpush1.bf16.msra.mxu0 %v4119
  %4194 = vmatprep.subr.bf16.mxu0 0
  %4195 = vmatpush1.bf16.msra.mxu0 %v4120
  %4196 = vmatprep.subr.bf16.mxu0 0
  %4197 = vmatpush1.bf16.msra.mxu0 %v4121
  %4198 = vmatprep.subr.bf16.mxu0 0
  %4199 = vmatpush1.bf16.msra.mxu0 %v4122
  %4200 = vmatprep.subr.bf16.mxu0 0
  %4201 = vmatpush1.bf16.msra.mxu0 %v4123
  %4202 = vmatprep.subr.bf16.mxu0 0
  %4203 = vmatpush1.bf16.msra.mxu0 %v4124
  %4204 = vmatprep.subr.bf16.mxu0 0
  %4205 = vmatpush1.bf16.msra.mxu0 %v4125
  %4206 = vmatprep.mubr.bf16.mxu0 %v3908
  %4207 = vmatmul.mubr.bf16.gmra.mrb[0].mxu0 %v3907
  %v4208 = vpop.f32.mrb[0].mxu0
  %v4209 = vadd.f32 %v3980, %v4208
  %v4210 = vpop.f32.mrb[0].mxu0
  %v4211 = vpop.f32.mrb[0].mxu0
  %v4212 = vadd.f32 %v3980, %v4211
  %v4213 = vpop.f32.mrb[0].mxu0
  %4214 = vdwg.mxu0
  %4215 = vmatprep.subr.bf16.mxu0 0
  %4216 = vmatpush1.bf16.msra.mxu0 %v4126
  %4217 = vmatprep.subr.bf16.mxu0 0
  %4218 = vmatpush1.bf16.msra.mxu0 %v4127
  %4219 = vmatprep.subr.bf16.mxu0 0
  %4220 = vmatpush1.bf16.msra.mxu0 %v4128
  %4221 = vmatprep.subr.bf16.mxu0 0
  %4222 = vmatpush1.bf16.msra.mxu0 %v4129
  %4223 = vmatprep.subr.bf16.mxu0 0
  %4224 = vmatpush1.bf16.msra.mxu0 %v4130
  %4225 = vmatprep.subr.bf16.mxu0 0
  %4226 = vmatpush1.bf16.msra.mxu0 %v4131
  %4227 = vmatprep.subr.bf16.mxu0 0
  %4228 = vmatpush1.bf16.msra.mxu0 %v4132
  %4229 = vmatprep.subr.bf16.mxu0 0
  %4230 = vmatpush1.bf16.msra.mxu0 %v4133
  %4231 = vmatprep.subr.bf16.mxu0 0
  %4232 = vmatpush1.bf16.msra.mxu0 %v4134
  %4233 = vmatprep.subr.bf16.mxu0 0
  %4234 = vmatpush1.bf16.msra.mxu0 %v4135
  %4235 = vmatprep.subr.bf16.mxu0 0
  %4236 = vmatpush1.bf16.msra.mxu0 %v4136
  %4237 = vmatprep.subr.bf16.mxu0 0
  %4238 = vmatpush1.bf16.msra.mxu0 %v4137
  %4239 = vmatprep.subr.bf16.mxu0 0
  %4240 = vmatpush1.bf16.msra.mxu0 %v4138
  %4241 = vmatprep.subr.bf16.mxu0 0
  %4242 = vmatpush1.bf16.msra.mxu0 %v4139
  %4243 = vmatprep.subr.bf16.mxu0 0
  %4244 = vmatpush1.bf16.msra.mxu0 %v4140
  %4245 = vmatprep.subr.bf16.mxu0 0
  %4246 = vmatpush1.bf16.msra.mxu0 %v4141
  %4247 = vmatprep.mubr.bf16.mxu0 %v3910
  %4248 = vmatmul.mubr.bf16.gmra.mrb[0].mxu0 %v3909
  %v4249 = vpop.f32.mrb[0].mxu0
  %v4250 = vadd.f32 %v4209, %v4249
  %v4251 = vpop.f32.mrb[0].mxu0
  %v4252 = vpop.f32.mrb[0].mxu0
  %v4253 = vadd.f32 %v4212, %v4252
  %v4254 = vpop.f32.mrb[0].mxu0
  %4255 = vdwg.mxu0
  %v4256 = vmax.f32 %v4250, 0.0
  %v4257 = vmax.f32 %v4253, 0.0
  %4258 = vst [vmem:[%s5] sm:$0xff] %v4256
  %4259 = vst [vmem:[%s5 + $0x8] sm:$0xff] %v4257
  // Predicated region
  $region22: #{lenet_forward.5} parent=0 // pred_check
    _
  $region23: #{lenet_forward.5} parent=0 // pred_check_branch
    %4261 = sbr.rel (0) target = $region25
  $region24: #{lenet_forward.5} parent=0 // pred_region
    _
  $region25: #{lenet_forward.5} parent=0 // pred_fallthru
    _
  // Predicated region
  $region26: #{lenet_forward.5} parent=0 // pred_check
    _
  $region27: #{lenet_forward.5} parent=0 // pred_check_branch
    %4263 = sbr.rel (0) target = $region29
  $region28: #{lenet_forward.5} parent=0 // pred_region
    _
  $region29: #{lenet_forward.5} parent=0 // pred_fallthru
    _

</llo_original>
